<compile_context>
chip_gen: v7x
topology: tpu7x:2x2x1
jax: 0.10.0
libtpu: 0.0.40
codegen_flags: <defaults>
</compile_context>

<pallas_src>
import functools
import math

import jax
import jax.numpy as jnp
from jax.experimental import pallas as pl
from jax.experimental.pallas import tpu as pltpu


def _layer_norm(v, gamma, beta, eps=1e-5):
    mu = jnp.mean(v, axis=-1, keepdims=True)
    var = jnp.mean(jnp.square(v - mu), axis=-1, keepdims=True)
    return (v - mu) * jax.lax.rsqrt(var + eps) * gamma + beta


def decoder_kernel(
    # per-(batch, query-tile) data tiles
    xq_ref, xkv_ref, enc_ref, omask_ref, imask_ref,
    # masked self-attention params (Q separate, K/V fused)
    wq1, bq1, wkv1, bkv1, wo1, bo1,
    # cross-attention params
    wq2, bq2, wkv2, bkv2, wo2, bo2,
    # feed-forward params
    wf1, bf1, wf2, bf2,
    # layer norms
    g1, be1, g2, be2, g3, be3,
    # output
    out_ref,
    *, heads, head_dim,
):
    f32, bf16 = jnp.float32, jnp.bfloat16
    E = heads * head_dim

    xq = xq_ref[0]        # (TQ, E)   query rows of the decoder input
    xkv = xkv_ref[0]      # (S_t, E)  full decoder input (self-attn keys/values)
    enc = enc_ref[0]      # (S_s, E)  encoder output (cross-attn keys/values)
    omask = omask_ref[0]  # (TQ, S_t) int8, 0 = masked
    imask = imask_ref[0]  # (TQ, S_s) int8, 0 = masked

    def attention(q_in, kv_in, mask, wq, bq, wkv, bkv, wo, bo):
        # bf16 operands on the MXU, f32 accumulation; softmax kept in f32.
        q = jnp.dot(q_in.astype(bf16), wq[...], preferred_element_type=f32) + bq[...]
        kv = jnp.dot(kv_in.astype(bf16), wkv[...], preferred_element_type=f32) + bkv[...]
        k = kv[:, :E]
        v = kv[:, E:]

        # Head-major (H, S, d) stacks -> a single batched contraction covers all
        # heads at once (no per-head matmul loop, no k.T materialisation).
        def split_heads(t):
            return jnp.stack(
                [t[:, h * head_dim:(h + 1) * head_dim] for h in range(heads)],
                axis=0,
            ).astype(bf16)

        qh = split_heads(q)   # (H, Sq, d)
        kh = split_heads(k)   # (H, Sk, d)
        vh = split_heads(v)   # (H, Sk, d)

        s = jnp.einsum("hqd,hkd->hqk", qh, kh, preferred_element_type=f32)
        s = s * (1.0 / math.sqrt(head_dim))
        # mask == 0 -> -1e20; a fully-masked row degrades to a uniform
        # distribution, exactly matching the reference softmax of all -1e20.
        s = jnp.where(mask[None, :, :] != 0, s, -1e20)
        s = s - jnp.max(s, axis=-1, keepdims=True)
        p = jnp.exp(s)
        # approximate reciprocal goes to the (otherwise idle) EUP slot.
        p = p * pl.reciprocal(jnp.sum(p, axis=-1, keepdims=True), approx=True)

        ctx = jnp.einsum("hqk,hkd->hqd", p.astype(bf16), vh,
                         preferred_element_type=f32)                     # (H, Sq, d)
        ctx = jnp.concatenate([ctx[h] for h in range(heads)], axis=-1)   # (Sq, E)
        return jnp.dot(ctx.astype(bf16), wo[...], preferred_element_type=f32) + bo[...]

    # 1) masked self-attention + add & norm (residual / layernorm in f32)
    a1 = attention(xq, xkv, omask, wq1, bq1, wkv1, bkv1, wo1, bo1)
    sub1 = _layer_norm(xq + a1, g1[...], be1[...])

    # 2) cross-attention (queries = sub1, keys/values = encoder output) + add & norm
    a2 = attention(sub1, enc, imask, wq2, bq2, wkv2, bkv2, wo2, bo2)
    sub2 = _layer_norm(a2 + sub1, g2[...], be2[...])

    # 3) position-wise feed forward + add & norm
    h1 = jnp.dot(sub2.astype(bf16), wf1[...], preferred_element_type=f32) + bf1[...]
    h1 = jnp.maximum(h1, 0.0)
    ff = jnp.dot(h1.astype(bf16), wf2[...], preferred_element_type=f32) + bf2[...]
    sub3 = _layer_norm(ff + sub2, g3[...], be3[...])

    out_ref[0] = sub3


def decoder_forward(x, encoder_op, input_mask, output_mask, params, *, heads):
    B, S_t, E = x.shape
    S_s = encoder_op.shape[1]
    assert E % heads == 0
    head_dim = E // heads
    ff_dim = params["wf1"].shape[1]

    # Query tiling: one grid step = TQ decoder rows of one batch element.
    TQ = 128 if S_t % 128 == 0 else S_t
    n_q = S_t // TQ

    f32, bf16 = jnp.float32, jnp.bfloat16

    # Pack weights once host-side: bf16 MXU operands (half the weight HBM/VMEM
    # traffic), K and V fused into a single (E, 2E) projection per attention.
    wq1 = params["wq1"].astype(bf16)
    wkv1 = jnp.concatenate([params["wk1"], params["wv1"]], axis=1).astype(bf16)
    wo1 = params["wo1"].astype(bf16)
    bq1 = params["bq1"].astype(f32)
    bkv1 = jnp.concatenate([params["bk1"], params["bv1"]], axis=1).astype(f32)
    bo1 = params["bo1"].astype(f32)

    wq2 = params["wq2"].astype(bf16)
    wkv2 = jnp.concatenate([params["wk2"], params["wv2"]], axis=1).astype(bf16)
    wo2 = params["wo2"].astype(bf16)
    bq2 = params["bq2"].astype(f32)
    bkv2 = jnp.concatenate([params["bk2"], params["bv2"]], axis=1).astype(f32)
    bo2 = params["bo2"].astype(f32)

    wf1 = params["wf1"].astype(bf16)
    bf1 = params["bf1"].astype(f32)
    wf2 = params["wf2"].astype(bf16)
    bf2 = params["bf2"].astype(f32)

    g1, be1 = params["g1"].astype(f32), params["be1"].astype(f32)
    g2, be2 = params["g2"].astype(f32), params["be2"].astype(f32)
    g3, be3 = params["g3"].astype(f32), params["be3"].astype(f32)

    weights = [wq1, bq1, wkv1, bkv1, wo1, bo1,
               wq2, bq2, wkv2, bkv2, wo2, bo2,
               wf1, bf1, wf2, bf2,
               g1, be1, g2, be2, g3, be3]

    # Masks shipped as int8 (0 = masked, nonzero = keep).
    omask = (output_mask != 0).astype(jnp.int8)
    imask = (input_mask != 0).astype(jnp.int8)

    def wspec(w):
        # Constant index_map -> Pallas keeps the resident copy across grid steps.
        return pl.BlockSpec(w.shape, lambda b, q, nd=w.ndim: (0,) * nd)

    in_specs = [
        pl.BlockSpec((1, TQ, E), lambda b, q: (b, q, 0)),     # x: query rows
        pl.BlockSpec((1, S_t, E), lambda b, q: (b, 0, 0)),    # x: full (self-attn K/V)
        pl.BlockSpec((1, S_s, E), lambda b, q: (b, 0, 0)),    # encoder output
        pl.BlockSpec((1, TQ, S_t), lambda b, q: (b, q, 0)),   # self-attn mask rows
        pl.BlockSpec((1, TQ, S_s), lambda b, q: (b, q, 0)),   # cross-attn mask rows
    ] + [wspec(w) for w in weights]

    kernel = functools.partial(decoder_kernel, heads=heads, head_dim=head_dim)

    # Advisory cost estimate so XLA schedules around the custom call sensibly.
    per_step_flops = (
        2 * TQ * E * E            # self-attn Q projection
        + 2 * S_t * E * 2 * E     # self-attn fused K/V projection
        + 4 * TQ * S_t * E        # self-attn scores + context
        + 2 * TQ * E * E          # self-attn output projection
        + 2 * TQ * E * E          # cross-attn Q projection
        + 2 * S_s * E * 2 * E     # cross-attn fused K/V projection
        + 4 * TQ * S_s * E        # cross-attn scores + context
        + 2 * TQ * E * E          # cross-attn output projection
        + 2 * TQ * E * ff_dim     # FFN up
        + 2 * TQ * ff_dim * E     # FFN down
    )
    cost = pl.CostEstimate(
        flops=int(B * n_q * per_step_flops),
        transcendentals=int(B * n_q * heads * (TQ * S_t + TQ * S_s)),
        bytes_accessed=int(2 * x.nbytes + encoder_op.nbytes + omask.nbytes
                           + imask.nbytes + sum(int(w.nbytes) for w in weights)
                           + B * S_t * E * 4),
    )

    return pl.pallas_call(
        kernel,
        out_shape=jax.ShapeDtypeStruct((B, S_t, E), jnp.float32),
        grid=(B, n_q),
        in_specs=in_specs,
        out_specs=pl.BlockSpec((1, TQ, E), lambda b, q: (b, q, 0)),
        compiler_params=pltpu.CompilerParams(
            dimension_semantics=("parallel", "parallel"),
            vmem_limit_bytes=32 * 1024 * 1024,
        ),
        cost_estimate=cost,
    )(x, x, encoder_op, omask, imask, *weights)


# ----------------------- pure-JAX reference (for sanity check) -----------------------
def decoder_reference(x, encoder_op, input_mask, output_mask, params, *, heads):
    E = x.shape[-1]
    dh = E // heads

    def ln(v, g, b):
        mu = jnp.mean(v, axis=-1, keepdims=True)
        var = jnp.mean((v - mu) ** 2, axis=-1, keepdims=True)
        return (v - mu) / jnp.sqrt(var + 1e-5) * g + b

    def mha(q_in, kv_in, mask, wq, wk, wv, wo, bq, bk, bv, bo):
        q = q_in @ wq + bq
        k = kv_in @ wk + bk
        v = kv_in @ wv + bv
        B, Sq, _ = q.shape
        Sk = k.shape[1]
        qh = q.reshape(B, Sq, heads, dh).transpose(0, 2, 1, 3)
        kh = k.reshape(B, Sk, heads, dh).transpose(0, 2, 1, 3)
        vh = v.reshape(B, Sk, heads, dh).transpose(0, 2, 1, 3)
        s = jnp.einsum("bhqd,bhkd->bhqk", qh, kh) / math.sqrt(dh)
        s = jnp.where(mask[:, None, :, :] == 0.0, -1e20, s)
        p = jax.nn.softmax(s, axis=-1)
        ctx = jnp.einsum("bhqk,bhkd->bhqd", p, vh).transpose(0, 2, 1, 3).reshape(B, Sq, E)
        return ctx @ wo + bo

    p = params
    a1 = mha(x, x, output_mask, p["wq1"], p["wk1"], p["wv1"], p["wo1"],
             p["bq1"], p["bk1"], p["bv1"], p["bo1"])
    s1 = ln(x + a1, p["g1"], p["be1"])
    a2 = mha(s1, encoder_op, input_mask, p["wq2"], p["wk2"], p["wv2"], p["wo2"],
             p["bq2"], p["bk2"], p["bv2"], p["bo2"])
    s2 = ln(a2 + s1, p["g2"], p["be2"])
    ff = jnp.maximum(s2 @ p["wf1"] + p["bf1"], 0.0) @ p["wf2"] + p["bf2"]
    return ln(ff + s2, p["g3"], p["be3"])


def init_params(key, embed_size, ff_dim):
    keys = jax.random.split(key, 26)
    ki = iter(keys)

    def w(k, shape, scale=0.02):
        return (scale * jax.random.normal(k, shape, jnp.float32)).astype(jnp.float32)

    p = {}
    for blk in ("1", "2"):
        for name in ("q", "k", "v", "o"):
            p["w" + name + blk] = w(next(ki), (embed_size, embed_size))
            p["b" + name + blk] = w(next(ki), (1, embed_size))
    p["wf1"] = w(next(ki), (embed_size, ff_dim))
    p["bf1"] = w(next(ki), (1, ff_dim))
    p["wf2"] = w(next(ki), (ff_dim, embed_size))
    p["bf2"] = w(next(ki), (1, embed_size))
    for n in ("1", "2", "3"):
        p["g" + n] = 1.0 + w(next(ki), (1, embed_size), 0.05)
        p["be" + n] = w(next(ki), (1, embed_size), 0.05)
    return p


if __name__ == "__main__":
    B, S_tgt, S_src = 2, 8, 10
    embed_size, head, ff_dim = 128, 4, 256   # E multiple of 128 -> lane-dense stores

    key = jax.random.PRNGKey(0)
    kx, kenc, kp = jax.random.split(key, 3)

    x = jax.random.normal(kx, (B, S_tgt, embed_size), jnp.float32)
    encoder_op = jax.random.normal(kenc, (B, S_src, embed_size), jnp.float32)
    # causal mask for decoder self-attention, full visibility for cross-attention
    output_mask = jnp.broadcast_to(
        jnp.tril(jnp.ones((S_tgt, S_tgt), jnp.float32)), (B, S_tgt, S_tgt))
    input_mask = jnp.ones((B, S_tgt, S_src), jnp.float32)

    params = init_params(kp, embed_size, ff_dim)

    out = decoder_forward(x, encoder_op, input_mask, output_mask, params, heads=head)
    out = jax.block_until_ready(out)

    ref = decoder_reference(x, encoder_op, input_mask, output_mask, params, heads=head)
    assert out.shape == (B, S_tgt, embed_size)
    # bf16 MXU operands (weights + activations) -> compare at bf16-level tolerance;
    # residual/layernorm/softmax stay f32 so the error is far below this bound.
    max_err = float(jnp.max(jnp.abs(out - ref)))
    assert jnp.allclose(out, ref, atol=2e-2, rtol=2e-2), f"mismatch vs reference: {max_err}"

    print("KERNEL_OK")
</pallas_src>

<mosaic_0001>
module attributes {stable_mosaic.version = 11 : i64} {
  func.func @decoder_kernel(%arg0: i32, %arg1: i32, %arg2: memref<1x8x128xf32, #tpu.memory_space<vmem>>, %arg3: memref<1x8x128xf32, #tpu.memory_space<vmem>>, %arg4: memref<1x10x128xf32, #tpu.memory_space<vmem>>, %arg5: memref<1x8x8xi8, #tpu.memory_space<vmem>>, %arg6: memref<1x8x10xi8, #tpu.memory_space<vmem>>, %arg7: memref<128x128xbf16, #tpu.memory_space<vmem>>, %arg8: memref<1x128xf32, #tpu.memory_space<vmem>>, %arg9: memref<128x256xbf16, #tpu.memory_space<vmem>>, %arg10: memref<1x256xf32, #tpu.memory_space<vmem>>, %arg11: memref<128x128xbf16, #tpu.memory_space<vmem>>, %arg12: memref<1x128xf32, #tpu.memory_space<vmem>>, %arg13: memref<128x128xbf16, #tpu.memory_space<vmem>>, %arg14: memref<1x128xf32, #tpu.memory_space<vmem>>, %arg15: memref<128x256xbf16, #tpu.memory_space<vmem>>, %arg16: memref<1x256xf32, #tpu.memory_space<vmem>>, %arg17: memref<128x128xbf16, #tpu.memory_space<vmem>>, %arg18: memref<1x128xf32, #tpu.memory_space<vmem>>, %arg19: memref<128x256xbf16, #tpu.memory_space<vmem>>, %arg20: memref<1x256xf32, #tpu.memory_space<vmem>>, %arg21: memref<256x128xbf16, #tpu.memory_space<vmem>>, %arg22: memref<1x128xf32, #tpu.memory_space<vmem>>, %arg23: memref<1x128xf32, #tpu.memory_space<vmem>>, %arg24: memref<1x128xf32, #tpu.memory_space<vmem>>, %arg25: memref<1x128xf32, #tpu.memory_space<vmem>>, %arg26: memref<1x128xf32, #tpu.memory_space<vmem>>, %arg27: memref<1x128xf32, #tpu.memory_space<vmem>>, %arg28: memref<1x128xf32, #tpu.memory_space<vmem>>, %arg29: memref<1x8x128xf32, #tpu.memory_space<vmem>>) attributes {dimension_semantics = [#tpu.dimension_semantics<parallel>, #tpu.dimension_semantics<parallel>], iteration_bounds = array<i64: 2, 1>, scalar_prefetch = 0 : i64, scratch_operands = 0 : i64, tpu.core_type = #tpu.core_type<tc>, window_params = [{transform_indices = @transform_0, window_bounds = array<i64: 1, 8, 128>}, {transform_indices = @transform_1, window_bounds = array<i64: 1, 8, 128>}, {transform_indices = @transform_2, window_bounds = array<i64: 1, 10, 128>}, {transform_indices = @transform_3, window_bounds = array<i64: 1, 8, 8>}, {transform_indices = @transform_4, window_bounds = array<i64: 1, 8, 10>}, {pipeline_mode = #tpu.pipeline_mode<synchronous>, transform_indices = @transform_5, window_bounds = array<i64: 128, 128>}, {pipeline_mode = #tpu.pipeline_mode<synchronous>, transform_indices = @transform_6, window_bounds = array<i64: 1, 128>}, {pipeline_mode = #tpu.pipeline_mode<synchronous>, transform_indices = @transform_7, window_bounds = array<i64: 128, 256>}, {pipeline_mode = #tpu.pipeline_mode<synchronous>, transform_indices = @transform_8, window_bounds = array<i64: 1, 256>}, {pipeline_mode = #tpu.pipeline_mode<synchronous>, transform_indices = @transform_9, window_bounds = array<i64: 128, 128>}, {pipeline_mode = #tpu.pipeline_mode<synchronous>, transform_indices = @transform_10, window_bounds = array<i64: 1, 128>}, {pipeline_mode = #tpu.pipeline_mode<synchronous>, transform_indices = @transform_11, window_bounds = array<i64: 128, 128>}, {pipeline_mode = #tpu.pipeline_mode<synchronous>, transform_indices = @transform_12, window_bounds = array<i64: 1, 128>}, {pipeline_mode = #tpu.pipeline_mode<synchronous>, transform_indices = @transform_13, window_bounds = array<i64: 128, 256>}, {pipeline_mode = #tpu.pipeline_mode<synchronous>, transform_indices = @transform_14, window_bounds = array<i64: 1, 256>}, {pipeline_mode = #tpu.pipeline_mode<synchronous>, transform_indices = @transform_15, window_bounds = array<i64: 128, 128>}, {pipeline_mode = #tpu.pipeline_mode<synchronous>, transform_indices = @transform_16, window_bounds = array<i64: 1, 128>}, {pipeline_mode = #tpu.pipeline_mode<synchronous>, transform_indices = @transform_17, window_bounds = array<i64: 128, 256>}, {pipeline_mode = #tpu.pipeline_mode<synchronous>, transform_indices = @transform_18, window_bounds = array<i64: 1, 256>}, {pipeline_mode = #tpu.pipeline_mode<synchronous>, transform_indices = @transform_19, window_bounds = array<i64: 256, 128>}, {pipeline_mode = #tpu.pipeline_mode<synchronous>, transform_indices = @transform_20, window_bounds = array<i64: 1, 128>}, {pipeline_mode = #tpu.pipeline_mode<synchronous>, transform_indices = @transform_21, window_bounds = array<i64: 1, 128>}, {pipeline_mode = #tpu.pipeline_mode<synchronous>, transform_indices = @transform_22, window_bounds = array<i64: 1, 128>}, {pipeline_mode = #tpu.pipeline_mode<synchronous>, transform_indices = @transform_23, window_bounds = array<i64: 1, 128>}, {pipeline_mode = #tpu.pipeline_mode<synchronous>, transform_indices = @transform_24, window_bounds = array<i64: 1, 128>}, {pipeline_mode = #tpu.pipeline_mode<synchronous>, transform_indices = @transform_25, window_bounds = array<i64: 1, 128>}, {pipeline_mode = #tpu.pipeline_mode<synchronous>, transform_indices = @transform_26, window_bounds = array<i64: 1, 128>}, {transform_indices = @transform_27, window_bounds = array<i64: 1, 8, 128>}]} {
    %c0 = arith.constant 0 : index
    %c0_0 = arith.constant 0 : index
    %c0_1 = arith.constant 0 : index
    %0 = vector.load %arg2[%c0, %c0_0, %c0_1] : memref<1x8x128xf32, #tpu.memory_space<vmem>>, vector<1x8x128xf32>
    %1 = vector.shape_cast %0 : vector<1x8x128xf32> to vector<8x128xf32>
    %c0_2 = arith.constant 0 : index
    %c0_3 = arith.constant 0 : index
    %c0_4 = arith.constant 0 : index
    %2 = vector.load %arg3[%c0_2, %c0_3, %c0_4] : memref<1x8x128xf32, #tpu.memory_space<vmem>>, vector<1x8x128xf32>
    %3 = vector.shape_cast %2 : vector<1x8x128xf32> to vector<8x128xf32>
    %c0_5 = arith.constant 0 : index
    %c0_6 = arith.constant 0 : index
    %c0_7 = arith.constant 0 : index
    %4 = vector.load %arg4[%c0_5, %c0_6, %c0_7] : memref<1x10x128xf32, #tpu.memory_space<vmem>>, vector<1x10x128xf32>
    %5 = vector.shape_cast %4 : vector<1x10x128xf32> to vector<10x128xf32>
    %c0_8 = arith.constant 0 : index
    %c0_9 = arith.constant 0 : index
    %c0_10 = arith.constant 0 : index
    %6 = vector.load %arg5[%c0_8, %c0_9, %c0_10] : memref<1x8x8xi8, #tpu.memory_space<vmem>>, vector<1x8x8xi8>
    %7 = vector.shape_cast %6 : vector<1x8x8xi8> to vector<8x8xi8>
    %c0_11 = arith.constant 0 : index
    %c0_12 = arith.constant 0 : index
    %c0_13 = arith.constant 0 : index
    %8 = vector.load %arg6[%c0_11, %c0_12, %c0_13] : memref<1x8x10xi8, #tpu.memory_space<vmem>>, vector<1x8x10xi8>
    %9 = vector.shape_cast %8 : vector<1x8x10xi8> to vector<8x10xi8>
    %10 = arith.truncf %1 : vector<8x128xf32> to vector<8x128xbf16>
    %c0_14 = arith.constant 0 : index
    %c0_15 = arith.constant 0 : index
    %11 = vector.load %arg7[%c0_14, %c0_15] : memref<128x128xbf16, #tpu.memory_space<vmem>>, vector<128x128xbf16>
    %cst = arith.constant dense<0.000000e+00> : vector<8x128xf32>
    %12 = tpu.matmul %10, %11, %cst {dimension_numbers = #tpu.dot_dimension_numbers<[1], [0], [0], [1], [0, 0, 1, 1], [], []>} : vector<8x128xbf16>, vector<128x128xbf16>, vector<8x128xf32> -> vector<8x128xf32>
    %c0_16 = arith.constant 0 : index
    %c0_17 = arith.constant 0 : index
    %13 = vector.load %arg8[%c0_16, %c0_17] : memref<1x128xf32, #tpu.memory_space<vmem>>, vector<1x128xf32>
    %14 = vector.broadcast %13 : vector<1x128xf32> to vector<8x128xf32>
    %15 = arith.addf %12, %14 : vector<8x128xf32>
    %16 = arith.truncf %3 : vector<8x128xf32> to vector<8x128xbf16>
    %c0_18 = arith.constant 0 : index
    %c0_19 = arith.constant 0 : index
    %17 = vector.load %arg9[%c0_18, %c0_19] : memref<128x256xbf16, #tpu.memory_space<vmem>>, vector<128x256xbf16>
    %cst_20 = arith.constant dense<0.000000e+00> : vector<8x256xf32>
    %18 = tpu.matmul %16, %17, %cst_20 {dimension_numbers = #tpu.dot_dimension_numbers<[1], [0], [0], [1], [0, 0, 1, 1], [], []>} : vector<8x128xbf16>, vector<128x256xbf16>, vector<8x256xf32> -> vector<8x256xf32>
    %c0_21 = arith.constant 0 : index
    %c0_22 = arith.constant 0 : index
    %19 = vector.load %arg10[%c0_21, %c0_22] : memref<1x256xf32, #tpu.memory_space<vmem>>, vector<1x256xf32>
    %20 = vector.broadcast %19 : vector<1x256xf32> to vector<8x256xf32>
    %21 = arith.addf %18, %20 : vector<8x256xf32>
    %22 = vector.extract_strided_slice %21 {offsets = [0, 0], sizes = [8, 128], strides = [1, 1]} : vector<8x256xf32> to vector<8x128xf32>
    %23 = vector.extract_strided_slice %21 {offsets = [0, 128], sizes = [8, 128], strides = [1, 1]} : vector<8x256xf32> to vector<8x128xf32>
    %24 = vector.extract_strided_slice %15 {offsets = [0, 0], sizes = [8, 32], strides = [1, 1]} : vector<8x128xf32> to vector<8x32xf32>
    %25 = vector.extract_strided_slice %15 {offsets = [0, 32], sizes = [8, 32], strides = [1, 1]} : vector<8x128xf32> to vector<8x32xf32>
    %26 = vector.extract_strided_slice %15 {offsets = [0, 64], sizes = [8, 32], strides = [1, 1]} : vector<8x128xf32> to vector<8x32xf32>
    %27 = vector.extract_strided_slice %15 {offsets = [0, 96], sizes = [8, 32], strides = [1, 1]} : vector<8x128xf32> to vector<8x32xf32>
    %28 = vector.shape_cast %24 : vector<8x32xf32> to vector<1x8x32xf32>
    %29 = vector.shape_cast %25 : vector<8x32xf32> to vector<1x8x32xf32>
    %30 = vector.shape_cast %26 : vector<8x32xf32> to vector<1x8x32xf32>
    %31 = vector.shape_cast %27 : vector<8x32xf32> to vector<1x8x32xf32>
    %32 = tpu.concatenate %28, %29, %30, %31 in 0 : vector<1x8x32xf32>, vector<1x8x32xf32>, vector<1x8x32xf32>, vector<1x8x32xf32> -> vector<4x8x32xf32>
    %33 = arith.truncf %32 : vector<4x8x32xf32> to vector<4x8x32xbf16>
    %34 = vector.extract_strided_slice %22 {offsets = [0, 0], sizes = [8, 32], strides = [1, 1]} : vector<8x128xf32> to vector<8x32xf32>
    %35 = vector.extract_strided_slice %22 {offsets = [0, 32], sizes = [8, 32], strides = [1, 1]} : vector<8x128xf32> to vector<8x32xf32>
    %36 = vector.extract_strided_slice %22 {offsets = [0, 64], sizes = [8, 32], strides = [1, 1]} : vector<8x128xf32> to vector<8x32xf32>
    %37 = vector.extract_strided_slice %22 {offsets = [0, 96], sizes = [8, 32], strides = [1, 1]} : vector<8x128xf32> to vector<8x32xf32>
    %38 = vector.shape_cast %34 : vector<8x32xf32> to vector<1x8x32xf32>
    %39 = vector.shape_cast %35 : vector<8x32xf32> to vector<1x8x32xf32>
    %40 = vector.shape_cast %36 : vector<8x32xf32> to vector<1x8x32xf32>
    %41 = vector.shape_cast %37 : vector<8x32xf32> to vector<1x8x32xf32>
    %42 = tpu.concatenate %38, %39, %40, %41 in 0 : vector<1x8x32xf32>, vector<1x8x32xf32>, vector<1x8x32xf32>, vector<1x8x32xf32> -> vector<4x8x32xf32>
    %43 = arith.truncf %42 : vector<4x8x32xf32> to vector<4x8x32xbf16>
    %44 = vector.extract_strided_slice %23 {offsets = [0, 0], sizes = [8, 32], strides = [1, 1]} : vector<8x128xf32> to vector<8x32xf32>
    %45 = vector.extract_strided_slice %23 {offsets = [0, 32], sizes = [8, 32], strides = [1, 1]} : vector<8x128xf32> to vector<8x32xf32>
    %46 = vector.extract_strided_slice %23 {offsets = [0, 64], sizes = [8, 32], strides = [1, 1]} : vector<8x128xf32> to vector<8x32xf32>
    %47 = vector.extract_strided_slice %23 {offsets = [0, 96], sizes = [8, 32], strides = [1, 1]} : vector<8x128xf32> to vector<8x32xf32>
    %48 = vector.shape_cast %44 : vector<8x32xf32> to vector<1x8x32xf32>
    %49 = vector.shape_cast %45 : vector<8x32xf32> to vector<1x8x32xf32>
    %50 = vector.shape_cast %46 : vector<8x32xf32> to vector<1x8x32xf32>
    %51 = vector.shape_cast %47 : vector<8x32xf32> to vector<1x8x32xf32>
    %52 = tpu.concatenate %48, %49, %50, %51 in 0 : vector<1x8x32xf32>, vector<1x8x32xf32>, vector<1x8x32xf32>, vector<1x8x32xf32> -> vector<4x8x32xf32>
    %53 = arith.truncf %52 : vector<4x8x32xf32> to vector<4x8x32xbf16>
    "tpu.trace_start"() <{level = 10 : i32, message = "hqd,hkd->hqk"}> : () -> ()
    %cst_23 = arith.constant dense<0.000000e+00> : vector<4x8x8xf32>
    %54 = tpu.matmul %33, %43, %cst_23 {dimension_numbers = #tpu.dot_dimension_numbers<[2], [2], [1], [1], [0, 0, 0, 1, 1, 1], [0], [0]>} : vector<4x8x32xbf16>, vector<4x8x32xbf16>, vector<4x8x8xf32> -> vector<4x8x8xf32>
    "tpu.trace_stop"() : () -> ()
    %cst_24 = arith.constant 0.176776692 : f32
    %55 = vector.broadcast %cst_24 : f32 to vector<4x8x8xf32>
    %56 = arith.mulf %54, %55 : vector<4x8x8xf32>
    %57 = vector.shape_cast %7 : vector<8x8xi8> to vector<1x8x8xi8>
    %c0_i8 = arith.constant 0 : i8
    %58 = vector.broadcast %c0_i8 : i8 to vector<1x8x8xi8>
    %59 = arith.cmpi ne, %57, %58 : vector<1x8x8xi8>
    %cst_25 = arith.constant -1.000000e+20 : f32
    %60 = vector.shape_cast %59 : vector<1x8x8xi1> to vector<1x8x8xi1>
    %61 = vector.broadcast %60 : vector<1x8x8xi1> to vector<4x8x8xi1>
    %62 = vector.broadcast %cst_25 : f32 to vector<4x8x8xf32>
    %63 = arith.select %61, %56, %62 : vector<4x8x8xi1>, vector<4x8x8xf32>
    %cst_26 = arith.constant dense<0xFF800000> : vector<4x8xf32>
    %64 = vector.multi_reduction <maximumf>, %63, %cst_26 [2] : vector<4x8x8xf32> to vector<4x8xf32>
    %65 = vector.shape_cast %64 : vector<4x8xf32> to vector<4x8x1xf32>
    %66 = vector.broadcast %65 : vector<4x8x1xf32> to vector<4x8x8xf32>
    %67 = arith.subf %63, %66 : vector<4x8x8xf32>
    %68 = math.exp %67 : vector<4x8x8xf32>
    %cst_27 = arith.constant dense<0.000000e+00> : vector<4x8xf32>
    %69 = vector.multi_reduction <add>, %68, %cst_27 [2] : vector<4x8x8xf32> to vector<4x8xf32>
    %70 = vector.shape_cast %69 : vector<4x8xf32> to vector<4x8x1xf32>
    %71 = tpu.reciprocal %70 {approx = true} : vector<4x8x1xf32> -> vector<4x8x1xf32>
    %72 = vector.broadcast %71 : vector<4x8x1xf32> to vector<4x8x8xf32>
    %73 = arith.mulf %68, %72 : vector<4x8x8xf32>
    %74 = arith.truncf %73 : vector<4x8x8xf32> to vector<4x8x8xbf16>
    "tpu.trace_start"() <{level = 10 : i32, message = "hqk,hkd->hqd"}> : () -> ()
    %cst_28 = arith.constant dense<0.000000e+00> : vector<4x8x32xf32>
    %75 = tpu.matmul %74, %53, %cst_28 {dimension_numbers = #tpu.dot_dimension_numbers<[2], [1], [1], [2], [0, 0, 0, 1, 1, 2], [0], [0]>} : vector<4x8x8xbf16>, vector<4x8x32xbf16>, vector<4x8x32xf32> -> vector<4x8x32xf32>
    "tpu.trace_stop"() : () -> ()
    %76 = vector.extract_strided_slice %75 {offsets = [0, 0, 0], sizes = [1, 8, 32], strides = [1, 1, 1]} : vector<4x8x32xf32> to vector<1x8x32xf32>
    %77 = vector.shape_cast %76 : vector<1x8x32xf32> to vector<8x32xf32>
    %78 = vector.extract_strided_slice %75 {offsets = [1, 0, 0], sizes = [1, 8, 32], strides = [1, 1, 1]} : vector<4x8x32xf32> to vector<1x8x32xf32>
    %79 = vector.shape_cast %78 : vector<1x8x32xf32> to vector<8x32xf32>
    %80 = vector.extract_strided_slice %75 {offsets = [2, 0, 0], sizes = [1, 8, 32], strides = [1, 1, 1]} : vector<4x8x32xf32> to vector<1x8x32xf32>
    %81 = vector.shape_cast %80 : vector<1x8x32xf32> to vector<8x32xf32>
    %82 = vector.extract_strided_slice %75 {offsets = [3, 0, 0], sizes = [1, 8, 32], strides = [1, 1, 1]} : vector<4x8x32xf32> to vector<1x8x32xf32>
    %83 = vector.shape_cast %82 : vector<1x8x32xf32> to vector<8x32xf32>
    %84 = tpu.concatenate %77, %79, %81, %83 in 1 : vector<8x32xf32>, vector<8x32xf32>, vector<8x32xf32>, vector<8x32xf32> -> vector<8x128xf32>
    %85 = arith.truncf %84 : vector<8x128xf32> to vector<8x128xbf16>
    %c0_29 = arith.constant 0 : index
    %c0_30 = arith.constant 0 : index
    %86 = vector.load %arg11[%c0_29, %c0_30] : memref<128x128xbf16, #tpu.memory_space<vmem>>, vector<128x128xbf16>
    %cst_31 = arith.constant dense<0.000000e+00> : vector<8x128xf32>
    %87 = tpu.matmul %85, %86, %cst_31 {dimension_numbers = #tpu.dot_dimension_numbers<[1], [0], [0], [1], [0, 0, 1, 1], [], []>} : vector<8x128xbf16>, vector<128x128xbf16>, vector<8x128xf32> -> vector<8x128xf32>
    %c0_32 = arith.constant 0 : index
    %c0_33 = arith.constant 0 : index
    %88 = vector.load %arg12[%c0_32, %c0_33] : memref<1x128xf32, #tpu.memory_space<vmem>>, vector<1x128xf32>
    %89 = vector.broadcast %88 : vector<1x128xf32> to vector<8x128xf32>
    %90 = arith.addf %87, %89 : vector<8x128xf32>
    %91 = arith.addf %1, %90 : vector<8x128xf32>
    %c0_34 = arith.constant 0 : index
    %c0_35 = arith.constant 0 : index
    %92 = vector.load %arg23[%c0_34, %c0_35] : memref<1x128xf32, #tpu.memory_space<vmem>>, vector<1x128xf32>
    %c0_36 = arith.constant 0 : index
    %c0_37 = arith.constant 0 : index
    %93 = vector.load %arg24[%c0_36, %c0_37] : memref<1x128xf32, #tpu.memory_space<vmem>>, vector<1x128xf32>
    %cst_38 = arith.constant dense<0.000000e+00> : vector<8xf32>
    %94 = vector.multi_reduction <add>, %91, %cst_38 [1] : vector<8x128xf32> to vector<8xf32>
    %95 = vector.shape_cast %94 : vector<8xf32> to vector<8x1xf32>
    %cst_39 = arith.constant 1.280000e+02 : f32
    %96 = vector.broadcast %cst_39 : f32 to vector<8x1xf32>
    %97 = arith.divf %95, %96 : vector<8x1xf32>
    %98 = vector.broadcast %97 : vector<8x1xf32> to vector<8x128xf32>
    %99 = arith.subf %91, %98 : vector<8x128xf32>
    %100 = arith.mulf %99, %99 : vector<8x128xf32>
    %cst_40 = arith.constant dense<0.000000e+00> : vector<8xf32>
    %101 = vector.multi_reduction <add>, %100, %cst_40 [1] : vector<8x128xf32> to vector<8xf32>
    %102 = vector.shape_cast %101 : vector<8xf32> to vector<8x1xf32>
    %cst_41 = arith.constant 1.280000e+02 : f32
    %103 = vector.broadcast %cst_41 : f32 to vector<8x1xf32>
    %104 = arith.divf %102, %103 : vector<8x1xf32>
    %105 = vector.broadcast %97 : vector<8x1xf32> to vector<8x128xf32>
    %106 = arith.subf %91, %105 : vector<8x128xf32>
    %cst_42 = arith.constant 9.99999974E-6 : f32
    %107 = vector.broadcast %cst_42 : f32 to vector<8x1xf32>
    %108 = arith.addf %104, %107 : vector<8x1xf32>
    %109 = math.rsqrt %108 : vector<8x1xf32>
    %110 = vector.broadcast %109 : vector<8x1xf32> to vector<8x128xf32>
    %111 = arith.mulf %106, %110 : vector<8x128xf32>
    %112 = vector.broadcast %92 : vector<1x128xf32> to vector<8x128xf32>
    %113 = arith.mulf %111, %112 : vector<8x128xf32>
    %114 = vector.broadcast %93 : vector<1x128xf32> to vector<8x128xf32>
    %115 = arith.addf %113, %114 : vector<8x128xf32>
    %116 = arith.truncf %115 : vector<8x128xf32> to vector<8x128xbf16>
    %c0_43 = arith.constant 0 : index
    %c0_44 = arith.constant 0 : index
    %117 = vector.load %arg13[%c0_43, %c0_44] : memref<128x128xbf16, #tpu.memory_space<vmem>>, vector<128x128xbf16>
    %cst_45 = arith.constant dense<0.000000e+00> : vector<8x128xf32>
    %118 = tpu.matmul %116, %117, %cst_45 {dimension_numbers = #tpu.dot_dimension_numbers<[1], [0], [0], [1], [0, 0, 1, 1], [], []>} : vector<8x128xbf16>, vector<128x128xbf16>, vector<8x128xf32> -> vector<8x128xf32>
    %c0_46 = arith.constant 0 : index
    %c0_47 = arith.constant 0 : index
    %119 = vector.load %arg14[%c0_46, %c0_47] : memref<1x128xf32, #tpu.memory_space<vmem>>, vector<1x128xf32>
    %120 = vector.broadcast %119 : vector<1x128xf32> to vector<8x128xf32>
    %121 = arith.addf %118, %120 : vector<8x128xf32>
    %122 = arith.truncf %5 : vector<10x128xf32> to vector<10x128xbf16>
    %c0_48 = arith.constant 0 : index
    %c0_49 = arith.constant 0 : index
    %123 = vector.load %arg15[%c0_48, %c0_49] : memref<128x256xbf16, #tpu.memory_space<vmem>>, vector<128x256xbf16>
    %cst_50 = arith.constant dense<0.000000e+00> : vector<10x256xf32>
    %124 = tpu.matmul %122, %123, %cst_50 {dimension_numbers = #tpu.dot_dimension_numbers<[1], [0], [0], [1], [0, 0, 1, 1], [], []>} : vector<10x128xbf16>, vector<128x256xbf16>, vector<10x256xf32> -> vector<10x256xf32>
    %c0_51 = arith.constant 0 : index
    %c0_52 = arith.constant 0 : index
    %125 = vector.load %arg16[%c0_51, %c0_52] : memref<1x256xf32, #tpu.memory_space<vmem>>, vector<1x256xf32>
    %126 = vector.broadcast %125 : vector<1x256xf32> to vector<10x256xf32>
    %127 = arith.addf %124, %126 : vector<10x256xf32>
    %128 = vector.extract_strided_slice %127 {offsets = [0, 0], sizes = [10, 128], strides = [1, 1]} : vector<10x256xf32> to vector<10x128xf32>
    %129 = vector.extract_strided_slice %127 {offsets = [0, 128], sizes = [10, 128], strides = [1, 1]} : vector<10x256xf32> to vector<10x128xf32>
    %130 = vector.extract_strided_slice %121 {offsets = [0, 0], sizes = [8, 32], strides = [1, 1]} : vector<8x128xf32> to vector<8x32xf32>
    %131 = vector.extract_strided_slice %121 {offsets = [0, 32], sizes = [8, 32], strides = [1, 1]} : vector<8x128xf32> to vector<8x32xf32>
    %132 = vector.extract_strided_slice %121 {offsets = [0, 64], sizes = [8, 32], strides = [1, 1]} : vector<8x128xf32> to vector<8x32xf32>
    %133 = vector.extract_strided_slice %121 {offsets = [0, 96], sizes = [8, 32], strides = [1, 1]} : vector<8x128xf32> to vector<8x32xf32>
    %134 = vector.shape_cast %130 : vector<8x32xf32> to vector<1x8x32xf32>
    %135 = vector.shape_cast %131 : vector<8x32xf32> to vector<1x8x32xf32>
    %136 = vector.shape_cast %132 : vector<8x32xf32> to vector<1x8x32xf32>
    %137 = vector.shape_cast %133 : vector<8x32xf32> to vector<1x8x32xf32>
    %138 = tpu.concatenate %134, %135, %136, %137 in 0 : vector<1x8x32xf32>, vector<1x8x32xf32>, vector<1x8x32xf32>, vector<1x8x32xf32> -> vector<4x8x32xf32>
    %139 = arith.truncf %138 : vector<4x8x32xf32> to vector<4x8x32xbf16>
    %140 = vector.extract_strided_slice %128 {offsets = [0, 0], sizes = [10, 32], strides = [1, 1]} : vector<10x128xf32> to vector<10x32xf32>
    %141 = vector.extract_strided_slice %128 {offsets = [0, 32], sizes = [10, 32], strides = [1, 1]} : vector<10x128xf32> to vector<10x32xf32>
    %142 = vector.extract_strided_slice %128 {offsets = [0, 64], sizes = [10, 32], strides = [1, 1]} : vector<10x128xf32> to vector<10x32xf32>
    %143 = vector.extract_strided_slice %128 {offsets = [0, 96], sizes = [10, 32], strides = [1, 1]} : vector<10x128xf32> to vector<10x32xf32>
    %144 = vector.shape_cast %140 : vector<10x32xf32> to vector<1x10x32xf32>
    %145 = vector.shape_cast %141 : vector<10x32xf32> to vector<1x10x32xf32>
    %146 = vector.shape_cast %142 : vector<10x32xf32> to vector<1x10x32xf32>
    %147 = vector.shape_cast %143 : vector<10x32xf32> to vector<1x10x32xf32>
    %148 = tpu.concatenate %144, %145, %146, %147 in 0 : vector<1x10x32xf32>, vector<1x10x32xf32>, vector<1x10x32xf32>, vector<1x10x32xf32> -> vector<4x10x32xf32>
    %149 = arith.truncf %148 : vector<4x10x32xf32> to vector<4x10x32xbf16>
    %150 = vector.extract_strided_slice %129 {offsets = [0, 0], sizes = [10, 32], strides = [1, 1]} : vector<10x128xf32> to vector<10x32xf32>
    %151 = vector.extract_strided_slice %129 {offsets = [0, 32], sizes = [10, 32], strides = [1, 1]} : vector<10x128xf32> to vector<10x32xf32>
    %152 = vector.extract_strided_slice %129 {offsets = [0, 64], sizes = [10, 32], strides = [1, 1]} : vector<10x128xf32> to vector<10x32xf32>
    %153 = vector.extract_strided_slice %129 {offsets = [0, 96], sizes = [10, 32], strides = [1, 1]} : vector<10x128xf32> to vector<10x32xf32>
    %154 = vector.shape_cast %150 : vector<10x32xf32> to vector<1x10x32xf32>
    %155 = vector.shape_cast %151 : vector<10x32xf32> to vector<1x10x32xf32>
    %156 = vector.shape_cast %152 : vector<10x32xf32> to vector<1x10x32xf32>
    %157 = vector.shape_cast %153 : vector<10x32xf32> to vector<1x10x32xf32>
    %158 = tpu.concatenate %154, %155, %156, %157 in 0 : vector<1x10x32xf32>, vector<1x10x32xf32>, vector<1x10x32xf32>, vector<1x10x32xf32> -> vector<4x10x32xf32>
    %159 = arith.truncf %158 : vector<4x10x32xf32> to vector<4x10x32xbf16>
    "tpu.trace_start"() <{level = 10 : i32, message = "hqd,hkd->hqk"}> : () -> ()
    %cst_53 = arith.constant dense<0.000000e+00> : vector<4x8x10xf32>
    %160 = tpu.matmul %139, %149, %cst_53 {dimension_numbers = #tpu.dot_dimension_numbers<[2], [2], [1], [1], [0, 0, 0, 1, 1, 1], [0], [0]>} : vector<4x8x32xbf16>, vector<4x10x32xbf16>, vector<4x8x10xf32> -> vector<4x8x10xf32>
    "tpu.trace_stop"() : () -> ()
    %cst_54 = arith.constant 0.176776692 : f32
    %161 = vector.broadcast %cst_54 : f32 to vector<4x8x10xf32>
    %162 = arith.mulf %160, %161 : vector<4x8x10xf32>
    %163 = vector.shape_cast %9 : vector<8x10xi8> to vector<1x8x10xi8>
    %c0_i8_55 = arith.constant 0 : i8
    %164 = vector.broadcast %c0_i8_55 : i8 to vector<1x8x10xi8>
    %165 = arith.cmpi ne, %163, %164 : vector<1x8x10xi8>
    %cst_56 = arith.constant -1.000000e+20 : f32
    %166 = vector.shape_cast %165 : vector<1x8x10xi1> to vector<1x8x10xi1>
    %167 = vector.broadcast %166 : vector<1x8x10xi1> to vector<4x8x10xi1>
    %168 = vector.broadcast %cst_56 : f32 to vector<4x8x10xf32>
    %169 = arith.select %167, %162, %168 : vector<4x8x10xi1>, vector<4x8x10xf32>
    %cst_57 = arith.constant dense<0xFF800000> : vector<4x8xf32>
    %170 = vector.multi_reduction <maximumf>, %169, %cst_57 [2] : vector<4x8x10xf32> to vector<4x8xf32>
    %171 = vector.shape_cast %170 : vector<4x8xf32> to vector<4x8x1xf32>
    %172 = vector.broadcast %171 : vector<4x8x1xf32> to vector<4x8x10xf32>
    %173 = arith.subf %169, %172 : vector<4x8x10xf32>
    %174 = math.exp %173 : vector<4x8x10xf32>
    %cst_58 = arith.constant dense<0.000000e+00> : vector<4x8xf32>
    %175 = vector.multi_reduction <add>, %174, %cst_58 [2] : vector<4x8x10xf32> to vector<4x8xf32>
    %176 = vector.shape_cast %175 : vector<4x8xf32> to vector<4x8x1xf32>
    %177 = tpu.reciprocal %176 {approx = true} : vector<4x8x1xf32> -> vector<4x8x1xf32>
    %178 = vector.broadcast %177 : vector<4x8x1xf32> to vector<4x8x10xf32>
    %179 = arith.mulf %174, %178 : vector<4x8x10xf32>
    %180 = arith.truncf %179 : vector<4x8x10xf32> to vector<4x8x10xbf16>
    "tpu.trace_start"() <{level = 10 : i32, message = "hqk,hkd->hqd"}> : () -> ()
    %cst_59 = arith.constant dense<0.000000e+00> : vector<4x8x32xf32>
    %181 = tpu.matmul %180, %159, %cst_59 {dimension_numbers = #tpu.dot_dimension_numbers<[2], [1], [1], [2], [0, 0, 0, 1, 1, 2], [0], [0]>} : vector<4x8x10xbf16>, vector<4x10x32xbf16>, vector<4x8x32xf32> -> vector<4x8x32xf32>
    "tpu.trace_stop"() : () -> ()
    %182 = vector.extract_strided_slice %181 {offsets = [0, 0, 0], sizes = [1, 8, 32], strides = [1, 1, 1]} : vector<4x8x32xf32> to vector<1x8x32xf32>
    %183 = vector.shape_cast %182 : vector<1x8x32xf32> to vector<8x32xf32>
    %184 = vector.extract_strided_slice %181 {offsets = [1, 0, 0], sizes = [1, 8, 32], strides = [1, 1, 1]} : vector<4x8x32xf32> to vector<1x8x32xf32>
    %185 = vector.shape_cast %184 : vector<1x8x32xf32> to vector<8x32xf32>
    %186 = vector.extract_strided_slice %181 {offsets = [2, 0, 0], sizes = [1, 8, 32], strides = [1, 1, 1]} : vector<4x8x32xf32> to vector<1x8x32xf32>
    %187 = vector.shape_cast %186 : vector<1x8x32xf32> to vector<8x32xf32>
    %188 = vector.extract_strided_slice %181 {offsets = [3, 0, 0], sizes = [1, 8, 32], strides = [1, 1, 1]} : vector<4x8x32xf32> to vector<1x8x32xf32>
    %189 = vector.shape_cast %188 : vector<1x8x32xf32> to vector<8x32xf32>
    %190 = tpu.concatenate %183, %185, %187, %189 in 1 : vector<8x32xf32>, vector<8x32xf32>, vector<8x32xf32>, vector<8x32xf32> -> vector<8x128xf32>
    %191 = arith.truncf %190 : vector<8x128xf32> to vector<8x128xbf16>
    %c0_60 = arith.constant 0 : index
    %c0_61 = arith.constant 0 : index
    %192 = vector.load %arg17[%c0_60, %c0_61] : memref<128x128xbf16, #tpu.memory_space<vmem>>, vector<128x128xbf16>
    %cst_62 = arith.constant dense<0.000000e+00> : vector<8x128xf32>
    %193 = tpu.matmul %191, %192, %cst_62 {dimension_numbers = #tpu.dot_dimension_numbers<[1], [0], [0], [1], [0, 0, 1, 1], [], []>} : vector<8x128xbf16>, vector<128x128xbf16>, vector<8x128xf32> -> vector<8x128xf32>
    %c0_63 = arith.constant 0 : index
    %c0_64 = arith.constant 0 : index
    %194 = vector.load %arg18[%c0_63, %c0_64] : memref<1x128xf32, #tpu.memory_space<vmem>>, vector<1x128xf32>
    %195 = vector.broadcast %194 : vector<1x128xf32> to vector<8x128xf32>
    %196 = arith.addf %193, %195 : vector<8x128xf32>
    %197 = arith.addf %196, %115 : vector<8x128xf32>
    %c0_65 = arith.constant 0 : index
    %c0_66 = arith.constant 0 : index
    %198 = vector.load %arg25[%c0_65, %c0_66] : memref<1x128xf32, #tpu.memory_space<vmem>>, vector<1x128xf32>
    %c0_67 = arith.constant 0 : index
    %c0_68 = arith.constant 0 : index
    %199 = vector.load %arg26[%c0_67, %c0_68] : memref<1x128xf32, #tpu.memory_space<vmem>>, vector<1x128xf32>
    %cst_69 = arith.constant dense<0.000000e+00> : vector<8xf32>
    %200 = vector.multi_reduction <add>, %197, %cst_69 [1] : vector<8x128xf32> to vector<8xf32>
    %201 = vector.shape_cast %200 : vector<8xf32> to vector<8x1xf32>
    %cst_70 = arith.constant 1.280000e+02 : f32
    %202 = vector.broadcast %cst_70 : f32 to vector<8x1xf32>
    %203 = arith.divf %201, %202 : vector<8x1xf32>
    %204 = vector.broadcast %203 : vector<8x1xf32> to vector<8x128xf32>
    %205 = arith.subf %197, %204 : vector<8x128xf32>
    %206 = arith.mulf %205, %205 : vector<8x128xf32>
    %cst_71 = arith.constant dense<0.000000e+00> : vector<8xf32>
    %207 = vector.multi_reduction <add>, %206, %cst_71 [1] : vector<8x128xf32> to vector<8xf32>
    %208 = vector.shape_cast %207 : vector<8xf32> to vector<8x1xf32>
    %cst_72 = arith.constant 1.280000e+02 : f32
    %209 = vector.broadcast %cst_72 : f32 to vector<8x1xf32>
    %210 = arith.divf %208, %209 : vector<8x1xf32>
    %211 = vector.broadcast %203 : vector<8x1xf32> to vector<8x128xf32>
    %212 = arith.subf %197, %211 : vector<8x128xf32>
    %cst_73 = arith.constant 9.99999974E-6 : f32
    %213 = vector.broadcast %cst_73 : f32 to vector<8x1xf32>
    %214 = arith.addf %210, %213 : vector<8x1xf32>
    %215 = math.rsqrt %214 : vector<8x1xf32>
    %216 = vector.broadcast %215 : vector<8x1xf32> to vector<8x128xf32>
    %217 = arith.mulf %212, %216 : vector<8x128xf32>
    %218 = vector.broadcast %198 : vector<1x128xf32> to vector<8x128xf32>
    %219 = arith.mulf %217, %218 : vector<8x128xf32>
    %220 = vector.broadcast %199 : vector<1x128xf32> to vector<8x128xf32>
    %221 = arith.addf %219, %220 : vector<8x128xf32>
    %222 = arith.truncf %221 : vector<8x128xf32> to vector<8x128xbf16>
    %c0_74 = arith.constant 0 : index
    %c0_75 = arith.constant 0 : index
    %223 = vector.load %arg19[%c0_74, %c0_75] : memref<128x256xbf16, #tpu.memory_space<vmem>>, vector<128x256xbf16>
    %cst_76 = arith.constant dense<0.000000e+00> : vector<8x256xf32>
    %224 = tpu.matmul %222, %223, %cst_76 {dimension_numbers = #tpu.dot_dimension_numbers<[1], [0], [0], [1], [0, 0, 1, 1], [], []>} : vector<8x128xbf16>, vector<128x256xbf16>, vector<8x256xf32> -> vector<8x256xf32>
    %c0_77 = arith.constant 0 : index
    %c0_78 = arith.constant 0 : index
    %225 = vector.load %arg20[%c0_77, %c0_78] : memref<1x256xf32, #tpu.memory_space<vmem>>, vector<1x256xf32>
    %226 = vector.broadcast %225 : vector<1x256xf32> to vector<8x256xf32>
    %227 = arith.addf %224, %226 : vector<8x256xf32>
    %cst_79 = arith.constant 0.000000e+00 : f32
    %228 = vector.broadcast %cst_79 : f32 to vector<8x256xf32>
    %229 = arith.maximumf %227, %228 : vector<8x256xf32>
    %230 = arith.truncf %229 : vector<8x256xf32> to vector<8x256xbf16>
    %c0_80 = arith.constant 0 : index
    %c0_81 = arith.constant 0 : index
    %231 = vector.load %arg21[%c0_80, %c0_81] : memref<256x128xbf16, #tpu.memory_space<vmem>>, vector<256x128xbf16>
    %cst_82 = arith.constant dense<0.000000e+00> : vector<8x128xf32>
    %232 = tpu.matmul %230, %231, %cst_82 {dimension_numbers = #tpu.dot_dimension_numbers<[1], [0], [0], [1], [0, 0, 1, 1], [], []>} : vector<8x256xbf16>, vector<256x128xbf16>, vector<8x128xf32> -> vector<8x128xf32>
    %c0_83 = arith.constant 0 : index
    %c0_84 = arith.constant 0 : index
    %233 = vector.load %arg22[%c0_83, %c0_84] : memref<1x128xf32, #tpu.memory_space<vmem>>, vector<1x128xf32>
    %234 = vector.broadcast %233 : vector<1x128xf32> to vector<8x128xf32>
    %235 = arith.addf %232, %234 : vector<8x128xf32>
    %236 = arith.addf %235, %221 : vector<8x128xf32>
    %c0_85 = arith.constant 0 : index
    %c0_86 = arith.constant 0 : index
    %237 = vector.load %arg27[%c0_85, %c0_86] : memref<1x128xf32, #tpu.memory_space<vmem>>, vector<1x128xf32>
    %c0_87 = arith.constant 0 : index
    %c0_88 = arith.constant 0 : index
    %238 = vector.load %arg28[%c0_87, %c0_88] : memref<1x128xf32, #tpu.memory_space<vmem>>, vector<1x128xf32>
    %cst_89 = arith.constant dense<0.000000e+00> : vector<8xf32>
    %239 = vector.multi_reduction <add>, %236, %cst_89 [1] : vector<8x128xf32> to vector<8xf32>
    %240 = vector.shape_cast %239 : vector<8xf32> to vector<8x1xf32>
    %cst_90 = arith.constant 1.280000e+02 : f32
    %241 = vector.broadcast %cst_90 : f32 to vector<8x1xf32>
    %242 = arith.divf %240, %241 : vector<8x1xf32>
    %243 = vector.broadcast %242 : vector<8x1xf32> to vector<8x128xf32>
    %244 = arith.subf %236, %243 : vector<8x128xf32>
    %245 = arith.mulf %244, %244 : vector<8x128xf32>
    %cst_91 = arith.constant dense<0.000000e+00> : vector<8xf32>
    %246 = vector.multi_reduction <add>, %245, %cst_91 [1] : vector<8x128xf32> to vector<8xf32>
    %247 = vector.shape_cast %246 : vector<8xf32> to vector<8x1xf32>
    %cst_92 = arith.constant 1.280000e+02 : f32
    %248 = vector.broadcast %cst_92 : f32 to vector<8x1xf32>
    %249 = arith.divf %247, %248 : vector<8x1xf32>
    %250 = vector.broadcast %242 : vector<8x1xf32> to vector<8x128xf32>
    %251 = arith.subf %236, %250 : vector<8x128xf32>
    %cst_93 = arith.constant 9.99999974E-6 : f32
    %252 = vector.broadcast %cst_93 : f32 to vector<8x1xf32>
    %253 = arith.addf %249, %252 : vector<8x1xf32>
    %254 = math.rsqrt %253 : vector<8x1xf32>
    %255 = vector.broadcast %254 : vector<8x1xf32> to vector<8x128xf32>
    %256 = arith.mulf %251, %255 : vector<8x128xf32>
    %257 = vector.broadcast %237 : vector<1x128xf32> to vector<8x128xf32>
    %258 = arith.mulf %256, %257 : vector<8x128xf32>
    %259 = vector.broadcast %238 : vector<1x128xf32> to vector<8x128xf32>
    %260 = arith.addf %258, %259 : vector<8x128xf32>
    %c0_94 = arith.constant 0 : index
    %c0_95 = arith.constant 0 : index
    %c0_96 = arith.constant 0 : index
    %261 = vector.load %arg29[%c0_94, %c0_95, %c0_96] : memref<1x8x128xf32, #tpu.memory_space<vmem>>, vector<1x8x128xf32>
    %262 = vector.shape_cast %261 : vector<1x8x128xf32> to vector<8x128xf32>
    %263 = vector.shape_cast %260 : vector<8x128xf32> to vector<1x8x128xf32>
    tpu.vector_store %arg29[%c0_94, %c0_95, %c0_96], %263 {strides = array<i32>} : memref<1x8x128xf32, #tpu.memory_space<vmem>>, vector<1x8x128xf32>,
    return
  }
  func.func @transform_0(%arg0: i32, %arg1: i32) -> (i32, i32, i32) {
    %c0_i32 = arith.constant 0 : i32
    %c0_i32_0 = arith.constant 0 : i32
    return %arg0, %arg1, %c0_i32 : i32, i32, i32
  }
  func.func @transform_1(%arg0: i32, %arg1: i32) -> (i32, i32, i32) {
    %c0_i32 = arith.constant 0 : i32
    %c0_i32_0 = arith.constant 0 : i32
    %c0_i32_1 = arith.constant 0 : i32
    return %arg0, %c0_i32, %c0_i32_0 : i32, i32, i32
  }
  func.func @transform_2(%arg0: i32, %arg1: i32) -> (i32, i32, i32) {
    %c0_i32 = arith.constant 0 : i32
    %c0_i32_0 = arith.constant 0 : i32
    %c0_i32_1 = arith.constant 0 : i32
    return %arg0, %c0_i32, %c0_i32_0 : i32, i32, i32
  }
  func.func @transform_3(%arg0: i32, %arg1: i32) -> (i32, i32, i32) {
    %c0_i32 = arith.constant 0 : i32
    %c0_i32_0 = arith.constant 0 : i32
    return %arg0, %arg1, %c0_i32 : i32, i32, i32
  }
  func.func @transform_4(%arg0: i32, %arg1: i32) -> (i32, i32, i32) {
    %c0_i32 = arith.constant 0 : i32
    %c0_i32_0 = arith.constant 0 : i32
    return %arg0, %arg1, %c0_i32 : i32, i32, i32
  }
  func.func @transform_5(%arg0: i32, %arg1: i32) -> (i32, i32) {
    %c0_i32 = arith.constant 0 : i32
    %c0_i32_0 = arith.constant 0 : i32
    %c0_i32_1 = arith.constant 0 : i32
    return %c0_i32, %c0_i32_0 : i32, i32
  }
  func.func @transform_6(%arg0: i32, %arg1: i32) -> (i32, i32) {
    %c0_i32 = arith.constant 0 : i32
    %c0_i32_0 = arith.constant 0 : i32
    %c0_i32_1 = arith.constant 0 : i32
    return %c0_i32, %c0_i32_0 : i32, i32
  }
  func.func @transform_7(%arg0: i32, %arg1: i32) -> (i32, i32) {
    %c0_i32 = arith.constant 0 : i32
    %c0_i32_0 = arith.constant 0 : i32
    %c0_i32_1 = arith.constant 0 : i32
    return %c0_i32, %c0_i32_0 : i32, i32
  }
  func.func @transform_8(%arg0: i32, %arg1: i32) -> (i32, i32) {
    %c0_i32 = arith.constant 0 : i32
    %c0_i32_0 = arith.constant 0 : i32
    %c0_i32_1 = arith.constant 0 : i32
    return %c0_i32, %c0_i32_0 : i32, i32
  }
  func.func @transform_9(%arg0: i32, %arg1: i32) -> (i32, i32) {
    %c0_i32 = arith.constant 0 : i32
    %c0_i32_0 = arith.constant 0 : i32
    %c0_i32_1 = arith.constant 0 : i32
    return %c0_i32, %c0_i32_0 : i32, i32
  }
  func.func @transform_10(%arg0: i32, %arg1: i32) -> (i32, i32) {
    %c0_i32 = arith.constant 0 : i32
    %c0_i32_0 = arith.constant 0 : i32
    %c0_i32_1 = arith.constant 0 : i32
    return %c0_i32, %c0_i32_0 : i32, i32
  }
  func.func @transform_11(%arg0: i32, %arg1: i32) -> (i32, i32) {
    %c0_i32 = arith.constant 0 : i32
    %c0_i32_0 = arith.constant 0 : i32
    %c0_i32_1 = arith.constant 0 : i32
    return %c0_i32, %c0_i32_0 : i32, i32
  }
  func.func @transform_12(%arg0: i32, %arg1: i32) -> (i32, i32) {
    %c0_i32 = arith.constant 0 : i32
    %c0_i32_0 = arith.constant 0 : i32
    %c0_i32_1 = arith.constant 0 : i32
    return %c0_i32, %c0_i32_0 : i32, i32
  }
  func.func @transform_13(%arg0: i32, %arg1: i32) -> (i32, i32) {
    %c0_i32 = arith.constant 0 : i32
    %c0_i32_0 = arith.constant 0 : i32
    %c0_i32_1 = arith.constant 0 : i32
    return %c0_i32, %c0_i32_0 : i32, i32
  }
  func.func @transform_14(%arg0: i32, %arg1: i32) -> (i32, i32) {
    %c0_i32 = arith.constant 0 : i32
    %c0_i32_0 = arith.constant 0 : i32
    %c0_i32_1 = arith.constant 0 : i32
    return %c0_i32, %c0_i32_0 : i32, i32
  }
  func.func @transform_15(%arg0: i32, %arg1: i32) -> (i32, i32) {
    %c0_i32 = arith.constant 0 : i32
    %c0_i32_0 = arith.constant 0 : i32
    %c0_i32_1 = arith.constant 0 : i32
    return %c0_i32, %c0_i32_0 : i32, i32
  }
  func.func @transform_16(%arg0: i32, %arg1: i32) -> (i32, i32) {
    %c0_i32 = arith.constant 0 : i32
    %c0_i32_0 = arith.constant 0 : i32
    %c0_i32_1 = arith.constant 0 : i32
    return %c0_i32, %c0_i32_0 : i32, i32
  }
  func.func @transform_17(%arg0: i32, %arg1: i32) -> (i32, i32) {
    %c0_i32 = arith.constant 0 : i32
    %c0_i32_0 = arith.constant 0 : i32
    %c0_i32_1 = arith.constant 0 : i32
    return %c0_i32, %c0_i32_0 : i32, i32
  }
  func.func @transform_18(%arg0: i32, %arg1: i32) -> (i32, i32) {
    %c0_i32 = arith.constant 0 : i32
    %c0_i32_0 = arith.constant 0 : i32
    %c0_i32_1 = arith.constant 0 : i32
    return %c0_i32, %c0_i32_0 : i32, i32
  }
  func.func @transform_19(%arg0: i32, %arg1: i32) -> (i32, i32) {
    %c0_i32 = arith.constant 0 : i32
    %c0_i32_0 = arith.constant 0 : i32
    %c0_i32_1 = arith.constant 0 : i32
    return %c0_i32, %c0_i32_0 : i32, i32
  }
  func.func @transform_20(%arg0: i32, %arg1: i32) -> (i32, i32) {
    %c0_i32 = arith.constant 0 : i32
    %c0_i32_0 = arith.constant 0 : i32
    %c0_i32_1 = arith.constant 0 : i32
    return %c0_i32, %c0_i32_0 : i32, i32
  }
  func.func @transform_21(%arg0: i32, %arg1: i32) -> (i32, i32) {
    %c0_i32 = arith.constant 0 : i32
    %c0_i32_0 = arith.constant 0 : i32
    %c0_i32_1 = arith.constant 0 : i32
    return %c0_i32, %c0_i32_0 : i32, i32
  }
  func.func @transform_22(%arg0: i32, %arg1: i32) -> (i32, i32) {
    %c0_i32 = arith.constant 0 : i32
    %c0_i32_0 = arith.constant 0 : i32
    %c0_i32_1 = arith.constant 0 : i32
    return %c0_i32, %c0_i32_0 : i32, i32
  }
  func.func @transform_23(%arg0: i32, %arg1: i32) -> (i32, i32) {
    %c0_i32 = arith.constant 0 : i32
    %c0_i32_0 = arith.constant 0 : i32
    %c0_i32_1 = arith.constant 0 : i32
    return %c0_i32, %c0_i32_0 : i32, i32
  }
  func.func @transform_24(%arg0: i32, %arg1: i32) -> (i32, i32) {
    %c0_i32 = arith.constant 0 : i32
    %c0_i32_0 = arith.constant 0 : i32
    %c0_i32_1 = arith.constant 0 : i32
    return %c0_i32, %c0_i32_0 : i32, i32
  }
  func.func @transform_25(%arg0: i32, %arg1: i32) -> (i32, i32) {
    %c0_i32 = arith.constant 0 : i32
    %c0_i32_0 = arith.constant 0 : i32
    %c0_i32_1 = arith.constant 0 : i32
    return %c0_i32, %c0_i32_0 : i32, i32
  }
  func.func @transform_26(%arg0: i32, %arg1: i32) -> (i32, i32) {
    %c0_i32 = arith.constant 0 : i32
    %c0_i32_0 = arith.constant 0 : i32
    %c0_i32_1 = arith.constant 0 : i32
    return %c0_i32, %c0_i32_0 : i32, i32
  }
  func.func @transform_27(%arg0: i32, %arg1: i32) -> (i32, i32, i32) {
    %c0_i32 = arith.constant 0 : i32
    %c0_i32_0 = arith.constant 0 : i32
    return %arg0, %arg1, %c0_i32 : i32, i32, i32
  }
}

</mosaic_0001>

<llo_original>
// kernel: tpu_custom_call.1
$region0: #{tpu_custom_call.1}
  #allocation0 [shape = 'u32[]', space=smem, size = 0x4, offset = 0x4, fixed_abs, tag = 'smem constant byte address 0x4 - core index']
  #allocation1 [shape = 'u32[144,128]{1,0:T(1,128)}', space=vmem, size = 0x12000, scoped, tag = 'internal scratch']
  %s0 = inlined_call_operand.hbm [shape: f32[2,8,128], index: 0, kind: input, shape index: {}]
  %s1 = inlined_call_operand.hbm [shape: f32[2,8,128], index: 1, kind: input, shape index: {}]
  %s2 = inlined_call_operand.vmem [shape: f32[2,10,128], index: 2, kind: input, shape index: {}]
  %s3 = inlined_call_operand.vmem [shape: s8[2,8,8], index: 3, kind: input, shape index: {}]
  %s4 = inlined_call_operand.hbm [shape: s8[2,8,10], index: 4, kind: input, shape index: {}]
  %s5 = inlined_call_operand.vmem [shape: bf16[128,128], index: 5, kind: input, shape index: {}]
  %s6 = inlined_call_operand.hbm [shape: f32[1,128], index: 6, kind: input, shape index: {}]
  %s7 = inlined_call_operand.hbm [shape: bf16[128,256], index: 7, kind: input, shape index: {}]
  %s8 = inlined_call_operand.vmem [shape: f32[1,256], index: 8, kind: input, shape index: {}]
  %s9 = inlined_call_operand.hbm [shape: bf16[128,128], index: 9, kind: input, shape index: {}]
  %s10 = inlined_call_operand.vmem [shape: f32[1,128], index: 10, kind: input, shape index: {}]
  %s11 = inlined_call_operand.hbm [shape: bf16[128,128], index: 11, kind: input, shape index: {}]
  %s12 = inlined_call_operand.vmem [shape: f32[1,128], index: 12, kind: input, shape index: {}]
  %s13 = inlined_call_operand.hbm [shape: bf16[128,256], index: 13, kind: input, shape index: {}]
  %s14 = inlined_call_operand.vmem [shape: f32[1,256], index: 14, kind: input, shape index: {}]
  %s15 = inlined_call_operand.hbm [shape: bf16[128,128], index: 15, kind: input, shape index: {}]
  %s16 = inlined_call_operand.vmem [shape: f32[1,128], index: 16, kind: input, shape index: {}]
  %s17 = inlined_call_operand.hbm [shape: bf16[128,256], index: 17, kind: input, shape index: {}]
  %s18 = inlined_call_operand.vmem [shape: f32[1,256], index: 18, kind: input, shape index: {}]
  %s19 = inlined_call_operand.hbm [shape: bf16[256,128], index: 19, kind: input, shape index: {}]
  %s20 = inlined_call_operand.vmem [shape: f32[1,128], index: 20, kind: input, shape index: {}]
  %s21 = inlined_call_operand.vmem [shape: f32[1,128], index: 21, kind: input, shape index: {}]
  %s22 = inlined_call_operand.vmem [shape: f32[1,128], index: 22, kind: input, shape index: {}]
  %s23 = inlined_call_operand.vmem [shape: f32[1,128], index: 23, kind: input, shape index: {}]
  %s24 = inlined_call_operand.vmem [shape: f32[1,128], index: 24, kind: input, shape index: {}]
  %s25 = inlined_call_operand.vmem [shape: f32[1,128], index: 25, kind: input, shape index: {}]
  %s26 = inlined_call_operand.vmem [shape: f32[1,128], index: 26, kind: input, shape index: {}]
  %s27 = inlined_call_operand.hbm [shape: f32[2,8,128], index: 27, kind: output, shape index: {}]
  %s28 = sld [smem:[#allocation0]]
  $region185: #{tpu_custom_call.1} parent=0
    _
  %s30 = ssub.s32 1, %s28
  %s31 = scalar_select 0, %s30, %s28
  $region1: #{tpu_custom_call.1} parent=0
    #allocation2 [shape = 'u8[8192]{0}', space=vmem, size = 0x2000, scoped, tag = 'input window, operand 0']
    #allocation3 [shape = 's32[2]{0}', space=sflag, size = 0x8, scoped, tag = 'scoped memory for tpu_custom_call.1']
    #allocation4 [shape = 's32[2]{0}', space=sflag, size = 0x8, scoped, tag = 'scoped memory for tpu_custom_call.1']
    #allocation5 [shape = 'u8[8192]{0}', space=vmem, size = 0x2000, scoped, tag = 'input window, operand 1']
    #allocation6 [shape = 's32[2]{0}', space=sflag, size = 0x8, scoped, tag = 'scoped memory for tpu_custom_call.1']
    #allocation7 [shape = 'u8[2048]{0}', space=vmem, size = 0x800, scoped, tag = 'input window, operand 4']
    #allocation8 [shape = 'u8[512]{0}', space=vmem, size = 0x400, scoped, tag = 'input window, operand 6, single buffered']
    #allocation9 [shape = 's32[1]{0}', space=sflag, size = 0x4, scoped, tag = 'scoped memory for tpu_custom_call.1']
    #allocation10 [shape = 'u8[65536]{0}', space=vmem, size = 0x10000, scoped, tag = 'input window, operand 7, single buffered']
    #allocation11 [shape = 'u8[32768]{0}', space=vmem, size = 0x8000, scoped, tag = 'input window, operand 9, single buffered']
    #allocation12 [shape = 's32[1]{0}', space=sflag, size = 0x4, scoped, tag = 'scoped memory for tpu_custom_call.1']
    #allocation13 [shape = 'u8[32768]{0}', space=vmem, size = 0x8000, scoped, tag = 'input window, operand 11, single buffered']
    #allocation14 [shape = 'u8[65536]{0}', space=vmem, size = 0x10000, scoped, tag = 'input window, operand 13, single buffered']
    #allocation15 [shape = 's32[1]{0}', space=sflag, size = 0x4, scoped, tag = 'scoped memory for tpu_custom_call.1']
    #allocation16 [shape = 'u8[32768]{0}', space=vmem, size = 0x8000, scoped, tag = 'input window, operand 15, single buffered']
    #allocation17 [shape = 'u8[65536]{0}', space=vmem, size = 0x10000, scoped, tag = 'input window, operand 17, single buffered']
    #allocation18 [shape = 's32[1]{0}', space=sflag, size = 0x4, scoped, tag = 'scoped memory for tpu_custom_call.1']
    #allocation19 [shape = 'u8[65536]{0}', space=vmem, size = 0x10000, scoped, tag = 'input window, operand 19, single buffered']
    #allocation20 [shape = 'u8[8192]{0}', space=vmem, size = 0x2000, scoped, tag = 'output window, operand 0']
    %32 = vsyncpa [#allocation3], 0
    %s33 = scalar_lea.sflag [#allocation3], 1
    %34 = vsyncpa %s33, 0
    %35 = vsyncpa [#allocation6], 0
    %s36 = scalar_lea.sflag [#allocation6], 1
    %37 = vsyncpa %s36, 0
    %38 = vsyncpa [#allocation9], 0
    %39 = vsyncpa [#allocation12], 0
    %40 = vsyncpa [#allocation15], 0
    %41 = vsyncpa [#allocation18], 0
    %42 = vsyncpa [#allocation4], 0
    %s43 = scalar_lea.sflag [#allocation4], 1
    %44 = vsyncpa %s43, 0
    loop: start=0, step=1, limit=4
    $region2: #{tpu_custom_call.1} parent=1 // loop_pre_header
      _
    $region3: #{tpu_custom_call.1} parent=1 // loop_header
      %s46 = sphi 0, %s50
      %p47 = scmp.ge.s32.totalorder %s46, 4
      %s53 = sphi 0, %s65
      %s54 = sphi 0, %s61
      %s55 = sphi 0, %s53
      %s56 = sphi 0, %s54
      %s57 = sphi 0, %s55
      %s58 = sphi 0, %s56
      %s70 = sphi 0, %s72
      %s73 = sphi 0, %s70
      %s74 = sphi 0, %s73
      %s90 = sphi 0, %s74
      %s96 = sphi 0, %s98
      %s99 = sphi 0, %s96
      %s100 = sphi 0, %s99
      %s116 = sphi 0, %s100
      %s122 = sphi 0, %s124
      %s125 = sphi 0, %s122
      %s126 = sphi 0, %s125
      %s142 = sphi 0, %s126
      %s150 = sphi 0, %s152
      %s153 = sphi 0, %s150
      %s154 = sphi 0, %s153
      %s170 = sphi 0, %s154
      %s178 = sphi 0, %s180
      %s181 = sphi 0, %s178
      %s182 = sphi 0, %s181
      %s198 = sphi 0, %s182
      %s202 = sphi 0, %s202
      %s204 = sphi 0, %s202
      %s205 = sphi 0, %s204
      %s219 = sphi 0, %s205
      %s223 = sphi 0, %s223
      %s225 = sphi 0, %s223
      %s226 = sphi 0, %s225
      %s240 = sphi 0, %s226
      %s244 = sphi 0, %s244
      %s246 = sphi 0, %s244
      %s247 = sphi 0, %s246
      %s261 = sphi 0, %s247
      %s265 = sphi 0, %s265
      %s267 = sphi 0, %s265
      %s268 = sphi 0, %s267
      %s282 = sphi 0, %s268
      %s286 = sphi 0, %s286
      %s288 = sphi 0, %s286
      %s289 = sphi 0, %s288
      %s303 = sphi 0, %s289
      %s307 = sphi 0, %s307
      %s309 = sphi 0, %s307
      %s310 = sphi 0, %s309
      %s324 = sphi 0, %s310
      %s328 = sphi 0, %s328
      %s330 = sphi 0, %s328
      %s331 = sphi 0, %s330
      %s345 = sphi 0, %s331
      %s349 = sphi 0, %s349
      %s351 = sphi 0, %s349
      %s352 = sphi 0, %s351
      %s366 = sphi 0, %s352
      %s370 = sphi 0, %s370
      %s372 = sphi 0, %s370
      %s373 = sphi 0, %s372
      %s387 = sphi 0, %s373
      %s391 = sphi 0, %s391
      %s393 = sphi 0, %s391
      %s394 = sphi 0, %s393
      %s408 = sphi 0, %s394
      %s412 = sphi 0, %s412
      %s414 = sphi 0, %s412
      %s415 = sphi 0, %s414
      %s429 = sphi 0, %s415
      %s433 = sphi 0, %s433
      %s435 = sphi 0, %s433
      %s436 = sphi 0, %s435
      %s450 = sphi 0, %s436
      %s454 = sphi 0, %s454
      %s456 = sphi 0, %s454
      %s457 = sphi 0, %s456
      %s471 = sphi 0, %s457
      %s475 = sphi 0, %s475
      %s477 = sphi 0, %s475
      %s478 = sphi 0, %s477
      %s492 = sphi 0, %s478
      %s496 = sphi 0, %s496
      %s498 = sphi 0, %s496
      %s499 = sphi 0, %s498
      %s513 = sphi 0, %s499
      %s517 = sphi 0, %s517
      %s519 = sphi 0, %s517
      %s520 = sphi 0, %s519
      %s534 = sphi 0, %s520
      %s538 = sphi 0, %s538
      %s540 = sphi 0, %s538
      %s541 = sphi 0, %s540
      %s555 = sphi 0, %s541
      %s559 = sphi 0, %s559
      %s561 = sphi 0, %s559
      %s562 = sphi 0, %s561
      %s576 = sphi 0, %s562
      %s580 = sphi 0, %s580
      %s582 = sphi 0, %s580
      %s583 = sphi 0, %s582
      %s597 = sphi 0, %s583
      %s601 = sphi 0, %s601
      %s603 = sphi 0, %s601
      %s604 = sphi 0, %s603
      %s618 = sphi 0, %s604
      %s622 = sphi 0, %s622
      %s624 = sphi 0, %s622
      %s625 = sphi 0, %s624
      %s639 = sphi 0, %s625
      %s643 = sphi 0, %s643
      %s645 = sphi 0, %s643
      %s646 = sphi 0, %s645
      %s660 = sphi 0, %s646
      %s668 = sphi 0, %s670
      %s671 = sphi 0, %s668
      %s672 = sphi 0, %s671
      %s688 = sphi 0, %s672
    $region4: #{tpu_custom_call.1} parent=1 // loop_header_branch
      %49 = sbr.rel (%p47) target = $region8
    $region5: #{tpu_custom_call.1} parent=1 // loop_body
      %s51 = ssub.s32 %s46, 1
      %s52 = ssub.s32 %s46, 2
      %s59 = sadd.s32 1, %s54
      %p60 = scmp.ge.s32.totalorder %s59, 1
      %s61 = scalar_select %p60, 0, %s59
      %s62 = sadd.s32 1, %s53
      %s63 = scalar_select %p60, %s62, %s53
      %p64 = scmp.ge.s32.totalorder %s63, 2
      %s65 = scalar_select %p64, 0, %s63
      %s66 = ssub.s32 %s53, %s65
      %s67 = ssub.s32 %s54, %s61
      %s68 = sor.u32 %s66, %s67
      %p69 = scmp.eq.s32.totalorder %s68, 0
      %s71 = sadd.s32 %s70, 1
      %s72 = scalar_select %p69, %s70, %s71
      %p75 = pneg %p69
      %p76 = scmp.eq.s32.totalorder %s46, 1
      %p77 = por %p75, %p76
      %p78 = scmp.ne.s32.totalorder %s70, %s73
      %p79 = scmp.eq.s32.totalorder %s46, 0
      %p80 = por %p78, %p79
      %p81 = scmp.ne.s32.totalorder %s70, %s73
      %p82 = scmp.eq.s32.totalorder %s51, 1
      %p83 = por %p81, %p82
      %p84 = scmp.ne.s32.totalorder %s73, %s74
      %p85 = scmp.eq.s32.totalorder %s51, 0
      %p86 = por %p84, %p85
      %p87 = scmp.ne.s32.totalorder %s73, %s74
      %p88 = scmp.eq.s32.totalorder %s52, 1
      %p89 = por %p87, %p88
      %p91 = scmp.ne.s32.totalorder %s74, %s90
      %p92 = scmp.eq.s32.totalorder %s52, 0
      %p93 = por %p91, %p92
      %s94 = ssub.s32 %s53, %s65
      %p95 = scmp.eq.s32.totalorder %s94, 0
      %s97 = sadd.s32 %s96, 1
      %s98 = scalar_select %p95, %s96, %s97
      %p101 = pneg %p95
      %p102 = scmp.eq.s32.totalorder %s46, 1
      %p103 = por %p101, %p102
      %p104 = scmp.ne.s32.totalorder %s96, %s99
      %p105 = scmp.eq.s32.totalorder %s46, 0
      %p106 = por %p104, %p105
      %p107 = scmp.ne.s32.totalorder %s96, %s99
      %p108 = scmp.eq.s32.totalorder %s51, 1
      %p109 = por %p107, %p108
      %p110 = scmp.ne.s32.totalorder %s99, %s100
      %p111 = scmp.eq.s32.totalorder %s51, 0
      %p112 = por %p110, %p111
      %p113 = scmp.ne.s32.totalorder %s99, %s100
      %p114 = scmp.eq.s32.totalorder %s52, 1
      %p115 = por %p113, %p114
      %p117 = scmp.ne.s32.totalorder %s100, %s116
      %p118 = scmp.eq.s32.totalorder %s52, 0
      %p119 = por %p117, %p118
      %s120 = ssub.s32 %s53, %s65
      %p121 = scmp.eq.s32.totalorder %s120, 0
      %s123 = sadd.s32 %s122, 1
      %s124 = scalar_select %p121, %s122, %s123
      %p127 = pneg %p121
      %p128 = scmp.eq.s32.totalorder %s46, 1
      %p129 = por %p127, %p128
      %p130 = scmp.ne.s32.totalorder %s122, %s125
      %p131 = scmp.eq.s32.totalorder %s46, 0
      %p132 = por %p130, %p131
      %p133 = scmp.ne.s32.totalorder %s122, %s125
      %p134 = scmp.eq.s32.totalorder %s51, 1
      %p135 = por %p133, %p134
      %p136 = scmp.ne.s32.totalorder %s125, %s126
      %p137 = scmp.eq.s32.totalorder %s51, 0
      %p138 = por %p136, %p137
      %p139 = scmp.ne.s32.totalorder %s125, %s126
      %p140 = scmp.eq.s32.totalorder %s52, 1
      %p141 = por %p139, %p140
      %p143 = scmp.ne.s32.totalorder %s126, %s142
      %p144 = scmp.eq.s32.totalorder %s52, 0
      %p145 = por %p143, %p144
      %s146 = ssub.s32 %s53, %s65
      %s147 = ssub.s32 %s54, %s61
      %s148 = sor.u32 %s146, %s147
      %p149 = scmp.eq.s32.totalorder %s148, 0
      %s151 = sadd.s32 %s150, 1
      %s152 = scalar_select %p149, %s150, %s151
      %p155 = pneg %p149
      %p156 = scmp.eq.s32.totalorder %s46, 1
      %p157 = por %p155, %p156
      %p158 = scmp.ne.s32.totalorder %s150, %s153
      %p159 = scmp.eq.s32.totalorder %s46, 0
      %p160 = por %p158, %p159
      %p161 = scmp.ne.s32.totalorder %s150, %s153
      %p162 = scmp.eq.s32.totalorder %s51, 1
      %p163 = por %p161, %p162
      %p164 = scmp.ne.s32.totalorder %s153, %s154
      %p165 = scmp.eq.s32.totalorder %s51, 0
      %p166 = por %p164, %p165
      %p167 = scmp.ne.s32.totalorder %s153, %s154
      %p168 = scmp.eq.s32.totalorder %s52, 1
      %p169 = por %p167, %p168
      %p171 = scmp.ne.s32.totalorder %s154, %s170
      %p172 = scmp.eq.s32.totalorder %s52, 0
      %p173 = por %p171, %p172
      %s174 = ssub.s32 %s53, %s65
      %s175 = ssub.s32 %s54, %s61
      %s176 = sor.u32 %s174, %s175
      %p177 = scmp.eq.s32.totalorder %s176, 0
      %s179 = sadd.s32 %s178, 1
      %s180 = scalar_select %p177, %s178, %s179
      %p183 = pneg %p177
      %p184 = scmp.eq.s32.totalorder %s46, 1
      %p185 = por %p183, %p184
      %p186 = scmp.ne.s32.totalorder %s178, %s181
      %p187 = scmp.eq.s32.totalorder %s46, 0
      %p188 = por %p186, %p187
      %p189 = scmp.ne.s32.totalorder %s178, %s181
      %p190 = scmp.eq.s32.totalorder %s51, 1
      %p191 = por %p189, %p190
      %p192 = scmp.ne.s32.totalorder %s181, %s182
      %p193 = scmp.eq.s32.totalorder %s51, 0
      %p194 = por %p192, %p193
      %p195 = scmp.ne.s32.totalorder %s181, %s182
      %p196 = scmp.eq.s32.totalorder %s52, 1
      %p197 = por %p195, %p196
      %p199 = scmp.ne.s32.totalorder %s182, %s198
      %p200 = scmp.eq.s32.totalorder %s52, 0
      %p201 = por %p199, %p200
      %s203 = sadd.s32 %s202, 1
      %p206 = scmp.eq.s32.totalorder %s46, 1
      %p207 = scmp.ne.s32.totalorder %s202, %s204
      %p208 = scmp.eq.s32.totalorder %s46, 0
      %p209 = por %p207, %p208
      %p210 = scmp.ne.s32.totalorder %s202, %s204
      %p211 = scmp.eq.s32.totalorder %s51, 1
      %p212 = por %p210, %p211
      %p213 = scmp.ne.s32.totalorder %s204, %s205
      %p214 = scmp.eq.s32.totalorder %s51, 0
      %p215 = por %p213, %p214
      %p216 = scmp.ne.s32.totalorder %s204, %s205
      %p217 = scmp.eq.s32.totalorder %s52, 1
      %p218 = por %p216, %p217
      %p220 = scmp.ne.s32.totalorder %s205, %s219
      %p221 = scmp.eq.s32.totalorder %s52, 0
      %p222 = por %p220, %p221
      %s224 = sadd.s32 %s223, 1
      %p227 = scmp.eq.s32.totalorder %s46, 1
      %p228 = scmp.ne.s32.totalorder %s223, %s225
      %p229 = scmp.eq.s32.totalorder %s46, 0
      %p230 = por %p228, %p229
      %p231 = scmp.ne.s32.totalorder %s223, %s225
      %p232 = scmp.eq.s32.totalorder %s51, 1
      %p233 = por %p231, %p232
      %p234 = scmp.ne.s32.totalorder %s225, %s226
      %p235 = scmp.eq.s32.totalorder %s51, 0
      %p236 = por %p234, %p235
      %p237 = scmp.ne.s32.totalorder %s225, %s226
      %p238 = scmp.eq.s32.totalorder %s52, 1
      %p239 = por %p237, %p238
      %p241 = scmp.ne.s32.totalorder %s226, %s240
      %p242 = scmp.eq.s32.totalorder %s52, 0
      %p243 = por %p241, %p242
      %s245 = sadd.s32 %s244, 1
      %p248 = scmp.eq.s32.totalorder %s46, 1
      %p249 = scmp.ne.s32.totalorder %s244, %s246
      %p250 = scmp.eq.s32.totalorder %s46, 0
      %p251 = por %p249, %p250
      %p252 = scmp.ne.s32.totalorder %s244, %s246
      %p253 = scmp.eq.s32.totalorder %s51, 1
      %p254 = por %p252, %p253
      %p255 = scmp.ne.s32.totalorder %s246, %s247
      %p256 = scmp.eq.s32.totalorder %s51, 0
      %p257 = por %p255, %p256
      %p258 = scmp.ne.s32.totalorder %s246, %s247
      %p259 = scmp.eq.s32.totalorder %s52, 1
      %p260 = por %p258, %p259
      %p262 = scmp.ne.s32.totalorder %s247, %s261
      %p263 = scmp.eq.s32.totalorder %s52, 0
      %p264 = por %p262, %p263
      %s266 = sadd.s32 %s265, 1
      %p269 = scmp.eq.s32.totalorder %s46, 1
      %p270 = scmp.ne.s32.totalorder %s265, %s267
      %p271 = scmp.eq.s32.totalorder %s46, 0
      %p272 = por %p270, %p271
      %p273 = scmp.ne.s32.totalorder %s265, %s267
      %p274 = scmp.eq.s32.totalorder %s51, 1
      %p275 = por %p273, %p274
      %p276 = scmp.ne.s32.totalorder %s267, %s268
      %p277 = scmp.eq.s32.totalorder %s51, 0
      %p278 = por %p276, %p277
      %p279 = scmp.ne.s32.totalorder %s267, %s268
      %p280 = scmp.eq.s32.totalorder %s52, 1
      %p281 = por %p279, %p280
      %p283 = scmp.ne.s32.totalorder %s268, %s282
      %p284 = scmp.eq.s32.totalorder %s52, 0
      %p285 = por %p283, %p284
      %s287 = sadd.s32 %s286, 1
      %p290 = scmp.eq.s32.totalorder %s46, 1
      %p291 = scmp.ne.s32.totalorder %s286, %s288
      %p292 = scmp.eq.s32.totalorder %s46, 0
      %p293 = por %p291, %p292
      %p294 = scmp.ne.s32.totalorder %s286, %s288
      %p295 = scmp.eq.s32.totalorder %s51, 1
      %p296 = por %p294, %p295
      %p297 = scmp.ne.s32.totalorder %s288, %s289
      %p298 = scmp.eq.s32.totalorder %s51, 0
      %p299 = por %p297, %p298
      %p300 = scmp.ne.s32.totalorder %s288, %s289
      %p301 = scmp.eq.s32.totalorder %s52, 1
      %p302 = por %p300, %p301
      %p304 = scmp.ne.s32.totalorder %s289, %s303
      %p305 = scmp.eq.s32.totalorder %s52, 0
      %p306 = por %p304, %p305
      %s308 = sadd.s32 %s307, 1
      %p311 = scmp.eq.s32.totalorder %s46, 1
      %p312 = scmp.ne.s32.totalorder %s307, %s309
      %p313 = scmp.eq.s32.totalorder %s46, 0
      %p314 = por %p312, %p313
      %p315 = scmp.ne.s32.totalorder %s307, %s309
      %p316 = scmp.eq.s32.totalorder %s51, 1
      %p317 = por %p315, %p316
      %p318 = scmp.ne.s32.totalorder %s309, %s310
      %p319 = scmp.eq.s32.totalorder %s51, 0
      %p320 = por %p318, %p319
      %p321 = scmp.ne.s32.totalorder %s309, %s310
      %p322 = scmp.eq.s32.totalorder %s52, 1
      %p323 = por %p321, %p322
      %p325 = scmp.ne.s32.totalorder %s310, %s324
      %p326 = scmp.eq.s32.totalorder %s52, 0
      %p327 = por %p325, %p326
      %s329 = sadd.s32 %s328, 1
      %p332 = scmp.eq.s32.totalorder %s46, 1
      %p333 = scmp.ne.s32.totalorder %s328, %s330
      %p334 = scmp.eq.s32.totalorder %s46, 0
      %p335 = por %p333, %p334
      %p336 = scmp.ne.s32.totalorder %s328, %s330
      %p337 = scmp.eq.s32.totalorder %s51, 1
      %p338 = por %p336, %p337
      %p339 = scmp.ne.s32.totalorder %s330, %s331
      %p340 = scmp.eq.s32.totalorder %s51, 0
      %p341 = por %p339, %p340
      %p342 = scmp.ne.s32.totalorder %s330, %s331
      %p343 = scmp.eq.s32.totalorder %s52, 1
      %p344 = por %p342, %p343
      %p346 = scmp.ne.s32.totalorder %s331, %s345
      %p347 = scmp.eq.s32.totalorder %s52, 0
      %p348 = por %p346, %p347
      %s350 = sadd.s32 %s349, 1
      %p353 = scmp.eq.s32.totalorder %s46, 1
      %p354 = scmp.ne.s32.totalorder %s349, %s351
      %p355 = scmp.eq.s32.totalorder %s46, 0
      %p356 = por %p354, %p355
      %p357 = scmp.ne.s32.totalorder %s349, %s351
      %p358 = scmp.eq.s32.totalorder %s51, 1
      %p359 = por %p357, %p358
      %p360 = scmp.ne.s32.totalorder %s351, %s352
      %p361 = scmp.eq.s32.totalorder %s51, 0
      %p362 = por %p360, %p361
      %p363 = scmp.ne.s32.totalorder %s351, %s352
      %p364 = scmp.eq.s32.totalorder %s52, 1
      %p365 = por %p363, %p364
      %p367 = scmp.ne.s32.totalorder %s352, %s366
      %p368 = scmp.eq.s32.totalorder %s52, 0
      %p369 = por %p367, %p368
      %s371 = sadd.s32 %s370, 1
      %p374 = scmp.eq.s32.totalorder %s46, 1
      %p375 = scmp.ne.s32.totalorder %s370, %s372
      %p376 = scmp.eq.s32.totalorder %s46, 0
      %p377 = por %p375, %p376
      %p378 = scmp.ne.s32.totalorder %s370, %s372
      %p379 = scmp.eq.s32.totalorder %s51, 1
      %p380 = por %p378, %p379
      %p381 = scmp.ne.s32.totalorder %s372, %s373
      %p382 = scmp.eq.s32.totalorder %s51, 0
      %p383 = por %p381, %p382
      %p384 = scmp.ne.s32.totalorder %s372, %s373
      %p385 = scmp.eq.s32.totalorder %s52, 1
      %p386 = por %p384, %p385
      %p388 = scmp.ne.s32.totalorder %s373, %s387
      %p389 = scmp.eq.s32.totalorder %s52, 0
      %p390 = por %p388, %p389
      %s392 = sadd.s32 %s391, 1
      %p395 = scmp.eq.s32.totalorder %s46, 1
      %p396 = scmp.ne.s32.totalorder %s391, %s393
      %p397 = scmp.eq.s32.totalorder %s46, 0
      %p398 = por %p396, %p397
      %p399 = scmp.ne.s32.totalorder %s391, %s393
      %p400 = scmp.eq.s32.totalorder %s51, 1
      %p401 = por %p399, %p400
      %p402 = scmp.ne.s32.totalorder %s393, %s394
      %p403 = scmp.eq.s32.totalorder %s51, 0
      %p404 = por %p402, %p403
      %p405 = scmp.ne.s32.totalorder %s393, %s394
      %p406 = scmp.eq.s32.totalorder %s52, 1
      %p407 = por %p405, %p406
      %p409 = scmp.ne.s32.totalorder %s394, %s408
      %p410 = scmp.eq.s32.totalorder %s52, 0
      %p411 = por %p409, %p410
      %s413 = sadd.s32 %s412, 1
      %p416 = scmp.eq.s32.totalorder %s46, 1
      %p417 = scmp.ne.s32.totalorder %s412, %s414
      %p418 = scmp.eq.s32.totalorder %s46, 0
      %p419 = por %p417, %p418
      %p420 = scmp.ne.s32.totalorder %s412, %s414
      %p421 = scmp.eq.s32.totalorder %s51, 1
      %p422 = por %p420, %p421
      %p423 = scmp.ne.s32.totalorder %s414, %s415
      %p424 = scmp.eq.s32.totalorder %s51, 0
      %p425 = por %p423, %p424
      %p426 = scmp.ne.s32.totalorder %s414, %s415
      %p427 = scmp.eq.s32.totalorder %s52, 1
      %p428 = por %p426, %p427
      %p430 = scmp.ne.s32.totalorder %s415, %s429
      %p431 = scmp.eq.s32.totalorder %s52, 0
      %p432 = por %p430, %p431
      %s434 = sadd.s32 %s433, 1
      %p437 = scmp.eq.s32.totalorder %s46, 1
      %p438 = scmp.ne.s32.totalorder %s433, %s435
      %p439 = scmp.eq.s32.totalorder %s46, 0
      %p440 = por %p438, %p439
      %p441 = scmp.ne.s32.totalorder %s433, %s435
      %p442 = scmp.eq.s32.totalorder %s51, 1
      %p443 = por %p441, %p442
      %p444 = scmp.ne.s32.totalorder %s435, %s436
      %p445 = scmp.eq.s32.totalorder %s51, 0
      %p446 = por %p444, %p445
      %p447 = scmp.ne.s32.totalorder %s435, %s436
      %p448 = scmp.eq.s32.totalorder %s52, 1
      %p449 = por %p447, %p448
      %p451 = scmp.ne.s32.totalorder %s436, %s450
      %p452 = scmp.eq.s32.totalorder %s52, 0
      %p453 = por %p451, %p452
      %s455 = sadd.s32 %s454, 1
      %p458 = scmp.eq.s32.totalorder %s46, 1
      %p459 = scmp.ne.s32.totalorder %s454, %s456
      %p460 = scmp.eq.s32.totalorder %s46, 0
      %p461 = por %p459, %p460
      %p462 = scmp.ne.s32.totalorder %s454, %s456
      %p463 = scmp.eq.s32.totalorder %s51, 1
      %p464 = por %p462, %p463
      %p465 = scmp.ne.s32.totalorder %s456, %s457
      %p466 = scmp.eq.s32.totalorder %s51, 0
      %p467 = por %p465, %p466
      %p468 = scmp.ne.s32.totalorder %s456, %s457
      %p469 = scmp.eq.s32.totalorder %s52, 1
      %p470 = por %p468, %p469
      %p472 = scmp.ne.s32.totalorder %s457, %s471
      %p473 = scmp.eq.s32.totalorder %s52, 0
      %p474 = por %p472, %p473
      %s476 = sadd.s32 %s475, 1
      %p479 = scmp.eq.s32.totalorder %s46, 1
      %p480 = scmp.ne.s32.totalorder %s475, %s477
      %p481 = scmp.eq.s32.totalorder %s46, 0
      %p482 = por %p480, %p481
      %p483 = scmp.ne.s32.totalorder %s475, %s477
      %p484 = scmp.eq.s32.totalorder %s51, 1
      %p485 = por %p483, %p484
      %p486 = scmp.ne.s32.totalorder %s477, %s478
      %p487 = scmp.eq.s32.totalorder %s51, 0
      %p488 = por %p486, %p487
      %p489 = scmp.ne.s32.totalorder %s477, %s478
      %p490 = scmp.eq.s32.totalorder %s52, 1
      %p491 = por %p489, %p490
      %p493 = scmp.ne.s32.totalorder %s478, %s492
      %p494 = scmp.eq.s32.totalorder %s52, 0
      %p495 = por %p493, %p494
      %s497 = sadd.s32 %s496, 1
      %p500 = scmp.eq.s32.totalorder %s46, 1
      %p501 = scmp.ne.s32.totalorder %s496, %s498
      %p502 = scmp.eq.s32.totalorder %s46, 0
      %p503 = por %p501, %p502
      %p504 = scmp.ne.s32.totalorder %s496, %s498
      %p505 = scmp.eq.s32.totalorder %s51, 1
      %p506 = por %p504, %p505
      %p507 = scmp.ne.s32.totalorder %s498, %s499
      %p508 = scmp.eq.s32.totalorder %s51, 0
      %p509 = por %p507, %p508
      %p510 = scmp.ne.s32.totalorder %s498, %s499
      %p511 = scmp.eq.s32.totalorder %s52, 1
      %p512 = por %p510, %p511
      %p514 = scmp.ne.s32.totalorder %s499, %s513
      %p515 = scmp.eq.s32.totalorder %s52, 0
      %p516 = por %p514, %p515
      %s518 = sadd.s32 %s517, 1
      %p521 = scmp.eq.s32.totalorder %s46, 1
      %p522 = scmp.ne.s32.totalorder %s517, %s519
      %p523 = scmp.eq.s32.totalorder %s46, 0
      %p524 = por %p522, %p523
      %p525 = scmp.ne.s32.totalorder %s517, %s519
      %p526 = scmp.eq.s32.totalorder %s51, 1
      %p527 = por %p525, %p526
      %p528 = scmp.ne.s32.totalorder %s519, %s520
      %p529 = scmp.eq.s32.totalorder %s51, 0
      %p530 = por %p528, %p529
      %p531 = scmp.ne.s32.totalorder %s519, %s520
      %p532 = scmp.eq.s32.totalorder %s52, 1
      %p533 = por %p531, %p532
      %p535 = scmp.ne.s32.totalorder %s520, %s534
      %p536 = scmp.eq.s32.totalorder %s52, 0
      %p537 = por %p535, %p536
      %s539 = sadd.s32 %s538, 1
      %p542 = scmp.eq.s32.totalorder %s46, 1
      %p543 = scmp.ne.s32.totalorder %s538, %s540
      %p544 = scmp.eq.s32.totalorder %s46, 0
      %p545 = por %p543, %p544
      %p546 = scmp.ne.s32.totalorder %s538, %s540
      %p547 = scmp.eq.s32.totalorder %s51, 1
      %p548 = por %p546, %p547
      %p549 = scmp.ne.s32.totalorder %s540, %s541
      %p550 = scmp.eq.s32.totalorder %s51, 0
      %p551 = por %p549, %p550
      %p552 = scmp.ne.s32.totalorder %s540, %s541
      %p553 = scmp.eq.s32.totalorder %s52, 1
      %p554 = por %p552, %p553
      %p556 = scmp.ne.s32.totalorder %s541, %s555
      %p557 = scmp.eq.s32.totalorder %s52, 0
      %p558 = por %p556, %p557
      %s560 = sadd.s32 %s559, 1
      %p563 = scmp.eq.s32.totalorder %s46, 1
      %p564 = scmp.ne.s32.totalorder %s559, %s561
      %p565 = scmp.eq.s32.totalorder %s46, 0
      %p566 = por %p564, %p565
      %p567 = scmp.ne.s32.totalorder %s559, %s561
      %p568 = scmp.eq.s32.totalorder %s51, 1
      %p569 = por %p567, %p568
      %p570 = scmp.ne.s32.totalorder %s561, %s562
      %p571 = scmp.eq.s32.totalorder %s51, 0
      %p572 = por %p570, %p571
      %p573 = scmp.ne.s32.totalorder %s561, %s562
      %p574 = scmp.eq.s32.totalorder %s52, 1
      %p575 = por %p573, %p574
      %p577 = scmp.ne.s32.totalorder %s562, %s576
      %p578 = scmp.eq.s32.totalorder %s52, 0
      %p579 = por %p577, %p578
      %s581 = sadd.s32 %s580, 1
      %p584 = scmp.eq.s32.totalorder %s46, 1
      %p585 = scmp.ne.s32.totalorder %s580, %s582
      %p586 = scmp.eq.s32.totalorder %s46, 0
      %p587 = por %p585, %p586
      %p588 = scmp.ne.s32.totalorder %s580, %s582
      %p589 = scmp.eq.s32.totalorder %s51, 1
      %p590 = por %p588, %p589
      %p591 = scmp.ne.s32.totalorder %s582, %s583
      %p592 = scmp.eq.s32.totalorder %s51, 0
      %p593 = por %p591, %p592
      %p594 = scmp.ne.s32.totalorder %s582, %s583
      %p595 = scmp.eq.s32.totalorder %s52, 1
      %p596 = por %p594, %p595
      %p598 = scmp.ne.s32.totalorder %s583, %s597
      %p599 = scmp.eq.s32.totalorder %s52, 0
      %p600 = por %p598, %p599
      %s602 = sadd.s32 %s601, 1
      %p605 = scmp.eq.s32.totalorder %s46, 1
      %p606 = scmp.ne.s32.totalorder %s601, %s603
      %p607 = scmp.eq.s32.totalorder %s46, 0
      %p608 = por %p606, %p607
      %p609 = scmp.ne.s32.totalorder %s601, %s603
      %p610 = scmp.eq.s32.totalorder %s51, 1
      %p611 = por %p609, %p610
      %p612 = scmp.ne.s32.totalorder %s603, %s604
      %p613 = scmp.eq.s32.totalorder %s51, 0
      %p614 = por %p612, %p613
      %p615 = scmp.ne.s32.totalorder %s603, %s604
      %p616 = scmp.eq.s32.totalorder %s52, 1
      %p617 = por %p615, %p616
      %p619 = scmp.ne.s32.totalorder %s604, %s618
      %p620 = scmp.eq.s32.totalorder %s52, 0
      %p621 = por %p619, %p620
      %s623 = sadd.s32 %s622, 1
      %p626 = scmp.eq.s32.totalorder %s46, 1
      %p627 = scmp.ne.s32.totalorder %s622, %s624
      %p628 = scmp.eq.s32.totalorder %s46, 0
      %p629 = por %p627, %p628
      %p630 = scmp.ne.s32.totalorder %s622, %s624
      %p631 = scmp.eq.s32.totalorder %s51, 1
      %p632 = por %p630, %p631
      %p633 = scmp.ne.s32.totalorder %s624, %s625
      %p634 = scmp.eq.s32.totalorder %s51, 0
      %p635 = por %p633, %p634
      %p636 = scmp.ne.s32.totalorder %s624, %s625
      %p637 = scmp.eq.s32.totalorder %s52, 1
      %p638 = por %p636, %p637
      %p640 = scmp.ne.s32.totalorder %s625, %s639
      %p641 = scmp.eq.s32.totalorder %s52, 0
      %p642 = por %p640, %p641
      %s644 = sadd.s32 %s643, 1
      %p647 = scmp.eq.s32.totalorder %s46, 1
      %p648 = scmp.ne.s32.totalorder %s643, %s645
      %p649 = scmp.eq.s32.totalorder %s46, 0
      %p650 = por %p648, %p649
      %p651 = scmp.ne.s32.totalorder %s643, %s645
      %p652 = scmp.eq.s32.totalorder %s51, 1
      %p653 = por %p651, %p652
      %p654 = scmp.ne.s32.totalorder %s645, %s646
      %p655 = scmp.eq.s32.totalorder %s51, 0
      %p656 = por %p654, %p655
      %p657 = scmp.ne.s32.totalorder %s645, %s646
      %p658 = scmp.eq.s32.totalorder %s52, 1
      %p659 = por %p657, %p658
      %p661 = scmp.ne.s32.totalorder %s646, %s660
      %p662 = scmp.eq.s32.totalorder %s52, 0
      %p663 = por %p661, %p662
      %s664 = ssub.s32 %s53, %s65
      %s665 = ssub.s32 %s54, %s61
      %s666 = sor.u32 %s664, %s665
      %p667 = scmp.eq.s32.totalorder %s666, 0
      %s669 = sadd.s32 %s668, 1
      %s670 = scalar_select %p667, %s668, %s669
      %p673 = pneg %p667
      %p674 = scmp.eq.s32.totalorder %s46, 1
      %p675 = por %p673, %p674
      %p676 = scmp.ne.s32.totalorder %s668, %s671
      %p677 = scmp.eq.s32.totalorder %s46, 0
      %p678 = por %p676, %p677
      %p679 = scmp.ne.s32.totalorder %s668, %s671
      %p680 = scmp.eq.s32.totalorder %s51, 1
      %p681 = por %p679, %p680
      %p682 = scmp.ne.s32.totalorder %s671, %s672
      %p683 = scmp.eq.s32.totalorder %s51, 0
      %p684 = por %p682, %p683
      %p685 = scmp.ne.s32.totalorder %s671, %s672
      %p686 = scmp.eq.s32.totalorder %s52, 1
      %p687 = por %p685, %p686
      %p689 = scmp.ne.s32.totalorder %s672, %s688
      %p690 = scmp.eq.s32.totalorder %s52, 0
      %p691 = por %p689, %p690
      %p692 = scmp.le.s32.totalorder 1, %s46
      %p693 = scmp.lt.s32.totalorder %s46, 3
      %p694 = pnand %p692, %p693
      %p695 = pneg %p694
      // Predicated region
      $region9: #{tpu_custom_call.1} parent=5 // pred_check
        _
      $region10: #{tpu_custom_call.1} parent=5 // pred_check_branch
        %697 = sbr.rel (%p694) target = $region12
      $region11: #{tpu_custom_call.1} parent=5 // pred_region
        %s698 = ssub.s32 %s46, 1
        // Predicated region
        $region13: #{tpu_custom_call.1} parent=11 // pred_check
          %p699 = pneg %p215
        $region14: #{tpu_custom_call.1} parent=11 // pred_check_branch
          %701 = sbr.rel (%p699) target = $region16
        $region15: #{tpu_custom_call.1} parent=11 // pred_region
          _
        $region16: #{tpu_custom_call.1} parent=11 // pred_fallthru
          _
        // Predicated region
        $region17: #{tpu_custom_call.1} parent=11 // pred_check
          %p702 = pneg %p236
        $region18: #{tpu_custom_call.1} parent=11 // pred_check_branch
          %704 = sbr.rel (%p702) target = $region20
        $region19: #{tpu_custom_call.1} parent=11 // pred_region
          %s706 = ssub.s32 16, 16
          %707 = vsyncadd [#allocation9], %s706
          %s709 = sshll.u32 [#allocation8], 4
          %s710 = int_to_ptr.vmem [resolvable:$true] %s709
          %712 = dma.hbm_to_vmem [thread:$0]  %s6, 16, %s710, [#allocation9]
        $region20: #{tpu_custom_call.1} parent=11 // pred_fallthru
          _
        // Predicated region
        $region21: #{tpu_custom_call.1} parent=11 // pred_check
          %p713 = pneg %p257
        $region22: #{tpu_custom_call.1} parent=11 // pred_check_branch
          %715 = sbr.rel (%p713) target = $region24
        $region23: #{tpu_custom_call.1} parent=11 // pred_region
          %s717 = ssub.s32 2048, 2048
          %718 = vsyncadd [#allocation9], %s717
          %s719 = sshll.u32 [#allocation10], 4
          %s720 = int_to_ptr.vmem [resolvable:$true] %s719
          %725 = dma.hbm_to_vmem [thread:$0]  %s7, 2048, %s720, [#allocation9], 128, 128, 8
        $region24: #{tpu_custom_call.1} parent=11 // pred_fallthru
          _
        // Predicated region
        $region25: #{tpu_custom_call.1} parent=11 // pred_check
          %p726 = pneg %p278
        $region26: #{tpu_custom_call.1} parent=11 // pred_check_branch
          %728 = sbr.rel (%p726) target = $region28
        $region27: #{tpu_custom_call.1} parent=11 // pred_region
          _
        $region28: #{tpu_custom_call.1} parent=11 // pred_fallthru
          _
        // Predicated region
        $region29: #{tpu_custom_call.1} parent=11 // pred_check
          %p729 = pneg %p299
        $region30: #{tpu_custom_call.1} parent=11 // pred_check_branch
          %731 = sbr.rel (%p729) target = $region32
        $region31: #{tpu_custom_call.1} parent=11 // pred_region
          %s733 = ssub.s32 1024, 1024
          %734 = vsyncadd [#allocation12], %s733
          %s735 = sshll.u32 [#allocation11], 4
          %s736 = int_to_ptr.vmem [resolvable:$true] %s735
          %741 = dma.hbm_to_vmem [thread:$0]  %s9, 1024, %s736, [#allocation12], 64, 64, 4
        $region32: #{tpu_custom_call.1} parent=11 // pred_fallthru
          _
        // Predicated region
        $region33: #{tpu_custom_call.1} parent=11 // pred_check
          %p742 = pneg %p320
        $region34: #{tpu_custom_call.1} parent=11 // pred_check_branch
          %744 = sbr.rel (%p742) target = $region36
        $region35: #{tpu_custom_call.1} parent=11 // pred_region
          _
        $region36: #{tpu_custom_call.1} parent=11 // pred_fallthru
          _
        // Predicated region
        $region37: #{tpu_custom_call.1} parent=11 // pred_check
          %p745 = pneg %p341
        $region38: #{tpu_custom_call.1} parent=11 // pred_check_branch
          %747 = sbr.rel (%p745) target = $region40
        $region39: #{tpu_custom_call.1} parent=11 // pred_region
          %s749 = ssub.s32 1024, 1024
          %750 = vsyncadd [#allocation12], %s749
          %s751 = sshll.u32 [#allocation13], 4
          %s752 = int_to_ptr.vmem [resolvable:$true] %s751
          %757 = dma.hbm_to_vmem [thread:$0]  %s11, 1024, %s752, [#allocation12], 64, 64, 4
        $region40: #{tpu_custom_call.1} parent=11 // pred_fallthru
          _
        // Predicated region
        $region41: #{tpu_custom_call.1} parent=11 // pred_check
          %p758 = pneg %p362
        $region42: #{tpu_custom_call.1} parent=11 // pred_check_branch
          %760 = sbr.rel (%p758) target = $region44
        $region43: #{tpu_custom_call.1} parent=11 // pred_region
          _
        $region44: #{tpu_custom_call.1} parent=11 // pred_fallthru
          _
        // Predicated region
        $region45: #{tpu_custom_call.1} parent=11 // pred_check
          %p761 = pneg %p383
        $region46: #{tpu_custom_call.1} parent=11 // pred_check_branch
          %763 = sbr.rel (%p761) target = $region48
        $region47: #{tpu_custom_call.1} parent=11 // pred_region
          %s765 = ssub.s32 2048, 2048
          %766 = vsyncadd [#allocation15], %s765
          %s767 = sshll.u32 [#allocation14], 4
          %s768 = int_to_ptr.vmem [resolvable:$true] %s767
          %773 = dma.hbm_to_vmem [thread:$0]  %s13, 2048, %s768, [#allocation15], 128, 128, 8
        $region48: #{tpu_custom_call.1} parent=11 // pred_fallthru
          _
        // Predicated region
        $region49: #{tpu_custom_call.1} parent=11 // pred_check
          %p774 = pneg %p404
        $region50: #{tpu_custom_call.1} parent=11 // pred_check_branch
          %776 = sbr.rel (%p774) target = $region52
        $region51: #{tpu_custom_call.1} parent=11 // pred_region
          _
        $region52: #{tpu_custom_call.1} parent=11 // pred_fallthru
          _
        // Predicated region
        $region53: #{tpu_custom_call.1} parent=11 // pred_check
          %p777 = pneg %p425
        $region54: #{tpu_custom_call.1} parent=11 // pred_check_branch
          %779 = sbr.rel (%p777) target = $region56
        $region55: #{tpu_custom_call.1} parent=11 // pred_region
          %s781 = ssub.s32 1024, 1024
          %782 = vsyncadd [#allocation15], %s781
          %s783 = sshll.u32 [#allocation16], 4
          %s784 = int_to_ptr.vmem [resolvable:$true] %s783
          %789 = dma.hbm_to_vmem [thread:$0]  %s15, 1024, %s784, [#allocation15], 64, 64, 4
        $region56: #{tpu_custom_call.1} parent=11 // pred_fallthru
          _
        // Predicated region
        $region57: #{tpu_custom_call.1} parent=11 // pred_check
          %p790 = pneg %p446
        $region58: #{tpu_custom_call.1} parent=11 // pred_check_branch
          %792 = sbr.rel (%p790) target = $region60
        $region59: #{tpu_custom_call.1} parent=11 // pred_region
          _
        $region60: #{tpu_custom_call.1} parent=11 // pred_fallthru
          _
        // Predicated region
        $region61: #{tpu_custom_call.1} parent=11 // pred_check
          %p793 = pneg %p467
        $region62: #{tpu_custom_call.1} parent=11 // pred_check_branch
          %795 = sbr.rel (%p793) target = $region64
        $region63: #{tpu_custom_call.1} parent=11 // pred_region
          %s797 = ssub.s32 2048, 2048
          %798 = vsyncadd [#allocation18], %s797
          %s799 = sshll.u32 [#allocation17], 4
          %s800 = int_to_ptr.vmem [resolvable:$true] %s799
          %805 = dma.hbm_to_vmem [thread:$0]  %s17, 2048, %s800, [#allocation18], 128, 128, 8
        $region64: #{tpu_custom_call.1} parent=11 // pred_fallthru
          _
        // Predicated region
        $region65: #{tpu_custom_call.1} parent=11 // pred_check
          %p806 = pneg %p488
        $region66: #{tpu_custom_call.1} parent=11 // pred_check_branch
          %808 = sbr.rel (%p806) target = $region68
        $region67: #{tpu_custom_call.1} parent=11 // pred_region
          _
        $region68: #{tpu_custom_call.1} parent=11 // pred_fallthru
          _
        // Predicated region
        $region69: #{tpu_custom_call.1} parent=11 // pred_check
          %p809 = pneg %p509
        $region70: #{tpu_custom_call.1} parent=11 // pred_check_branch
          %811 = sbr.rel (%p809) target = $region72
        $region71: #{tpu_custom_call.1} parent=11 // pred_region
          %s813 = ssub.s32 2048, 2048
          %814 = vsyncadd [#allocation18], %s813
          %s815 = sshll.u32 [#allocation19], 4
          %s816 = int_to_ptr.vmem [resolvable:$true] %s815
          %821 = dma.hbm_to_vmem [thread:$0]  %s19, 2048, %s816, [#allocation18], 64, 64, 4
        $region72: #{tpu_custom_call.1} parent=11 // pred_fallthru
          _
        // Predicated region
        $region73: #{tpu_custom_call.1} parent=11 // pred_check
          %p822 = pneg %p530
        $region74: #{tpu_custom_call.1} parent=11 // pred_check_branch
          %824 = sbr.rel (%p822) target = $region76
        $region75: #{tpu_custom_call.1} parent=11 // pred_region
          _
        $region76: #{tpu_custom_call.1} parent=11 // pred_fallthru
          _
        // Predicated region
        $region77: #{tpu_custom_call.1} parent=11 // pred_check
          %p825 = pneg %p551
        $region78: #{tpu_custom_call.1} parent=11 // pred_check_branch
          %827 = sbr.rel (%p825) target = $region80
        $region79: #{tpu_custom_call.1} parent=11 // pred_region
          _
        $region80: #{tpu_custom_call.1} parent=11 // pred_fallthru
          _
        // Predicated region
        $region81: #{tpu_custom_call.1} parent=11 // pred_check
          %p828 = pneg %p572
        $region82: #{tpu_custom_call.1} parent=11 // pred_check_branch
          %830 = sbr.rel (%p828) target = $region84
        $region83: #{tpu_custom_call.1} parent=11 // pred_region
          _
        $region84: #{tpu_custom_call.1} parent=11 // pred_fallthru
          _
        // Predicated region
        $region85: #{tpu_custom_call.1} parent=11 // pred_check
          %p831 = pneg %p593
        $region86: #{tpu_custom_call.1} parent=11 // pred_check_branch
          %833 = sbr.rel (%p831) target = $region88
        $region87: #{tpu_custom_call.1} parent=11 // pred_region
          _
        $region88: #{tpu_custom_call.1} parent=11 // pred_fallthru
          _
        // Predicated region
        $region89: #{tpu_custom_call.1} parent=11 // pred_check
          %p834 = pneg %p614
        $region90: #{tpu_custom_call.1} parent=11 // pred_check_branch
          %836 = sbr.rel (%p834) target = $region92
        $region91: #{tpu_custom_call.1} parent=11 // pred_region
          _
        $region92: #{tpu_custom_call.1} parent=11 // pred_fallthru
          _
        // Predicated region
        $region93: #{tpu_custom_call.1} parent=11 // pred_check
          %p837 = pneg %p635
        $region94: #{tpu_custom_call.1} parent=11 // pred_check_branch
          %839 = sbr.rel (%p837) target = $region96
        $region95: #{tpu_custom_call.1} parent=11 // pred_region
          _
        $region96: #{tpu_custom_call.1} parent=11 // pred_fallthru
          _
        // Predicated region
        $region97: #{tpu_custom_call.1} parent=11 // pred_check
          %p840 = pneg %p656
        $region98: #{tpu_custom_call.1} parent=11 // pred_check_branch
          %842 = sbr.rel (%p840) target = $region100
        $region99: #{tpu_custom_call.1} parent=11 // pred_region
          _
        $region100: #{tpu_custom_call.1} parent=11 // pred_fallthru
          _
      $region12: #{tpu_custom_call.1} parent=5 // pred_fallthru
        _
      %p843 = scmp.lt.s32.totalorder %s46, 2
      // Predicated region
      $region101: #{tpu_custom_call.1} parent=5 // pred_check
        %p844 = pneg %p843
      $region102: #{tpu_custom_call.1} parent=5 // pred_check_branch
        %846 = sbr.rel (%p844) target = $region104
      $region103: #{tpu_custom_call.1} parent=5 // pred_region
        // Predicated region
        $region105: #{tpu_custom_call.1} parent=103 // pred_check
          %p847 = pneg %p80
        $region106: #{tpu_custom_call.1} parent=103 // pred_check_branch
          %849 = sbr.rel (%p847) target = $region108
        $region107: #{tpu_custom_call.1} parent=103 // pred_region
          %s850 = sand.u32 %s70, 1
          %s851 = scalar_lea.sflag [#allocation3], %s850
          %s852 = sand.u32 %s70, 1
          %s853 = smul.addr %s852, 8
          %s854 = scalar_lea.vmem [#allocation2], %s853
          %s856 = ssub.s32 128, 128
          %857 = vsyncadd %s851, %s856
          %s858 = sadd.s32 %s54, %s53
          %s859 = smul.addr %s858, 128
          %s860 = scalar_lea.hbm %s0, %s859
          %s862 = sshll.u32 %s854, 4
          %s863 = int_to_ptr.vmem [resolvable:$true] %s862
          %865 = dma.hbm_to_vmem [thread:$0]  %s860, 128, %s863, %s851
        $region108: #{tpu_custom_call.1} parent=103 // pred_fallthru
          _
        // Predicated region
        $region109: #{tpu_custom_call.1} parent=103 // pred_check
          %p866 = pneg %p106
        $region110: #{tpu_custom_call.1} parent=103 // pred_check_branch
          %868 = sbr.rel (%p866) target = $region112
        $region111: #{tpu_custom_call.1} parent=103 // pred_region
          %s869 = sand.u32 %s46, 1
          %s870 = scalar_lea.sflag [#allocation6], %s869
          %s871 = sand.u32 %s96, 1
          %s872 = smul.addr %s871, 8
          %s873 = scalar_lea.vmem [#allocation5], %s872
          %s875 = ssub.s32 128, 128
          %876 = vsyncadd %s870, %s875
          %s877 = smul.addr %s53, 128
          %s878 = scalar_lea.hbm %s1, %s877
          %s880 = sshll.u32 %s873, 4
          %s881 = int_to_ptr.vmem [resolvable:$true] %s880
          %883 = dma.hbm_to_vmem [thread:$0]  %s878, 128, %s881, %s870
        $region112: #{tpu_custom_call.1} parent=103 // pred_fallthru
          _
        // Predicated region
        $region113: #{tpu_custom_call.1} parent=103 // pred_check
          %p884 = pneg %p132
        $region114: #{tpu_custom_call.1} parent=103 // pred_check_branch
          %886 = sbr.rel (%p884) target = $region116
        $region115: #{tpu_custom_call.1} parent=103 // pred_region
          %p887 = scmp.lt.s32.totalorder %s53, 1
          %s888 = scalar_select %p887, %s53, 1
          %s889 = smul.addr %s888, 2
          %s890 = smul.addr %s889, 8
          %s891 = scalar_lea.vmem %s2, %s890
        $region116: #{tpu_custom_call.1} parent=103 // pred_fallthru
          _
        // Predicated region
        $region117: #{tpu_custom_call.1} parent=103 // pred_check
          %p892 = pneg %p160
        $region118: #{tpu_custom_call.1} parent=103 // pred_check_branch
          %894 = sbr.rel (%p892) target = $region120
        $region119: #{tpu_custom_call.1} parent=103 // pred_region
          %p895 = scmp.lt.s32.totalorder %s53, 1
          %s896 = scalar_select %p895, %s53, 1
          %p897 = scmp.lt.s32.totalorder %s54, 0
          %s898 = scalar_select %p897, %s54, 0
          %s899 = sadd.s32 %s898, %s896
          %s900 = smul.addr %s899, 2
          %s901 = scalar_lea.vmem %s3, %s900
        $region120: #{tpu_custom_call.1} parent=103 // pred_fallthru
          _
        // Predicated region
        $region121: #{tpu_custom_call.1} parent=103 // pred_check
          %p902 = pneg %p188
        $region122: #{tpu_custom_call.1} parent=103 // pred_check_branch
          %904 = sbr.rel (%p902) target = $region124
        $region123: #{tpu_custom_call.1} parent=103 // pred_region
          %s905 = sand.u32 %s46, 1
          %s906 = scalar_lea.sflag [#allocation6], %s905
          %s907 = sand.u32 %s178, 1
          %s908 = smul.addr %s907, 2
          %s909 = scalar_lea.vmem [#allocation7], %s908
          %s911 = ssub.s32 32, 32
          %912 = vsyncadd %s906, %s911
          %s913 = sadd.s32 %s54, %s53
          %s914 = smul.addr %s913, 32
          %s915 = scalar_lea.hbm %s4, %s914
          %s917 = sshll.u32 %s909, 4
          %s918 = int_to_ptr.vmem [resolvable:$true] %s917
          %920 = dma.hbm_to_vmem [thread:$0]  %s915, 32, %s918, %s906
        $region124: #{tpu_custom_call.1} parent=103 // pred_fallthru
          _
      $region104: #{tpu_custom_call.1} parent=5 // pred_fallthru
        _
      %p921 = scmp.le.s32.totalorder 1, %s46
      %p922 = scmp.lt.s32.totalorder %s46, 3
      %p923 = pnand %p921, %p922
      %p924 = pneg %p923
      // Predicated region
      $region125: #{tpu_custom_call.1} parent=5 // pred_check
        _
      $region126: #{tpu_custom_call.1} parent=5 // pred_check_branch
        %926 = sbr.rel (%p923) target = $region128
      $region127: #{tpu_custom_call.1} parent=5 // pred_region
        %s927 = ssub.s32 %s46, 1
        %s928 = sand.u32 %s73, 1
        %s929 = scalar_lea.sflag [#allocation3], %s928
        %s930 = sand.u32 %s73, 1
        %s931 = smul.addr %s930, 8
        %s932 = scalar_lea.vmem [#allocation2], %s931
        // Predicated region
        $region129: #{tpu_custom_call.1} parent=127 // pred_check
          %p933 = pneg %p86
        $region130: #{tpu_custom_call.1} parent=127 // pred_check_branch
          %935 = sbr.rel (%p933) target = $region132
        $region131: #{tpu_custom_call.1} parent=127 // pred_region
          %936 = dma.done %s929, 128
        $region132: #{tpu_custom_call.1} parent=127 // pred_fallthru
          _
        %s937 = sand.u32 %s51, 1
        %s938 = scalar_lea.sflag [#allocation6], %s937
        %s939 = sand.u32 %s99, 1
        %s940 = smul.addr %s939, 8
        %s941 = scalar_lea.vmem [#allocation5], %s940
        // Predicated region
        $region133: #{tpu_custom_call.1} parent=127 // pred_check
          %p942 = pneg %p112
        $region134: #{tpu_custom_call.1} parent=127 // pred_check_branch
          %944 = sbr.rel (%p942) target = $region136
        $region135: #{tpu_custom_call.1} parent=127 // pred_region
          %945 = dma.done %s938, 128
        $region136: #{tpu_custom_call.1} parent=127 // pred_fallthru
          _
        %s946 = sand.u32 %s51, 1
        %s947 = scalar_lea.sflag [#allocation6], %s946
        %s948 = sand.u32 %s181, 1
        %s949 = smul.addr %s948, 2
        %s950 = scalar_lea.vmem [#allocation7], %s949
        // Predicated region
        $region137: #{tpu_custom_call.1} parent=127 // pred_check
          %p951 = pneg %p194
        $region138: #{tpu_custom_call.1} parent=127 // pred_check_branch
          %953 = sbr.rel (%p951) target = $region140
        $region139: #{tpu_custom_call.1} parent=127 // pred_region
          %954 = dma.done %s947, 32
        $region140: #{tpu_custom_call.1} parent=127 // pred_fallthru
          _
        // Predicated region
        $region141: #{tpu_custom_call.1} parent=127 // pred_check
          %p955 = pneg %p236
        $region142: #{tpu_custom_call.1} parent=127 // pred_check_branch
          %957 = sbr.rel (%p955) target = $region144
        $region143: #{tpu_custom_call.1} parent=127 // pred_region
          %958 = dma.done [#allocation9], 16
        $region144: #{tpu_custom_call.1} parent=127 // pred_fallthru
          _
        // Predicated region
        $region145: #{tpu_custom_call.1} parent=127 // pred_check
          %p959 = pneg %p257
        $region146: #{tpu_custom_call.1} parent=127 // pred_check_branch
          %961 = sbr.rel (%p959) target = $region148
        $region147: #{tpu_custom_call.1} parent=127 // pred_region
          %962 = dma.done [#allocation9], 2048
        $region148: #{tpu_custom_call.1} parent=127 // pred_fallthru
          _
        // Predicated region
        $region149: #{tpu_custom_call.1} parent=127 // pred_check
          %p963 = pneg %p299
        $region150: #{tpu_custom_call.1} parent=127 // pred_check_branch
          %965 = sbr.rel (%p963) target = $region152
        $region151: #{tpu_custom_call.1} parent=127 // pred_region
          %966 = dma.done [#allocation12], 1024
        $region152: #{tpu_custom_call.1} parent=127 // pred_fallthru
          _
        // Predicated region
        $region153: #{tpu_custom_call.1} parent=127 // pred_check
          %p967 = pneg %p341
        $region154: #{tpu_custom_call.1} parent=127 // pred_check_branch
          %969 = sbr.rel (%p967) target = $region156
        $region155: #{tpu_custom_call.1} parent=127 // pred_region
          %970 = dma.done [#allocation12], 1024
        $region156: #{tpu_custom_call.1} parent=127 // pred_fallthru
          _
        // Predicated region
        $region157: #{tpu_custom_call.1} parent=127 // pred_check
          %p971 = pneg %p383
        $region158: #{tpu_custom_call.1} parent=127 // pred_check_branch
          %973 = sbr.rel (%p971) target = $region160
        $region159: #{tpu_custom_call.1} parent=127 // pred_region
          %974 = dma.done [#allocation15], 2048
        $region160: #{tpu_custom_call.1} parent=127 // pred_fallthru
          _
        // Predicated region
        $region161: #{tpu_custom_call.1} parent=127 // pred_check
          %p975 = pneg %p425
        $region162: #{tpu_custom_call.1} parent=127 // pred_check_branch
          %977 = sbr.rel (%p975) target = $region164
        $region163: #{tpu_custom_call.1} parent=127 // pred_region
          %978 = dma.done [#allocation15], 1024
        $region164: #{tpu_custom_call.1} parent=127 // pred_fallthru
          _
        // Predicated region
        $region165: #{tpu_custom_call.1} parent=127 // pred_check
          %p979 = pneg %p467
        $region166: #{tpu_custom_call.1} parent=127 // pred_check_branch
          %981 = sbr.rel (%p979) target = $region168
        $region167: #{tpu_custom_call.1} parent=127 // pred_region
          %982 = dma.done [#allocation18], 2048
        $region168: #{tpu_custom_call.1} parent=127 // pred_fallthru
          _
        // Predicated region
        $region169: #{tpu_custom_call.1} parent=127 // pred_check
          %p983 = pneg %p509
        $region170: #{tpu_custom_call.1} parent=127 // pred_check_branch
          %985 = sbr.rel (%p983) target = $region172
        $region171: #{tpu_custom_call.1} parent=127 // pred_region
          %986 = dma.done [#allocation18], 2048
        $region172: #{tpu_custom_call.1} parent=127 // pred_fallthru
          _
        %s987 = sand.u32 %s73, 1
        %s988 = scalar_lea.sflag [#allocation3], %s987
        %s989 = sand.u32 %s73, 1
        %s990 = smul.addr %s989, 8
        %s991 = scalar_lea.vmem [#allocation2], %s990
        %p992 = pneg %p86
        %p993 = pneg %p83
        %s994 = sand.u32 %s51, 1
        %s995 = scalar_lea.sflag [#allocation6], %s994
        %s996 = sand.u32 %s99, 1
        %s997 = smul.addr %s996, 8
        %s998 = scalar_lea.vmem [#allocation5], %s997
        %p999 = pneg %p112
        %p1000 = pneg %p109
        %p1001 = scmp.lt.s32.totalorder %s55, 1
        %s1002 = scalar_select %p1001, %s55, 1
        %s1003 = smul.addr %s1002, 2
        %s1004 = smul.addr %s1003, 8
        %s1005 = scalar_lea.vmem %s2, %s1004
        %p1006 = pneg %p138
        %p1007 = pneg %p135
        %p1008 = scmp.lt.s32.totalorder %s55, 1
        %s1009 = scalar_select %p1008, %s55, 1
        %p1010 = scmp.lt.s32.totalorder %s56, 0
        %s1011 = scalar_select %p1010, %s56, 0
        %s1012 = sadd.s32 %s1011, %s1009
        %s1013 = smul.addr %s1012, 2
        %s1014 = scalar_lea.vmem %s3, %s1013
        %p1015 = pneg %p166
        %p1016 = pneg %p163
        %s1017 = sand.u32 %s51, 1
        %s1018 = scalar_lea.sflag [#allocation6], %s1017
        %s1019 = sand.u32 %s181, 1
        %s1020 = smul.addr %s1019, 2
        %s1021 = scalar_lea.vmem [#allocation7], %s1020
        %p1022 = pneg %p194
        %p1023 = pneg %p191
        %p1024 = pneg %p215
        %p1025 = pneg %p212
        %p1026 = pneg %p236
        %p1027 = pneg %p233
        %p1028 = pneg %p257
        %p1029 = pneg %p254
        %p1030 = pneg %p278
        %p1031 = pneg %p275
        %p1032 = pneg %p299
        %p1033 = pneg %p296
        %p1034 = pneg %p320
        %p1035 = pneg %p317
        %p1036 = pneg %p341
        %p1037 = pneg %p338
        %p1038 = pneg %p362
        %p1039 = pneg %p359
        %p1040 = pneg %p383
        %p1041 = pneg %p380
        %p1042 = pneg %p404
        %p1043 = pneg %p401
        %p1044 = pneg %p425
        %p1045 = pneg %p422
        %p1046 = pneg %p446
        %p1047 = pneg %p443
        %p1048 = pneg %p467
        %p1049 = pneg %p464
        %p1050 = pneg %p488
        %p1051 = pneg %p485
        %p1052 = pneg %p509
        %p1053 = pneg %p506
        %p1054 = pneg %p530
        %p1055 = pneg %p527
        %p1056 = pneg %p551
        %p1057 = pneg %p548
        %p1058 = pneg %p572
        %p1059 = pneg %p569
        %p1060 = pneg %p593
        %p1061 = pneg %p590
        %p1062 = pneg %p614
        %p1063 = pneg %p611
        %p1064 = pneg %p635
        %p1065 = pneg %p632
        %p1066 = pneg %p656
        %p1067 = pneg %p653
        %p1068 = pneg %p684
        %p1069 = pneg %p681
        %s1070 = sand.u32 %s671, 1
        %s1071 = scalar_lea.sflag [#allocation4], %s1070
        %s1072 = sand.u32 %s671, 1
        %s1073 = smul.addr %s1072, 8
        %s1074 = scalar_lea.vmem [#allocation20], %s1073
        %p1075 = scmp.lt.s32.totalorder %s55, 1
        %s1076 = scalar_select %p1075, %s55, 1
        %s1077 = smul.addr %s1076, 2
        %s1078 = smul.addr %s1077, 8
        %s1079 = scalar_lea.vmem %s2, %s1078
        %p1080 = scmp.lt.s32.totalorder %s55, 1
        %s1081 = scalar_select %p1080, %s55, 1
        %p1082 = scmp.lt.s32.totalorder %s56, 0
        %s1083 = scalar_select %p1082, %s56, 0
        %s1084 = sadd.s32 %s1083, %s1081
        %s1085 = smul.addr %s1084, 2
        %s1086 = scalar_lea.vmem %s3, %s1085
        %v1090 = vld [vmem:[%s932] sm:$0xff]
        %v1091 = vld [vmem:[%s941] sm:$0xff]
        %v1092 = vld [vmem:[%s1079] sm:$0xff]
        %v1093 = vld [vmem:[%s1079 + $0x8] sm:$0x3]
        %v1094 = vld [vmem:[%s1086] sm:$0x3]
        %v1095 = vld [vmem:[%s950] sm:$0x3]
        %v1096 = vpack.c.bf16 %v1090, %v1090
        %v1097 = vld [vmem:[%s5] sm:$0xf]
        %v1098 = vld [vmem:[%s5 + $0x4] sm:$0xf]
        %v1099 = vld [vmem:[%s5 + $0x8] sm:$0xf]
        %v1100 = vld [vmem:[%s5 + $0xc] sm:$0xf]
        %v1101 = vld [vmem:[%s5 + $0x10] sm:$0xf]
        %v1102 = vld [vmem:[%s5 + $0x14] sm:$0xf]
        %v1103 = vld [vmem:[%s5 + $0x18] sm:$0xf]
        %v1104 = vld [vmem:[%s5 + $0x1c] sm:$0xf]
        %v1105 = vld [vmem:[%s5 + $0x20] sm:$0xf]
        %v1106 = vld [vmem:[%s5 + $0x24] sm:$0xf]
        %v1107 = vld [vmem:[%s5 + $0x28] sm:$0xf]
        %v1108 = vld [vmem:[%s5 + $0x2c] sm:$0xf]
        %v1109 = vld [vmem:[%s5 + $0x30] sm:$0xf]
        %v1110 = vld [vmem:[%s5 + $0x34] sm:$0xf]
        %v1111 = vld [vmem:[%s5 + $0x38] sm:$0xf]
        %v1112 = vld [vmem:[%s5 + $0x3c] sm:$0xf]
        %v1113 = vld [vmem:[#allocation8] sm:$0x1]
        %v1115 = vlaneseq
        %v1116 = vshrl.u32 %v1115, 7
        %v1117 = vsub.s32 0, %v1116
        %v1118 = vrot.slane %v1113, %v1117
        %v1136 = vunpack.c.l.b16 %v1097
        %v1137 = vunpack.c.l.b16 %v1098
        %v1138 = vunpack.c.l.b16 %v1099
        %v1139 = vunpack.c.l.b16 %v1100
        %v1140 = vunpack.c.l.b16 %v1101
        %v1141 = vunpack.c.l.b16 %v1102
        %v1142 = vunpack.c.l.b16 %v1103
        %v1143 = vunpack.c.l.b16 %v1104
        %v1144 = vunpack.c.l.b16 %v1105
        %v1145 = vunpack.c.l.b16 %v1106
        %v1146 = vunpack.c.l.b16 %v1107
        %v1147 = vunpack.c.l.b16 %v1108
        %v1148 = vunpack.c.l.b16 %v1109
        %v1149 = vunpack.c.l.b16 %v1110
        %v1150 = vunpack.c.l.b16 %v1111
        %v1151 = vunpack.c.l.b16 %v1112
        %v1152 = vpack.c.b16 %v1137, %v1136
        %v1153 = vpack.c.b16 %v1139, %v1138
        %v1154 = vpack.c.b16 %v1141, %v1140
        %v1155 = vpack.c.b16 %v1143, %v1142
        %v1156 = vpack.c.b16 %v1145, %v1144
        %v1157 = vpack.c.b16 %v1147, %v1146
        %v1158 = vpack.c.b16 %v1149, %v1148
        %v1159 = vpack.c.b16 %v1151, %v1150
        %1168 = vmatprep.subr.bf16.mxu0 0
        %1169 = vmatpush1.bf16.msra.mxu0 %v1152
        %1170 = vmatprep.subr.bf16.mxu0 0
        %1171 = vmatpush1.bf16.msra.mxu0 %v1153
        %1172 = vmatprep.subr.bf16.mxu0 0
        %1173 = vmatpush1.bf16.msra.mxu0 %v1154
        %1174 = vmatprep.subr.bf16.mxu0 0
        %1175 = vmatpush1.bf16.msra.mxu0 %v1155
        %1176 = vmatprep.subr.bf16.mxu0 0
        %1177 = vmatpush1.bf16.msra.mxu0 %v1156
        %1178 = vmatprep.subr.bf16.mxu0 0
        %1179 = vmatpush1.bf16.msra.mxu0 %v1157
        %1180 = vmatprep.subr.bf16.mxu0 0
        %1181 = vmatpush1.bf16.msra.mxu0 %v1158
        %1182 = vmatprep.subr.bf16.mxu0 0
        %1183 = vmatpush1.bf16.msra.mxu0 %v1159
        %1184 = vmatprep.subr.bf16.mxu0 0
        %1185 = vmatpush1.bf16.msra.mxu0 0
        %1186 = vmatprep.subr.bf16.mxu0 0
        %1187 = vmatpush1.bf16.msra.mxu0 0
        %1188 = vmatprep.subr.bf16.mxu0 0
        %1189 = vmatpush1.bf16.msra.mxu0 0
        %1190 = vmatprep.subr.bf16.mxu0 0
        %1191 = vmatpush1.bf16.msra.mxu0 0
        %1192 = vmatprep.subr.bf16.mxu0 0
        %1193 = vmatpush1.bf16.msra.mxu0 0
        %1194 = vmatprep.subr.bf16.mxu0 0
        %1195 = vmatpush1.bf16.msra.mxu0 0
        %1196 = vmatprep.subr.bf16.mxu0 0
        %1197 = vmatpush1.bf16.msra.mxu0 0
        %1198 = vmatprep.subr.bf16.mxu0 0
        %1199 = vmatpush1.bf16.msra.mxu0 0
        %1200 = vmatprep.mubr.bf16.mxu0 0
        %1201 = vmatmul.mubr.bf16.gmra.mrb[0].mxu0 %v1096
        %v1202 = vpop.f32.mrb[0].mxu0
        %v1203 = vadd.f32 %v1118, %v1202
        %v1204 = vpop.f32.mrb[0].mxu0
        %v1205 = vpop.f32.mrb[0].mxu0
        %v1206 = vpop.f32.mrb[0].mxu0
        %1207 = vdwg.mxu0
        %v1208 = vpack.c.bf16 %v1091, %v1091
        %v1209 = vld [vmem:[#allocation10] sm:$0xff]
        %v1210 = vld [vmem:[#allocation10 + $0x8] sm:$0xff]
        %v1211 = vld [vmem:[#allocation10 + $0x10] sm:$0xff]
        %v1212 = vld [vmem:[#allocation10 + $0x18] sm:$0xff]
        %v1213 = vld [vmem:[#allocation10 + $0x20] sm:$0xff]
        %v1214 = vld [vmem:[#allocation10 + $0x28] sm:$0xff]
        %v1215 = vld [vmem:[#allocation10 + $0x30] sm:$0xff]
        %v1216 = vld [vmem:[#allocation10 + $0x38] sm:$0xff]
        %v1217 = vld [vmem:[#allocation10 + $0x40] sm:$0xff]
        %v1218 = vld [vmem:[#allocation10 + $0x48] sm:$0xff]
        %v1219 = vld [vmem:[#allocation10 + $0x50] sm:$0xff]
        %v1220 = vld [vmem:[#allocation10 + $0x58] sm:$0xff]
        %v1221 = vld [vmem:[#allocation10 + $0x60] sm:$0xff]
        %v1222 = vld [vmem:[#allocation10 + $0x68] sm:$0xff]
        %v1223 = vld [vmem:[#allocation10 + $0x70] sm:$0xff]
        %v1224 = vld [vmem:[#allocation10 + $0x78] sm:$0xff]
        %v1225 = vld [vmem:[%s8] sm:$0x3]
        %v1227 = vlaneseq
        %v1228 = vshrl.u32 %v1227, 7
        %v1229 = vsub.s32 0, %v1228
        %v1230 = vrot.slane %v1225, %v1229
        %v1231 = vlaneseq
        %v1232 = vshrl.u32 %v1231, 7
        %v1233 = vsub.s32 1, %v1232
        %v1234 = vrot.slane %v1225, %v1233
        %v1253 = vunpack.c.l.b16 %v1209
        %v1254 = vunpack.c.h.b16 %v1209
        %v1255 = vunpack.c.l.b16 %v1210
        %v1256 = vunpack.c.h.b16 %v1210
        %v1257 = vunpack.c.l.b16 %v1211
        %v1258 = vunpack.c.h.b16 %v1211
        %v1259 = vunpack.c.l.b16 %v1212
        %v1260 = vunpack.c.h.b16 %v1212
        %v1261 = vunpack.c.l.b16 %v1213
        %v1262 = vunpack.c.h.b16 %v1213
        %v1263 = vunpack.c.l.b16 %v1214
        %v1264 = vunpack.c.h.b16 %v1214
        %v1265 = vunpack.c.l.b16 %v1215
        %v1266 = vunpack.c.h.b16 %v1215
        %v1267 = vunpack.c.l.b16 %v1216
        %v1268 = vunpack.c.h.b16 %v1216
        %v1269 = vunpack.c.l.b16 %v1217
        %v1270 = vunpack.c.h.b16 %v1217
        %v1271 = vunpack.c.l.b16 %v1218
        %v1272 = vunpack.c.h.b16 %v1218
        %v1273 = vunpack.c.l.b16 %v1219
        %v1274 = vunpack.c.h.b16 %v1219
        %v1275 = vunpack.c.l.b16 %v1220
        %v1276 = vunpack.c.h.b16 %v1220
        %v1277 = vunpack.c.l.b16 %v1221
        %v1278 = vunpack.c.h.b16 %v1221
        %v1279 = vunpack.c.l.b16 %v1222
        %v1280 = vunpack.c.h.b16 %v1222
        %v1281 = vunpack.c.l.b16 %v1223
        %v1282 = vunpack.c.h.b16 %v1223
        %v1283 = vunpack.c.l.b16 %v1224
        %v1284 = vunpack.c.h.b16 %v1224
        %v1285 = vpack.c.b16 %v1255, %v1253
        %v1286 = vpack.c.b16 %v1256, %v1254
        %v1287 = vpack.c.b16 %v1259, %v1257
        %v1288 = vpack.c.b16 %v1260, %v1258
        %v1289 = vpack.c.b16 %v1263, %v1261
        %v1290 = vpack.c.b16 %v1264, %v1262
        %v1291 = vpack.c.b16 %v1267, %v1265
        %v1292 = vpack.c.b16 %v1268, %v1266
        %v1293 = vpack.c.b16 %v1271, %v1269
        %v1294 = vpack.c.b16 %v1272, %v1270
        %v1295 = vpack.c.b16 %v1275, %v1273
        %v1296 = vpack.c.b16 %v1276, %v1274
        %v1297 = vpack.c.b16 %v1279, %v1277
        %v1298 = vpack.c.b16 %v1280, %v1278
        %v1299 = vpack.c.b16 %v1283, %v1281
        %v1300 = vpack.c.b16 %v1284, %v1282
        %1317 = vmatprep.subr.bf16.mxu0 %v1286
        %1318 = vmatpush1.bf16.msra.mxu0 %v1285
        %1319 = vmatprep.subr.bf16.mxu0 %v1288
        %1320 = vmatpush1.bf16.msra.mxu0 %v1287
        %1321 = vmatprep.subr.bf16.mxu0 %v1290
        %1322 = vmatpush1.bf16.msra.mxu0 %v1289
        %1323 = vmatprep.subr.bf16.mxu0 %v1292
        %1324 = vmatpush1.bf16.msra.mxu0 %v1291
        %1325 = vmatprep.subr.bf16.mxu0 %v1294
        %1326 = vmatpush1.bf16.msra.mxu0 %v1293
        %1327 = vmatprep.subr.bf16.mxu0 %v1296
        %1328 = vmatpush1.bf16.msra.mxu0 %v1295
        %1329 = vmatprep.subr.bf16.mxu0 %v1298
        %1330 = vmatpush1.bf16.msra.mxu0 %v1297
        %1331 = vmatprep.subr.bf16.mxu0 %v1300
        %1332 = vmatpush1.bf16.msra.mxu0 %v1299
        %1333 = vmatprep.subr.bf16.mxu0 0
        %1334 = vmatpush1.bf16.msra.mxu0 0
        %1335 = vmatprep.subr.bf16.mxu0 0
        %1336 = vmatpush1.bf16.msra.mxu0 0
        %1337 = vmatprep.subr.bf16.mxu0 0
        %1338 = vmatpush1.bf16.msra.mxu0 0
        %1339 = vmatprep.subr.bf16.mxu0 0
        %1340 = vmatpush1.bf16.msra.mxu0 0
        %1341 = vmatprep.subr.bf16.mxu0 0
        %1342 = vmatpush1.bf16.msra.mxu0 0
        %1343 = vmatprep.subr.bf16.mxu0 0
        %1344 = vmatpush1.bf16.msra.mxu0 0
        %1345 = vmatprep.subr.bf16.mxu0 0
        %1346 = vmatpush1.bf16.msra.mxu0 0
        %1347 = vmatprep.subr.bf16.mxu0 0
        %1348 = vmatpush1.bf16.msra.mxu0 0
        %1349 = vmatprep.mubr.bf16.mxu0 0
        %1350 = vmatmul.mubr.bf16.gmra.mrb[0].mxu0 %v1208
        %v1351 = vpop.f32.mrb[0].mxu0
        %v1352 = vadd.f32 %v1230, %v1351
        %v1353 = vpop.f32.mrb[0].mxu0
        %v1354 = vadd.f32 %v1234, %v1353
        %v1355 = vpop.f32.mrb[0].mxu0
        %v1356 = vpop.f32.mrb[0].mxu0
        %1357 = vdwg.mxu0
        %1359 = vrot.lane.b32.xlu0 %v1203, 96
        %v1360 = vpop.permute.xlu0 %1359
        %1362 = vrot.lane.b32.xlu0 %v1203, 64
        %v1363 = vpop.permute.xlu0 %1362
        %1365 = vrot.lane.b32.xlu0 %v1203, 32
        %v1366 = vpop.permute.xlu0 %1365
        %v1368 = vpack.c.bf16 %v1203, %v1203
        %v1369 = vpack.c.bf16 %v1360, %v1360
        %v1370 = vpack.c.bf16 %v1363, %v1363
        %v1371 = vpack.c.bf16 %v1366, %v1366
        %1373 = vrot.lane.b32.xlu0 %v1352, 96
        %v1374 = vpop.permute.xlu0 %1373
        %1376 = vrot.lane.b32.xlu0 %v1352, 64
        %v1377 = vpop.permute.xlu0 %1376
        %1379 = vrot.lane.b32.xlu0 %v1352, 32
        %v1380 = vpop.permute.xlu0 %1379
        %v1382 = vpack.c.bf16 %v1352, %v1352
        %v1383 = vpack.c.bf16 %v1374, %v1374
        %v1384 = vpack.c.bf16 %v1377, %v1377
        %v1385 = vpack.c.bf16 %v1380, %v1380
        %1387 = vrot.lane.b32.xlu0 %v1354, 96
        %v1388 = vpop.permute.xlu0 %1387
        %1390 = vrot.lane.b32.xlu0 %v1354, 64
        %v1391 = vpop.permute.xlu0 %1390
        %1393 = vrot.lane.b32.xlu0 %v1354, 32
        %v1394 = vpop.permute.xlu0 %1393
        %v1396 = vpack.c.bf16 %v1354, %v1354
        %v1397 = vpack.c.bf16 %v1388, %v1388
        %v1398 = vpack.c.bf16 %v1391, %v1391
        %v1399 = vpack.c.bf16 %v1394, %v1394
        %vm1400 = vcmask 261120
        %v1402 = vsel %vm1400, %v1368, 0
        %v1405 = vsel %vm1400, %v1382, 0
        %1407 = vmatprep.subr.bf16.mxu0 0
        %1408 = vmatpush1.bf16.xpose.msra.mxu0 %v1405
        %1409 = vmatprep.subr.bf16.mxu0 0
        %1410 = vmatpush1.bf16.xpose.msra.mxu0 0
        %1411 = vmatprep.subr.bf16.mxu0 0
        %1412 = vmatpush1.bf16.xpose.msra.mxu0 0
        %1413 = vmatprep.subr.bf16.mxu0 0
        %1414 = vmatpush1.bf16.xpose.msra.mxu0 0
        %1415 = vmatprep.subr.bf16.mxu0 0
        %1416 = vmatpush1.bf16.xpose.msra.mxu0 0
        %1417 = vmatprep.subr.bf16.mxu0 0
        %1418 = vmatpush1.bf16.xpose.msra.mxu0 0
        %1419 = vmatprep.subr.bf16.mxu0 0
        %1420 = vmatpush1.bf16.xpose.msra.mxu0 0
        %1421 = vmatprep.subr.bf16.mxu0 0
        %1422 = vmatpush1.bf16.xpose.msra.mxu0 0
        %1423 = vmatprep.subr.bf16.mxu0 0
        %1424 = vmatpush1.bf16.xpose.msra.mxu0 0
        %1425 = vmatprep.subr.bf16.mxu0 0
        %1426 = vmatpush1.bf16.xpose.msra.mxu0 0
        %1427 = vmatprep.subr.bf16.mxu0 0
        %1428 = vmatpush1.bf16.xpose.msra.mxu0 0
        %1429 = vmatprep.subr.bf16.mxu0 0
        %1430 = vmatpush1.bf16.xpose.msra.mxu0 0
        %1431 = vmatprep.subr.bf16.mxu0 0
        %1432 = vmatpush1.bf16.xpose.msra.mxu0 0
        %1433 = vmatprep.subr.bf16.mxu0 0
        %1434 = vmatpush1.bf16.xpose.msra.mxu0 0
        %1435 = vmatprep.subr.bf16.mxu0 0
        %1436 = vmatpush1.bf16.xpose.msra.mxu0 0
        %1437 = vmatprep.subr.bf16.mxu0 0
        %1438 = vmatpush1.bf16.xpose.msra.mxu0 0
        %1439 = vmatprep.mubr.bf16.mxu0 0
        %1440 = vmatmul.mubr.bf16.gmra.mrb[0].mxu0 %v1402
        %v1441 = vpop.f32.mrb[0].mxu0
        %v1442 = vadd.f32 0.0, %v1441
        %v1443 = vpop.f32.mrb[0].mxu0
        %v1444 = vpop.f32.mrb[0].mxu0
        %v1445 = vpop.f32.mrb[0].mxu0
        %1446 = vdwg.mxu0
        %v1448 = vsel %vm1400, %v1369, 0
        %v1451 = vsel %vm1400, %v1383, 0
        %1453 = vmatprep.subr.bf16.mxu0 0
        %1454 = vmatpush1.bf16.xpose.msra.mxu0 %v1451
        %1455 = vmatprep.subr.bf16.mxu0 0
        %1456 = vmatpush1.bf16.xpose.msra.mxu0 0
        %1457 = vmatprep.subr.bf16.mxu0 0
        %1458 = vmatpush1.bf16.xpose.msra.mxu0 0
        %1459 = vmatprep.subr.bf16.mxu0 0
        %1460 = vmatpush1.bf16.xpose.msra.mxu0 0
        %1461 = vmatprep.subr.bf16.mxu0 0
        %1462 = vmatpush1.bf16.xpose.msra.mxu0 0
        %1463 = vmatprep.subr.bf16.mxu0 0
        %1464 = vmatpush1.bf16.xpose.msra.mxu0 0
        %1465 = vmatprep.subr.bf16.mxu0 0
        %1466 = vmatpush1.bf16.xpose.msra.mxu0 0
        %1467 = vmatprep.subr.bf16.mxu0 0
        %1468 = vmatpush1.bf16.xpose.msra.mxu0 0
        %1469 = vmatprep.subr.bf16.mxu0 0
        %1470 = vmatpush1.bf16.xpose.msra.mxu0 0
        %1471 = vmatprep.subr.bf16.mxu0 0
        %1472 = vmatpush1.bf16.xpose.msra.mxu0 0
        %1473 = vmatprep.subr.bf16.mxu0 0
        %1474 = vmatpush1.bf16.xpose.msra.mxu0 0
        %1475 = vmatprep.subr.bf16.mxu0 0
        %1476 = vmatpush1.bf16.xpose.msra.mxu0 0
        %1477 = vmatprep.subr.bf16.mxu0 0
        %1478 = vmatpush1.bf16.xpose.msra.mxu0 0
        %1479 = vmatprep.subr.bf16.mxu0 0
        %1480 = vmatpush1.bf16.xpose.msra.mxu0 0
        %1481 = vmatprep.subr.bf16.mxu0 0
        %1482 = vmatpush1.bf16.xpose.msra.mxu0 0
        %1483 = vmatprep.subr.bf16.mxu0 0
        %1484 = vmatpush1.bf16.xpose.msra.mxu0 0
        %1485 = vmatprep.mubr.bf16.mxu0 0
        %1486 = vmatmul.mubr.bf16.gmra.mrb[0].mxu0 %v1448
        %v1487 = vpop.f32.mrb[0].mxu0
        %v1488 = vadd.f32 0.0, %v1487
        %v1489 = vpop.f32.mrb[0].mxu0
        %v1490 = vpop.f32.mrb[0].mxu0
        %v1491 = vpop.f32.mrb[0].mxu0
        %1492 = vdwg.mxu0
        %v1494 = vsel %vm1400, %v1370, 0
        %v1497 = vsel %vm1400, %v1384, 0
        %1499 = vmatprep.subr.bf16.mxu0 0
        %1500 = vmatpush1.bf16.xpose.msra.mxu0 %v1497
        %1501 = vmatprep.subr.bf16.mxu0 0
        %1502 = vmatpush1.bf16.xpose.msra.mxu0 0
        %1503 = vmatprep.subr.bf16.mxu0 0
        %1504 = vmatpush1.bf16.xpose.msra.mxu0 0
        %1505 = vmatprep.subr.bf16.mxu0 0
        %1506 = vmatpush1.bf16.xpose.msra.mxu0 0
        %1507 = vmatprep.subr.bf16.mxu0 0
        %1508 = vmatpush1.bf16.xpose.msra.mxu0 0
        %1509 = vmatprep.subr.bf16.mxu0 0
        %1510 = vmatpush1.bf16.xpose.msra.mxu0 0
        %1511 = vmatprep.subr.bf16.mxu0 0
        %1512 = vmatpush1.bf16.xpose.msra.mxu0 0
        %1513 = vmatprep.subr.bf16.mxu0 0
        %1514 = vmatpush1.bf16.xpose.msra.mxu0 0
        %1515 = vmatprep.subr.bf16.mxu0 0
        %1516 = vmatpush1.bf16.xpose.msra.mxu0 0
        %1517 = vmatprep.subr.bf16.mxu0 0
        %1518 = vmatpush1.bf16.xpose.msra.mxu0 0
        %1519 = vmatprep.subr.bf16.mxu0 0
        %1520 = vmatpush1.bf16.xpose.msra.mxu0 0
        %1521 = vmatprep.subr.bf16.mxu0 0
        %1522 = vmatpush1.bf16.xpose.msra.mxu0 0
        %1523 = vmatprep.subr.bf16.mxu0 0
        %1524 = vmatpush1.bf16.xpose.msra.mxu0 0
        %1525 = vmatprep.subr.bf16.mxu0 0
        %1526 = vmatpush1.bf16.xpose.msra.mxu0 0
        %1527 = vmatprep.subr.bf16.mxu0 0
        %1528 = vmatpush1.bf16.xpose.msra.mxu0 0
        %1529 = vmatprep.subr.bf16.mxu0 0
        %1530 = vmatpush1.bf16.xpose.msra.mxu0 0
        %1531 = vmatprep.mubr.bf16.mxu0 0
        %1532 = vmatmul.mubr.bf16.gmra.mrb[0].mxu0 %v1494
        %v1533 = vpop.f32.mrb[0].mxu0
        %v1534 = vadd.f32 0.0, %v1533
        %v1535 = vpop.f32.mrb[0].mxu0
        %v1536 = vpop.f32.mrb[0].mxu0
        %v1537 = vpop.f32.mrb[0].mxu0
        %1538 = vdwg.mxu0
        %v1540 = vsel %vm1400, %v1371, 0
        %v1543 = vsel %vm1400, %v1385, 0
        %1545 = vmatprep.subr.bf16.mxu0 0
        %1546 = vmatpush1.bf16.xpose.msra.mxu0 %v1543
        %1547 = vmatprep.subr.bf16.mxu0 0
        %1548 = vmatpush1.bf16.xpose.msra.mxu0 0
        %1549 = vmatprep.subr.bf16.mxu0 0
        %1550 = vmatpush1.bf16.xpose.msra.mxu0 0
        %1551 = vmatprep.subr.bf16.mxu0 0
        %1552 = vmatpush1.bf16.xpose.msra.mxu0 0
        %1553 = vmatprep.subr.bf16.mxu0 0
        %1554 = vmatpush1.bf16.xpose.msra.mxu0 0
        %1555 = vmatprep.subr.bf16.mxu0 0
        %1556 = vmatpush1.bf16.xpose.msra.mxu0 0
        %1557 = vmatprep.subr.bf16.mxu0 0
        %1558 = vmatpush1.bf16.xpose.msra.mxu0 0
        %1559 = vmatprep.subr.bf16.mxu0 0
        %1560 = vmatpush1.bf16.xpose.msra.mxu0 0
        %1561 = vmatprep.subr.bf16.mxu0 0
        %1562 = vmatpush1.bf16.xpose.msra.mxu0 0
        %1563 = vmatprep.subr.bf16.mxu0 0
        %1564 = vmatpush1.bf16.xpose.msra.mxu0 0
        %1565 = vmatprep.subr.bf16.mxu0 0
        %1566 = vmatpush1.bf16.xpose.msra.mxu0 0
        %1567 = vmatprep.subr.bf16.mxu0 0
        %1568 = vmatpush1.bf16.xpose.msra.mxu0 0
        %1569 = vmatprep.subr.bf16.mxu0 0
        %1570 = vmatpush1.bf16.xpose.msra.mxu0 0
        %1571 = vmatprep.subr.bf16.mxu0 0
        %1572 = vmatpush1.bf16.xpose.msra.mxu0 0
        %1573 = vmatprep.subr.bf16.mxu0 0
        %1574 = vmatpush1.bf16.xpose.msra.mxu0 0
        %1575 = vmatprep.subr.bf16.mxu0 0
        %1576 = vmatpush1.bf16.xpose.msra.mxu0 0
        %1577 = vmatprep.mubr.bf16.mxu0 0
        %1578 = vmatmul.mubr.bf16.gmra.mrb[0].mxu0 %v1540
        %v1579 = vpop.f32.mrb[0].mxu0
        %v1580 = vadd.f32 0.0, %v1579
        %v1581 = vpop.f32.mrb[0].mxu0
        %v1582 = vpop.f32.mrb[0].mxu0
        %v1583 = vpop.f32.mrb[0].mxu0
        %1584 = vdwg.mxu0
        %v1585 = vmul.f32 %v1442, 0.17677669
        %v1586 = vmul.f32 %v1488, 0.17677669
        %v1587 = vmul.f32 %v1534, 0.17677669
        %v1588 = vmul.f32 %v1580, 0.17677669
        %vm1589 = vnez %v1094
        %v1590 = vsel %vm1589, 16843009, 0
        %v1591 = vunpack.c.0.s8 %v1590
        %vm1592 = vcmp.ne.s32.totalorder %v1591, 0
        %v1593 = vsel %vm1592, 1, 0
        %vm1594 = vcmp.eq.s32.totalorder %v1593, 1
        %v1595 = vsel %vm1594, %v1585, -1e+20
        %v1596 = vsel %vm1594, %v1586, -1e+20
        %v1597 = vsel %vm1594, %v1587, -1e+20
        %v1598 = vsel %vm1594, %v1588, -1e+20
        %vm1599 = vcmask 64512
        %v1600 = vsel %vm1599, %v1595, -inf
        %1601 = vmax.xlane.f32.xlu0 %v1600
        %v1602 = vpop.xlane.xlu0 %1601
        %v1603 = vsel %vm1599, %v1596, -inf
        %1604 = vmax.xlane.f32.xlu0 %v1603
        %v1605 = vpop.xlane.xlu0 %1604
        %v1606 = vsel %vm1599, %v1597, -inf
        %1607 = vmax.xlane.f32.xlu0 %v1606
        %v1608 = vpop.xlane.xlu0 %1607
        %v1609 = vsel %vm1599, %v1598, -inf
        %1610 = vmax.xlane.f32.xlu0 %v1609
        %v1611 = vpop.xlane.xlu0 %1610
        %v1612 = vsub.f32 %v1595, %v1602
        %v1613 = vsub.f32 %v1596, %v1605
        %v1614 = vsub.f32 %v1597, %v1608
        %v1615 = vsub.f32 %v1598, %v1611
        %v1616 = vmul.f32 %v1612, 1.442695
        %v1617 = vpow.pop %v1616
        %v1618 = vmul.f32 %v1613, 1.442695
        %v1619 = vpow.pop %v1618
        %v1620 = vmul.f32 %v1614, 1.442695
        %v1621 = vpow.pop %v1620
        %v1622 = vmul.f32 %v1615, 1.442695
        %v1623 = vpow.pop %v1622
        %v1624 = vsel %vm1599, %v1617, 0.0
        %1625 = vadd.xlane.f32.xlu0 %v1624
        %v1626 = vpop.xlane.xlu0 %1625
        %v1627 = vsel %vm1599, %v1619, 0.0
        %1628 = vadd.xlane.f32.xlu0 %v1627
        %v1629 = vpop.xlane.xlu0 %1628
        %v1630 = vsel %vm1599, %v1621, 0.0
        %1631 = vadd.xlane.f32.xlu0 %v1630
        %v1632 = vpop.xlane.xlu0 %1631
        %v1633 = vsel %vm1599, %v1623, 0.0
        %1634 = vadd.xlane.f32.xlu0 %v1633
        %v1635 = vpop.xlane.xlu0 %1634
        %v1636 = vrcp.pop %v1626
        %v1637 = vrcp.pop %v1629
        %v1638 = vrcp.pop %v1632
        %v1639 = vrcp.pop %v1635
        %v1640 = vmul.f32 %v1617, %v1636
        %v1641 = vmul.f32 %v1619, %v1637
        %v1642 = vmul.f32 %v1621, %v1638
        %v1643 = vmul.f32 %v1623, %v1639
        %v1644 = vpack.c.bf16 %v1640, %v1640
        %v1645 = vpack.c.bf16 %v1641, %v1641
        %v1646 = vpack.c.bf16 %v1642, %v1642
        %v1647 = vpack.c.bf16 %v1643, %v1643
        %v1649 = vsel %vm1599, %v1644, 0
        %vm1651 = vcmask 1043456
        %v1653 = vsel %vm1651, %v1396, 0
        %1655 = vmatprep.subr.bf16.mxu0 0
        %1656 = vmatpush1.bf16.msra.mxu0 %v1653
        %1657 = vmatprep.subr.bf16.mxu0 0
        %1658 = vmatpush1.bf16.msra.mxu0 0
        %1659 = vmatprep.subr.bf16.mxu0 0
        %1660 = vmatpush1.bf16.msra.mxu0 0
        %1661 = vmatprep.subr.bf16.mxu0 0
        %1662 = vmatpush1.bf16.msra.mxu0 0
        %1663 = vmatprep.subr.bf16.mxu0 0
        %1664 = vmatpush1.bf16.msra.mxu0 0
        %1665 = vmatprep.subr.bf16.mxu0 0
        %1666 = vmatpush1.bf16.msra.mxu0 0
        %1667 = vmatprep.subr.bf16.mxu0 0
        %1668 = vmatpush1.bf16.msra.mxu0 0
        %1669 = vmatprep.subr.bf16.mxu0 0
        %1670 = vmatpush1.bf16.msra.mxu0 0
        %1671 = vmatprep.subr.bf16.mxu0 0
        %1672 = vmatpush1.bf16.msra.mxu0 0
        %1673 = vmatprep.subr.bf16.mxu0 0
        %1674 = vmatpush1.bf16.msra.mxu0 0
        %1675 = vmatprep.subr.bf16.mxu0 0
        %1676 = vmatpush1.bf16.msra.mxu0 0
        %1677 = vmatprep.subr.bf16.mxu0 0
        %1678 = vmatpush1.bf16.msra.mxu0 0
        %1679 = vmatprep.subr.bf16.mxu0 0
        %1680 = vmatpush1.bf16.msra.mxu0 0
        %1681 = vmatprep.subr.bf16.mxu0 0
        %1682 = vmatpush1.bf16.msra.mxu0 0
        %1683 = vmatprep.subr.bf16.mxu0 0
        %1684 = vmatpush1.bf16.msra.mxu0 0
        %1685 = vmatprep.subr.bf16.mxu0 0
        %1686 = vmatpush1.bf16.msra.mxu0 0
        %1687 = vmatprep.mubr.bf16.mxu0 0
        %1688 = vmatmul.mubr.bf16.gmra.mrb[0].mxu0 %v1649
        %v1689 = vpop.f32.mrb[0].mxu0
        %v1690 = vadd.f32 0.0, %v1689
        %v1691 = vpop.f32.mrb[0].mxu0
        %v1692 = vpop.f32.mrb[0].mxu0
        %v1693 = vpop.f32.mrb[0].mxu0
        %1694 = vdwg.mxu0
        %v1696 = vsel %vm1599, %v1645, 0
        %v1699 = vsel %vm1651, %v1397, 0
        %1701 = vmatprep.subr.bf16.mxu0 0
        %1702 = vmatpush1.bf16.msra.mxu0 %v1699
        %1703 = vmatprep.subr.bf16.mxu0 0
        %1704 = vmatpush1.bf16.msra.mxu0 0
        %1705 = vmatprep.subr.bf16.mxu0 0
        %1706 = vmatpush1.bf16.msra.mxu0 0
        %1707 = vmatprep.subr.bf16.mxu0 0
        %1708 = vmatpush1.bf16.msra.mxu0 0
        %1709 = vmatprep.subr.bf16.mxu0 0
        %1710 = vmatpush1.bf16.msra.mxu0 0
        %1711 = vmatprep.subr.bf16.mxu0 0
        %1712 = vmatpush1.bf16.msra.mxu0 0
        %1713 = vmatprep.subr.bf16.mxu0 0
        %1714 = vmatpush1.bf16.msra.mxu0 0
        %1715 = vmatprep.subr.bf16.mxu0 0
        %1716 = vmatpush1.bf16.msra.mxu0 0
        %1717 = vmatprep.subr.bf16.mxu0 0
        %1718 = vmatpush1.bf16.msra.mxu0 0
        %1719 = vmatprep.subr.bf16.mxu0 0
        %1720 = vmatpush1.bf16.msra.mxu0 0
        %1721 = vmatprep.subr.bf16.mxu0 0
        %1722 = vmatpush1.bf16.msra.mxu0 0
        %1723 = vmatprep.subr.bf16.mxu0 0
        %1724 = vmatpush1.bf16.msra.mxu0 0
        %1725 = vmatprep.subr.bf16.mxu0 0
        %1726 = vmatpush1.bf16.msra.mxu0 0
        %1727 = vmatprep.subr.bf16.mxu0 0
        %1728 = vmatpush1.bf16.msra.mxu0 0
        %1729 = vmatprep.subr.bf16.mxu0 0
        %1730 = vmatpush1.bf16.msra.mxu0 0
        %1731 = vmatprep.subr.bf16.mxu0 0
        %1732 = vmatpush1.bf16.msra.mxu0 0
        %1733 = vmatprep.mubr.bf16.mxu0 0
        %1734 = vmatmul.mubr.bf16.gmra.mrb[0].mxu0 %v1696
        %v1735 = vpop.f32.mrb[0].mxu0
        %v1736 = vadd.f32 0.0, %v1735
        %v1737 = vpop.f32.mrb[0].mxu0
        %v1738 = vpop.f32.mrb[0].mxu0
        %v1739 = vpop.f32.mrb[0].mxu0
        %1740 = vdwg.mxu0
        %v1742 = vsel %vm1599, %v1646, 0
        %v1745 = vsel %vm1651, %v1398, 0
        %1747 = vmatprep.subr.bf16.mxu0 0
        %1748 = vmatpush1.bf16.msra.mxu0 %v1745
        %1749 = vmatprep.subr.bf16.mxu0 0
        %1750 = vmatpush1.bf16.msra.mxu0 0
        %1751 = vmatprep.subr.bf16.mxu0 0
        %1752 = vmatpush1.bf16.msra.mxu0 0
        %1753 = vmatprep.subr.bf16.mxu0 0
        %1754 = vmatpush1.bf16.msra.mxu0 0
        %1755 = vmatprep.subr.bf16.mxu0 0
        %1756 = vmatpush1.bf16.msra.mxu0 0
        %1757 = vmatprep.subr.bf16.mxu0 0
        %1758 = vmatpush1.bf16.msra.mxu0 0
        %1759 = vmatprep.subr.bf16.mxu0 0
        %1760 = vmatpush1.bf16.msra.mxu0 0
        %1761 = vmatprep.subr.bf16.mxu0 0
        %1762 = vmatpush1.bf16.msra.mxu0 0
        %1763 = vmatprep.subr.bf16.mxu0 0
        %1764 = vmatpush1.bf16.msra.mxu0 0
        %1765 = vmatprep.subr.bf16.mxu0 0
        %1766 = vmatpush1.bf16.msra.mxu0 0
        %1767 = vmatprep.subr.bf16.mxu0 0
        %1768 = vmatpush1.bf16.msra.mxu0 0
        %1769 = vmatprep.subr.bf16.mxu0 0
        %1770 = vmatpush1.bf16.msra.mxu0 0
        %1771 = vmatprep.subr.bf16.mxu0 0
        %1772 = vmatpush1.bf16.msra.mxu0 0
        %1773 = vmatprep.subr.bf16.mxu0 0
        %1774 = vmatpush1.bf16.msra.mxu0 0
        %1775 = vmatprep.subr.bf16.mxu0 0
        %1776 = vmatpush1.bf16.msra.mxu0 0
        %1777 = vmatprep.subr.bf16.mxu0 0
        %1778 = vmatpush1.bf16.msra.mxu0 0
        %1779 = vmatprep.mubr.bf16.mxu0 0
        %1780 = vmatmul.mubr.bf16.gmra.mrb[0].mxu0 %v1742
        %v1781 = vpop.f32.mrb[0].mxu0
        %v1782 = vadd.f32 0.0, %v1781
        %v1783 = vpop.f32.mrb[0].mxu0
        %v1784 = vpop.f32.mrb[0].mxu0
        %v1785 = vpop.f32.mrb[0].mxu0
        %1786 = vdwg.mxu0
        %v1788 = vsel %vm1599, %v1647, 0
        %v1791 = vsel %vm1651, %v1399, 0
        %1793 = vmatprep.subr.bf16.mxu0 0
        %1794 = vmatpush1.bf16.msra.mxu0 %v1791
        %1795 = vmatprep.subr.bf16.mxu0 0
        %1796 = vmatpush1.bf16.msra.mxu0 0
        %1797 = vmatprep.subr.bf16.mxu0 0
        %1798 = vmatpush1.bf16.msra.mxu0 0
        %1799 = vmatprep.subr.bf16.mxu0 0
        %1800 = vmatpush1.bf16.msra.mxu0 0
        %1801 = vmatprep.subr.bf16.mxu0 0
        %1802 = vmatpush1.bf16.msra.mxu0 0
        %1803 = vmatprep.subr.bf16.mxu0 0
        %1804 = vmatpush1.bf16.msra.mxu0 0
        %1805 = vmatprep.subr.bf16.mxu0 0
        %1806 = vmatpush1.bf16.msra.mxu0 0
        %1807 = vmatprep.subr.bf16.mxu0 0
        %1808 = vmatpush1.bf16.msra.mxu0 0
        %1809 = vmatprep.subr.bf16.mxu0 0
        %1810 = vmatpush1.bf16.msra.mxu0 0
        %1811 = vmatprep.subr.bf16.mxu0 0
        %1812 = vmatpush1.bf16.msra.mxu0 0
        %1813 = vmatprep.subr.bf16.mxu0 0
        %1814 = vmatpush1.bf16.msra.mxu0 0
        %1815 = vmatprep.subr.bf16.mxu0 0
        %1816 = vmatpush1.bf16.msra.mxu0 0
        %1817 = vmatprep.subr.bf16.mxu0 0
        %1818 = vmatpush1.bf16.msra.mxu0 0
        %1819 = vmatprep.subr.bf16.mxu0 0
        %1820 = vmatpush1.bf16.msra.mxu0 0
        %1821 = vmatprep.subr.bf16.mxu0 0
        %1822 = vmatpush1.bf16.msra.mxu0 0
        %1823 = vmatprep.subr.bf16.mxu0 0
        %1824 = vmatpush1.bf16.msra.mxu0 0
        %1825 = vmatprep.mubr.bf16.mxu0 0
        %1826 = vmatmul.mubr.bf16.gmra.mrb[0].mxu0 %v1788
        %v1827 = vpop.f32.mrb[0].mxu0
        %v1828 = vadd.f32 0.0, %v1827
        %v1829 = vpop.f32.mrb[0].mxu0
        %v1830 = vpop.f32.mrb[0].mxu0
        %v1831 = vpop.f32.mrb[0].mxu0
        %1832 = vdwg.mxu0
        %1834 = vrot.lane.b32.xlu0 %v1736, 32
        %v1835 = vpop.permute.xlu0 %1834
        %1838 = vrot.lane.b32.xlu0 %v1782, 64
        %v1839 = vpop.permute.xlu0 %1838
        %1842 = vrot.lane.b32.xlu0 %v1828, 96
        %v1843 = vpop.permute.xlu0 %1842
        %v1845 = vsel %vm1400, %v1690, %v1835
        %vm1846 = vcmask 523264
        %v1847 = vsel %vm1846, %v1845, %v1839
        %vm1848 = vcmask 785408
        %v1849 = vsel %vm1848, %v1847, %v1843
        %v1850 = vpack.c.bf16 %v1849, %v1849
        %v1851 = vld [vmem:[#allocation11] sm:$0xf]
        %v1852 = vld [vmem:[#allocation11 + $0x4] sm:$0xf]
        %v1853 = vld [vmem:[#allocation11 + $0x8] sm:$0xf]
        %v1854 = vld [vmem:[#allocation11 + $0xc] sm:$0xf]
        %v1855 = vld [vmem:[#allocation11 + $0x10] sm:$0xf]
        %v1856 = vld [vmem:[#allocation11 + $0x14] sm:$0xf]
        %v1857 = vld [vmem:[#allocation11 + $0x18] sm:$0xf]
        %v1858 = vld [vmem:[#allocation11 + $0x1c] sm:$0xf]
        %v1859 = vld [vmem:[#allocation11 + $0x20] sm:$0xf]
        %v1860 = vld [vmem:[#allocation11 + $0x24] sm:$0xf]
        %v1861 = vld [vmem:[#allocation11 + $0x28] sm:$0xf]
        %v1862 = vld [vmem:[#allocation11 + $0x2c] sm:$0xf]
        %v1863 = vld [vmem:[#allocation11 + $0x30] sm:$0xf]
        %v1864 = vld [vmem:[#allocation11 + $0x34] sm:$0xf]
        %v1865 = vld [vmem:[#allocation11 + $0x38] sm:$0xf]
        %v1866 = vld [vmem:[#allocation11 + $0x3c] sm:$0xf]
        %v1867 = vld [vmem:[%s10] sm:$0x1]
        %v1869 = vlaneseq
        %v1870 = vshrl.u32 %v1869, 7
        %v1871 = vsub.s32 0, %v1870
        %v1872 = vrot.slane %v1867, %v1871
        %v1890 = vunpack.c.l.b16 %v1851
        %v1891 = vunpack.c.l.b16 %v1852
        %v1892 = vunpack.c.l.b16 %v1853
        %v1893 = vunpack.c.l.b16 %v1854
        %v1894 = vunpack.c.l.b16 %v1855
        %v1895 = vunpack.c.l.b16 %v1856
        %v1896 = vunpack.c.l.b16 %v1857
        %v1897 = vunpack.c.l.b16 %v1858
        %v1898 = vunpack.c.l.b16 %v1859
        %v1899 = vunpack.c.l.b16 %v1860
        %v1900 = vunpack.c.l.b16 %v1861
        %v1901 = vunpack.c.l.b16 %v1862
        %v1902 = vunpack.c.l.b16 %v1863
        %v1903 = vunpack.c.l.b16 %v1864
        %v1904 = vunpack.c.l.b16 %v1865
        %v1905 = vunpack.c.l.b16 %v1866
        %v1906 = vpack.c.b16 %v1891, %v1890
        %v1907 = vpack.c.b16 %v1893, %v1892
        %v1908 = vpack.c.b16 %v1895, %v1894
        %v1909 = vpack.c.b16 %v1897, %v1896
        %v1910 = vpack.c.b16 %v1899, %v1898
        %v1911 = vpack.c.b16 %v1901, %v1900
        %v1912 = vpack.c.b16 %v1903, %v1902
        %v1913 = vpack.c.b16 %v1905, %v1904
        %1922 = vmatprep.subr.bf16.mxu0 0
        %1923 = vmatpush1.bf16.msra.mxu0 %v1906
        %1924 = vmatprep.subr.bf16.mxu0 0
        %1925 = vmatpush1.bf16.msra.mxu0 %v1907
        %1926 = vmatprep.subr.bf16.mxu0 0
        %1927 = vmatpush1.bf16.msra.mxu0 %v1908
        %1928 = vmatprep.subr.bf16.mxu0 0
        %1929 = vmatpush1.bf16.msra.mxu0 %v1909
        %1930 = vmatprep.subr.bf16.mxu0 0
        %1931 = vmatpush1.bf16.msra.mxu0 %v1910
        %1932 = vmatprep.subr.bf16.mxu0 0
        %1933 = vmatpush1.bf16.msra.mxu0 %v1911
        %1934 = vmatprep.subr.bf16.mxu0 0
        %1935 = vmatpush1.bf16.msra.mxu0 %v1912
        %1936 = vmatprep.subr.bf16.mxu0 0
        %1937 = vmatpush1.bf16.msra.mxu0 %v1913
        %1938 = vmatprep.subr.bf16.mxu0 0
        %1939 = vmatpush1.bf16.msra.mxu0 0
        %1940 = vmatprep.subr.bf16.mxu0 0
        %1941 = vmatpush1.bf16.msra.mxu0 0
        %1942 = vmatprep.subr.bf16.mxu0 0
        %1943 = vmatpush1.bf16.msra.mxu0 0
        %1944 = vmatprep.subr.bf16.mxu0 0
        %1945 = vmatpush1.bf16.msra.mxu0 0
        %1946 = vmatprep.subr.bf16.mxu0 0
        %1947 = vmatpush1.bf16.msra.mxu0 0
        %1948 = vmatprep.subr.bf16.mxu0 0
        %1949 = vmatpush1.bf16.msra.mxu0 0
        %1950 = vmatprep.subr.bf16.mxu0 0
        %1951 = vmatpush1.bf16.msra.mxu0 0
        %1952 = vmatprep.subr.bf16.mxu0 0
        %1953 = vmatpush1.bf16.msra.mxu0 0
        %1954 = vmatprep.mubr.bf16.mxu0 0
        %1955 = vmatmul.mubr.bf16.gmra.mrb[0].mxu0 %v1850
        %v1956 = vpop.f32.mrb[0].mxu0
        %v1957 = vadd.f32 %v1872, %v1956
        %v1958 = vpop.f32.mrb[0].mxu0
        %v1959 = vpop.f32.mrb[0].mxu0
        %v1960 = vpop.f32.mrb[0].mxu0
        %1961 = vdwg.mxu0
        %v1962 = vadd.f32 %v1090, %v1957
        %v1963 = vld [vmem:[%s21] sm:$0x1]
        %v1964 = vld [vmem:[%s22] sm:$0x1]
        %1965 = vadd.xlane.f32.xlu0 %v1962
        %v1966 = vpop.xlane.xlu0 %1965
        %v1967 = vrcp.pop 128.0
        %v1968 = vmul.f32 %v1966, %v1967
        %v1969 = vsub.f32 %v1962, %v1968
        %v1970 = vmul.f32 %v1969, %v1969
        %1971 = vadd.xlane.f32.xlu0 %v1970
        %v1972 = vpop.xlane.xlu0 %1971
        %v1973 = vmul.f32 %v1972, %v1967
        %v1974 = vadd.f32 %v1973, 1e-05
        %v1975 = vrsqrt.pop %v1974
        %v1976 = vmul.f32 %v1969, %v1975
        %v1978 = vlaneseq
        %v1979 = vshrl.u32 %v1978, 7
        %v1980 = vsub.s32 0, %v1979
        %v1981 = vrot.slane %v1963, %v1980
        %v1983 = vmul.f32 %v1976, %v1981
        %v1985 = vlaneseq
        %v1986 = vshrl.u32 %v1985, 7
        %v1987 = vsub.s32 0, %v1986
        %v1988 = vrot.slane %v1964, %v1987
        %v1990 = vadd.f32 %v1983, %v1988
        %v1991 = vpack.c.bf16 %v1990, %v1990
        %v1992 = vld [vmem:[#allocation13] sm:$0xf]
        %v1993 = vld [vmem:[#allocation13 + $0x4] sm:$0xf]
        %v1994 = vld [vmem:[#allocation13 + $0x8] sm:$0xf]
        %v1995 = vld [vmem:[#allocation13 + $0xc] sm:$0xf]
        %v1996 = vld [vmem:[#allocation13 + $0x10] sm:$0xf]
        %v1997 = vld [vmem:[#allocation13 + $0x14] sm:$0xf]
        %v1998 = vld [vmem:[#allocation13 + $0x18] sm:$0xf]
        %v1999 = vld [vmem:[#allocation13 + $0x1c] sm:$0xf]
        %v2000 = vld [vmem:[#allocation13 + $0x20] sm:$0xf]
        %v2001 = vld [vmem:[#allocation13 + $0x24] sm:$0xf]
        %v2002 = vld [vmem:[#allocation13 + $0x28] sm:$0xf]
        %v2003 = vld [vmem:[#allocation13 + $0x2c] sm:$0xf]
        %v2004 = vld [vmem:[#allocation13 + $0x30] sm:$0xf]
        %v2005 = vld [vmem:[#allocation13 + $0x34] sm:$0xf]
        %v2006 = vld [vmem:[#allocation13 + $0x38] sm:$0xf]
        %v2007 = vld [vmem:[#allocation13 + $0x3c] sm:$0xf]
        %v2008 = vld [vmem:[%s12] sm:$0x1]
        %v2010 = vlaneseq
        %v2011 = vshrl.u32 %v2010, 7
        %v2012 = vsub.s32 0, %v2011
        %v2013 = vrot.slane %v2008, %v2012
        %v2031 = vunpack.c.l.b16 %v1992
        %v2032 = vunpack.c.l.b16 %v1993
        %v2033 = vunpack.c.l.b16 %v1994
        %v2034 = vunpack.c.l.b16 %v1995
        %v2035 = vunpack.c.l.b16 %v1996
        %v2036 = vunpack.c.l.b16 %v1997
        %v2037 = vunpack.c.l.b16 %v1998
        %v2038 = vunpack.c.l.b16 %v1999
        %v2039 = vunpack.c.l.b16 %v2000
        %v2040 = vunpack.c.l.b16 %v2001
        %v2041 = vunpack.c.l.b16 %v2002
        %v2042 = vunpack.c.l.b16 %v2003
        %v2043 = vunpack.c.l.b16 %v2004
        %v2044 = vunpack.c.l.b16 %v2005
        %v2045 = vunpack.c.l.b16 %v2006
        %v2046 = vunpack.c.l.b16 %v2007
        %v2047 = vpack.c.b16 %v2032, %v2031
        %v2048 = vpack.c.b16 %v2034, %v2033
        %v2049 = vpack.c.b16 %v2036, %v2035
        %v2050 = vpack.c.b16 %v2038, %v2037
        %v2051 = vpack.c.b16 %v2040, %v2039
        %v2052 = vpack.c.b16 %v2042, %v2041
        %v2053 = vpack.c.b16 %v2044, %v2043
        %v2054 = vpack.c.b16 %v2046, %v2045
        %2063 = vmatprep.subr.bf16.mxu0 0
        %2064 = vmatpush1.bf16.msra.mxu0 %v2047
        %2065 = vmatprep.subr.bf16.mxu0 0
        %2066 = vmatpush1.bf16.msra.mxu0 %v2048
        %2067 = vmatprep.subr.bf16.mxu0 0
        %2068 = vmatpush1.bf16.msra.mxu0 %v2049
        %2069 = vmatprep.subr.bf16.mxu0 0
        %2070 = vmatpush1.bf16.msra.mxu0 %v2050
        %2071 = vmatprep.subr.bf16.mxu0 0
        %2072 = vmatpush1.bf16.msra.mxu0 %v2051
        %2073 = vmatprep.subr.bf16.mxu0 0
        %2074 = vmatpush1.bf16.msra.mxu0 %v2052
        %2075 = vmatprep.subr.bf16.mxu0 0
        %2076 = vmatpush1.bf16.msra.mxu0 %v2053
        %2077 = vmatprep.subr.bf16.mxu0 0
        %2078 = vmatpush1.bf16.msra.mxu0 %v2054
        %2079 = vmatprep.subr.bf16.mxu0 0
        %2080 = vmatpush1.bf16.msra.mxu0 0
        %2081 = vmatprep.subr.bf16.mxu0 0
        %2082 = vmatpush1.bf16.msra.mxu0 0
        %2083 = vmatprep.subr.bf16.mxu0 0
        %2084 = vmatpush1.bf16.msra.mxu0 0
        %2085 = vmatprep.subr.bf16.mxu0 0
        %2086 = vmatpush1.bf16.msra.mxu0 0
        %2087 = vmatprep.subr.bf16.mxu0 0
        %2088 = vmatpush1.bf16.msra.mxu0 0
        %2089 = vmatprep.subr.bf16.mxu0 0
        %2090 = vmatpush1.bf16.msra.mxu0 0
        %2091 = vmatprep.subr.bf16.mxu0 0
        %2092 = vmatpush1.bf16.msra.mxu0 0
        %2093 = vmatprep.subr.bf16.mxu0 0
        %2094 = vmatpush1.bf16.msra.mxu0 0
        %2095 = vmatprep.mubr.bf16.mxu0 0
        %2096 = vmatmul.mubr.bf16.gmra.mrb[0].mxu0 %v1991
        %v2097 = vpop.f32.mrb[0].mxu0
        %v2098 = vadd.f32 %v2013, %v2097
        %v2099 = vpop.f32.mrb[0].mxu0
        %v2100 = vpop.f32.mrb[0].mxu0
        %v2101 = vpop.f32.mrb[0].mxu0
        %2102 = vdwg.mxu0
        %v2103 = vpack.c.bf16 %v1093, %v1092
        %v2104 = vld [vmem:[#allocation14] sm:$0xff]
        %v2105 = vld [vmem:[#allocation14 + $0x8] sm:$0xff]
        %v2106 = vld [vmem:[#allocation14 + $0x10] sm:$0xff]
        %v2107 = vld [vmem:[#allocation14 + $0x18] sm:$0xff]
        %v2108 = vld [vmem:[#allocation14 + $0x20] sm:$0xff]
        %v2109 = vld [vmem:[#allocation14 + $0x28] sm:$0xff]
        %v2110 = vld [vmem:[#allocation14 + $0x30] sm:$0xff]
        %v2111 = vld [vmem:[#allocation14 + $0x38] sm:$0xff]
        %v2112 = vld [vmem:[#allocation14 + $0x40] sm:$0xff]
        %v2113 = vld [vmem:[#allocation14 + $0x48] sm:$0xff]
        %v2114 = vld [vmem:[#allocation14 + $0x50] sm:$0xff]
        %v2115 = vld [vmem:[#allocation14 + $0x58] sm:$0xff]
        %v2116 = vld [vmem:[#allocation14 + $0x60] sm:$0xff]
        %v2117 = vld [vmem:[#allocation14 + $0x68] sm:$0xff]
        %v2118 = vld [vmem:[#allocation14 + $0x70] sm:$0xff]
        %v2119 = vld [vmem:[#allocation14 + $0x78] sm:$0xff]
        %v2120 = vld [vmem:[%s14] sm:$0x3]
        %v2122 = vlaneseq
        %v2123 = vshrl.u32 %v2122, 7
        %v2124 = vsub.s32 0, %v2123
        %v2125 = vrot.slane %v2120, %v2124
        %v2126 = vlaneseq
        %v2127 = vshrl.u32 %v2126, 7
        %v2128 = vsub.s32 1, %v2127
        %v2129 = vrot.slane %v2120, %v2128
        %v2148 = vunpack.c.l.b16 %v2104
        %v2149 = vunpack.c.h.b16 %v2104
        %v2150 = vunpack.c.l.b16 %v2105
        %v2151 = vunpack.c.h.b16 %v2105
        %v2152 = vunpack.c.l.b16 %v2106
        %v2153 = vunpack.c.h.b16 %v2106
        %v2154 = vunpack.c.l.b16 %v2107
        %v2155 = vunpack.c.h.b16 %v2107
        %v2156 = vunpack.c.l.b16 %v2108
        %v2157 = vunpack.c.h.b16 %v2108
        %v2158 = vunpack.c.l.b16 %v2109
        %v2159 = vunpack.c.h.b16 %v2109
        %v2160 = vunpack.c.l.b16 %v2110
        %v2161 = vunpack.c.h.b16 %v2110
        %v2162 = vunpack.c.l.b16 %v2111
        %v2163 = vunpack.c.h.b16 %v2111
        %v2164 = vunpack.c.l.b16 %v2112
        %v2165 = vunpack.c.h.b16 %v2112
        %v2166 = vunpack.c.l.b16 %v2113
        %v2167 = vunpack.c.h.b16 %v2113
        %v2168 = vunpack.c.l.b16 %v2114
        %v2169 = vunpack.c.h.b16 %v2114
        %v2170 = vunpack.c.l.b16 %v2115
        %v2171 = vunpack.c.h.b16 %v2115
        %v2172 = vunpack.c.l.b16 %v2116
        %v2173 = vunpack.c.h.b16 %v2116
        %v2174 = vunpack.c.l.b16 %v2117
        %v2175 = vunpack.c.h.b16 %v2117
        %v2176 = vunpack.c.l.b16 %v2118
        %v2177 = vunpack.c.h.b16 %v2118
        %v2178 = vunpack.c.l.b16 %v2119
        %v2179 = vunpack.c.h.b16 %v2119
        %v2180 = vpack.c.b16 %v2150, %v2148
        %v2181 = vpack.c.b16 %v2151, %v2149
        %v2182 = vpack.c.b16 %v2154, %v2152
        %v2183 = vpack.c.b16 %v2155, %v2153
        %v2184 = vpack.c.b16 %v2158, %v2156
        %v2185 = vpack.c.b16 %v2159, %v2157
        %v2186 = vpack.c.b16 %v2162, %v2160
        %v2187 = vpack.c.b16 %v2163, %v2161
        %v2188 = vpack.c.b16 %v2166, %v2164
        %v2189 = vpack.c.b16 %v2167, %v2165
        %v2190 = vpack.c.b16 %v2170, %v2168
        %v2191 = vpack.c.b16 %v2171, %v2169
        %v2192 = vpack.c.b16 %v2174, %v2172
        %v2193 = vpack.c.b16 %v2175, %v2173
        %v2194 = vpack.c.b16 %v2178, %v2176
        %v2195 = vpack.c.b16 %v2179, %v2177
        %2212 = vmatprep.subr.bf16.mxu0 %v2181
        %2213 = vmatpush1.bf16.msra.mxu0 %v2180
        %2214 = vmatprep.subr.bf16.mxu0 %v2183
        %2215 = vmatpush1.bf16.msra.mxu0 %v2182
        %2216 = vmatprep.subr.bf16.mxu0 %v2185
        %2217 = vmatpush1.bf16.msra.mxu0 %v2184
        %2218 = vmatprep.subr.bf16.mxu0 %v2187
        %2219 = vmatpush1.bf16.msra.mxu0 %v2186
        %2220 = vmatprep.subr.bf16.mxu0 %v2189
        %2221 = vmatpush1.bf16.msra.mxu0 %v2188
        %2222 = vmatprep.subr.bf16.mxu0 %v2191
        %2223 = vmatpush1.bf16.msra.mxu0 %v2190
        %2224 = vmatprep.subr.bf16.mxu0 %v2193
        %2225 = vmatpush1.bf16.msra.mxu0 %v2192
        %2226 = vmatprep.subr.bf16.mxu0 %v2195
        %2227 = vmatpush1.bf16.msra.mxu0 %v2194
        %2228 = vmatprep.subr.bf16.mxu0 0
        %2229 = vmatpush1.bf16.msra.mxu0 0
        %2230 = vmatprep.subr.bf16.mxu0 0
        %2231 = vmatpush1.bf16.msra.mxu0 0
        %2232 = vmatprep.subr.bf16.mxu0 0
        %2233 = vmatpush1.bf16.msra.mxu0 0
        %2234 = vmatprep.subr.bf16.mxu0 0
        %2235 = vmatpush1.bf16.msra.mxu0 0
        %2236 = vmatprep.subr.bf16.mxu0 0
        %2237 = vmatpush1.bf16.msra.mxu0 0
        %2238 = vmatprep.subr.bf16.mxu0 0
        %2239 = vmatpush1.bf16.msra.mxu0 0
        %2240 = vmatprep.subr.bf16.mxu0 0
        %2241 = vmatpush1.bf16.msra.mxu0 0
        %2242 = vmatprep.subr.bf16.mxu0 0
        %2243 = vmatpush1.bf16.msra.mxu0 0
        %2244 = vmatprep.mubr.bf16.mxu0 0
        %2245 = vmatmul.mubr.bf16.gmra.mrb[0].mxu0 %v2103
        %v2246 = vpop.f32.mrb[0].mxu0
        %v2247 = vadd.f32 %v2125, %v2246
        %v2248 = vpop.f32.mrb[0].mxu0
        %v2249 = vadd.f32 %v2129, %v2248
        %v2250 = vpop.f32.mrb[0].mxu0
        %v2251 = vadd.f32 %v2125, %v2250
        %v2252 = vpop.f32.mrb[0].mxu0
        %v2253 = vadd.f32 %v2129, %v2252
        %2254 = vdwg.mxu0
        %2256 = vrot.lane.b32.xlu0 %v2098, 96
        %v2257 = vpop.permute.xlu0 %2256
        %2259 = vrot.lane.b32.xlu0 %v2098, 64
        %v2260 = vpop.permute.xlu0 %2259
        %2262 = vrot.lane.b32.xlu0 %v2098, 32
        %v2263 = vpop.permute.xlu0 %2262
        %v2265 = vpack.c.bf16 %v2098, %v2098
        %v2266 = vpack.c.bf16 %v2257, %v2257
        %v2267 = vpack.c.bf16 %v2260, %v2260
        %v2268 = vpack.c.bf16 %v2263, %v2263
        %2271 = vrot.lane.b32.xlu0 %v2247, 96
        %v2272 = vpop.permute.xlu0 %2271
        %2273 = vrot.lane.b32.xlu0 %v2251, 96
        %v2274 = vpop.permute.xlu0 %2273
        %2277 = vrot.lane.b32.xlu0 %v2247, 64
        %v2278 = vpop.permute.xlu0 %2277
        %2279 = vrot.lane.b32.xlu0 %v2251, 64
        %v2280 = vpop.permute.xlu0 %2279
        %2283 = vrot.lane.b32.xlu0 %v2247, 32
        %v2284 = vpop.permute.xlu0 %2283
        %2285 = vrot.lane.b32.xlu0 %v2251, 32
        %v2286 = vpop.permute.xlu0 %2285
        %v2289 = vpack.c.bf16 %v2251, %v2247
        %v2290 = vpack.c.bf16 %v2274, %v2272
        %v2291 = vpack.c.bf16 %v2280, %v2278
        %v2292 = vpack.c.bf16 %v2286, %v2284
        %2295 = vrot.lane.b32.xlu0 %v2249, 96
        %v2296 = vpop.permute.xlu0 %2295
        %2297 = vrot.lane.b32.xlu0 %v2253, 96
        %v2298 = vpop.permute.xlu0 %2297
        %2301 = vrot.lane.b32.xlu0 %v2249, 64
        %v2302 = vpop.permute.xlu0 %2301
        %2303 = vrot.lane.b32.xlu0 %v2253, 64
        %v2304 = vpop.permute.xlu0 %2303
        %2307 = vrot.lane.b32.xlu0 %v2249, 32
        %v2308 = vpop.permute.xlu0 %2307
        %2309 = vrot.lane.b32.xlu0 %v2253, 32
        %v2310 = vpop.permute.xlu0 %2309
        %v2313 = vpack.c.bf16 %v2253, %v2249
        %v2314 = vpack.c.bf16 %v2298, %v2296
        %v2315 = vpack.c.bf16 %v2304, %v2302
        %v2316 = vpack.c.bf16 %v2310, %v2308
        %v2318 = vsel %vm1400, %v2265, 0
        %v2321 = vsel %vm1400, %v2289, 0
        %2323 = vmatprep.subr.bf16.mxu0 0
        %2324 = vmatpush1.bf16.xpose.msra.mxu0 %v2321
        %2325 = vmatprep.subr.bf16.mxu0 0
        %2326 = vmatpush1.bf16.xpose.msra.mxu0 0
        %2327 = vmatprep.subr.bf16.mxu0 0
        %2328 = vmatpush1.bf16.xpose.msra.mxu0 0
        %2329 = vmatprep.subr.bf16.mxu0 0
        %2330 = vmatpush1.bf16.xpose.msra.mxu0 0
        %2331 = vmatprep.subr.bf16.mxu0 0
        %2332 = vmatpush1.bf16.xpose.msra.mxu0 0
        %2333 = vmatprep.subr.bf16.mxu0 0
        %2334 = vmatpush1.bf16.xpose.msra.mxu0 0
        %2335 = vmatprep.subr.bf16.mxu0 0
        %2336 = vmatpush1.bf16.xpose.msra.mxu0 0
        %2337 = vmatprep.subr.bf16.mxu0 0
        %2338 = vmatpush1.bf16.xpose.msra.mxu0 0
        %2339 = vmatprep.subr.bf16.mxu0 0
        %2340 = vmatpush1.bf16.xpose.msra.mxu0 0
        %2341 = vmatprep.subr.bf16.mxu0 0
        %2342 = vmatpush1.bf16.xpose.msra.mxu0 0
        %2343 = vmatprep.subr.bf16.mxu0 0
        %2344 = vmatpush1.bf16.xpose.msra.mxu0 0
        %2345 = vmatprep.subr.bf16.mxu0 0
        %2346 = vmatpush1.bf16.xpose.msra.mxu0 0
        %2347 = vmatprep.subr.bf16.mxu0 0
        %2348 = vmatpush1.bf16.xpose.msra.mxu0 0
        %2349 = vmatprep.subr.bf16.mxu0 0
        %2350 = vmatpush1.bf16.xpose.msra.mxu0 0
        %2351 = vmatprep.subr.bf16.mxu0 0
        %2352 = vmatpush1.bf16.xpose.msra.mxu0 0
        %2353 = vmatprep.subr.bf16.mxu0 0
        %2354 = vmatpush1.bf16.xpose.msra.mxu0 0
        %2355 = vmatprep.mubr.bf16.mxu0 0
        %2356 = vmatmul.mubr.bf16.gmra.mrb[0].mxu0 %v2318
        %v2357 = vpop.f32.mrb[0].mxu0
        %v2358 = vadd.f32 0.0, %v2357
        %v2359 = vpop.f32.mrb[0].mxu0
        %v2360 = vpop.f32.mrb[0].mxu0
        %v2361 = vpop.f32.mrb[0].mxu0
        %2362 = vdwg.mxu0
        %v2364 = vsel %vm1400, %v2266, 0
        %v2367 = vsel %vm1400, %v2290, 0
        %2369 = vmatprep.subr.bf16.mxu0 0
        %2370 = vmatpush1.bf16.xpose.msra.mxu0 %v2367
        %2371 = vmatprep.subr.bf16.mxu0 0
        %2372 = vmatpush1.bf16.xpose.msra.mxu0 0
        %2373 = vmatprep.subr.bf16.mxu0 0
        %2374 = vmatpush1.bf16.xpose.msra.mxu0 0
        %2375 = vmatprep.subr.bf16.mxu0 0
        %2376 = vmatpush1.bf16.xpose.msra.mxu0 0
        %2377 = vmatprep.subr.bf16.mxu0 0
        %2378 = vmatpush1.bf16.xpose.msra.mxu0 0
        %2379 = vmatprep.subr.bf16.mxu0 0
        %2380 = vmatpush1.bf16.xpose.msra.mxu0 0
        %2381 = vmatprep.subr.bf16.mxu0 0
        %2382 = vmatpush1.bf16.xpose.msra.mxu0 0
        %2383 = vmatprep.subr.bf16.mxu0 0
        %2384 = vmatpush1.bf16.xpose.msra.mxu0 0
        %2385 = vmatprep.subr.bf16.mxu0 0
        %2386 = vmatpush1.bf16.xpose.msra.mxu0 0
        %2387 = vmatprep.subr.bf16.mxu0 0
        %2388 = vmatpush1.bf16.xpose.msra.mxu0 0
        %2389 = vmatprep.subr.bf16.mxu0 0
        %2390 = vmatpush1.bf16.xpose.msra.mxu0 0
        %2391 = vmatprep.subr.bf16.mxu0 0
        %2392 = vmatpush1.bf16.xpose.msra.mxu0 0
        %2393 = vmatprep.subr.bf16.mxu0 0
        %2394 = vmatpush1.bf16.xpose.msra.mxu0 0
        %2395 = vmatprep.subr.bf16.mxu0 0
        %2396 = vmatpush1.bf16.xpose.msra.mxu0 0
        %2397 = vmatprep.subr.bf16.mxu0 0
        %2398 = vmatpush1.bf16.xpose.msra.mxu0 0
        %2399 = vmatprep.subr.bf16.mxu0 0
        %2400 = vmatpush1.bf16.xpose.msra.mxu0 0
        %2401 = vmatprep.mubr.bf16.mxu0 0
        %2402 = vmatmul.mubr.bf16.gmra.mrb[0].mxu0 %v2364
        %v2403 = vpop.f32.mrb[0].mxu0
        %v2404 = vadd.f32 0.0, %v2403
        %v2405 = vpop.f32.mrb[0].mxu0
        %v2406 = vpop.f32.mrb[0].mxu0
        %v2407 = vpop.f32.mrb[0].mxu0
        %2408 = vdwg.mxu0
        %v2410 = vsel %vm1400, %v2267, 0
        %v2413 = vsel %vm1400, %v2291, 0
        %2415 = vmatprep.subr.bf16.mxu0 0
        %2416 = vmatpush1.bf16.xpose.msra.mxu0 %v2413
        %2417 = vmatprep.subr.bf16.mxu0 0
        %2418 = vmatpush1.bf16.xpose.msra.mxu0 0
        %2419 = vmatprep.subr.bf16.mxu0 0
        %2420 = vmatpush1.bf16.xpose.msra.mxu0 0
        %2421 = vmatprep.subr.bf16.mxu0 0
        %2422 = vmatpush1.bf16.xpose.msra.mxu0 0
        %2423 = vmatprep.subr.bf16.mxu0 0
        %2424 = vmatpush1.bf16.xpose.msra.mxu0 0
        %2425 = vmatprep.subr.bf16.mxu0 0
        %2426 = vmatpush1.bf16.xpose.msra.mxu0 0
        %2427 = vmatprep.subr.bf16.mxu0 0
        %2428 = vmatpush1.bf16.xpose.msra.mxu0 0
        %2429 = vmatprep.subr.bf16.mxu0 0
        %2430 = vmatpush1.bf16.xpose.msra.mxu0 0
        %2431 = vmatprep.subr.bf16.mxu0 0
        %2432 = vmatpush1.bf16.xpose.msra.mxu0 0
        %2433 = vmatprep.subr.bf16.mxu0 0
        %2434 = vmatpush1.bf16.xpose.msra.mxu0 0
        %2435 = vmatprep.subr.bf16.mxu0 0
        %2436 = vmatpush1.bf16.xpose.msra.mxu0 0
        %2437 = vmatprep.subr.bf16.mxu0 0
        %2438 = vmatpush1.bf16.xpose.msra.mxu0 0
        %2439 = vmatprep.subr.bf16.mxu0 0
        %2440 = vmatpush1.bf16.xpose.msra.mxu0 0
        %2441 = vmatprep.subr.bf16.mxu0 0
        %2442 = vmatpush1.bf16.xpose.msra.mxu0 0
        %2443 = vmatprep.subr.bf16.mxu0 0
        %2444 = vmatpush1.bf16.xpose.msra.mxu0 0
        %2445 = vmatprep.subr.bf16.mxu0 0
        %2446 = vmatpush1.bf16.xpose.msra.mxu0 0
        %2447 = vmatprep.mubr.bf16.mxu0 0
        %2448 = vmatmul.mubr.bf16.gmra.mrb[0].mxu0 %v2410
        %v2449 = vpop.f32.mrb[0].mxu0
        %v2450 = vadd.f32 0.0, %v2449
        %v2451 = vpop.f32.mrb[0].mxu0
        %v2452 = vpop.f32.mrb[0].mxu0
        %v2453 = vpop.f32.mrb[0].mxu0
        %2454 = vdwg.mxu0
        %v2456 = vsel %vm1400, %v2268, 0
        %v2459 = vsel %vm1400, %v2292, 0
        %2461 = vmatprep.subr.bf16.mxu0 0
        %2462 = vmatpush1.bf16.xpose.msra.mxu0 %v2459
        %2463 = vmatprep.subr.bf16.mxu0 0
        %2464 = vmatpush1.bf16.xpose.msra.mxu0 0
        %2465 = vmatprep.subr.bf16.mxu0 0
        %2466 = vmatpush1.bf16.xpose.msra.mxu0 0
        %2467 = vmatprep.subr.bf16.mxu0 0
        %2468 = vmatpush1.bf16.xpose.msra.mxu0 0
        %2469 = vmatprep.subr.bf16.mxu0 0
        %2470 = vmatpush1.bf16.xpose.msra.mxu0 0
        %2471 = vmatprep.subr.bf16.mxu0 0
        %2472 = vmatpush1.bf16.xpose.msra.mxu0 0
        %2473 = vmatprep.subr.bf16.mxu0 0
        %2474 = vmatpush1.bf16.xpose.msra.mxu0 0
        %2475 = vmatprep.subr.bf16.mxu0 0
        %2476 = vmatpush1.bf16.xpose.msra.mxu0 0
        %2477 = vmatprep.subr.bf16.mxu0 0
        %2478 = vmatpush1.bf16.xpose.msra.mxu0 0
        %2479 = vmatprep.subr.bf16.mxu0 0
        %2480 = vmatpush1.bf16.xpose.msra.mxu0 0
        %2481 = vmatprep.subr.bf16.mxu0 0
        %2482 = vmatpush1.bf16.xpose.msra.mxu0 0
        %2483 = vmatprep.subr.bf16.mxu0 0
        %2484 = vmatpush1.bf16.xpose.msra.mxu0 0
        %2485 = vmatprep.subr.bf16.mxu0 0
        %2486 = vmatpush1.bf16.xpose.msra.mxu0 0
        %2487 = vmatprep.subr.bf16.mxu0 0
        %2488 = vmatpush1.bf16.xpose.msra.mxu0 0
        %2489 = vmatprep.subr.bf16.mxu0 0
        %2490 = vmatpush1.bf16.xpose.msra.mxu0 0
        %2491 = vmatprep.subr.bf16.mxu0 0
        %2492 = vmatpush1.bf16.xpose.msra.mxu0 0
        %2493 = vmatprep.mubr.bf16.mxu0 0
        %2494 = vmatmul.mubr.bf16.gmra.mrb[0].mxu0 %v2456
        %v2495 = vpop.f32.mrb[0].mxu0
        %v2496 = vadd.f32 0.0, %v2495
        %v2497 = vpop.f32.mrb[0].mxu0
        %v2498 = vpop.f32.mrb[0].mxu0
        %v2499 = vpop.f32.mrb[0].mxu0
        %2500 = vdwg.mxu0
        %v2501 = vmul.f32 %v2358, 0.17677669
        %v2502 = vmul.f32 %v2404, 0.17677669
        %v2503 = vmul.f32 %v2450, 0.17677669
        %v2504 = vmul.f32 %v2496, 0.17677669
        %vm2505 = vnez %v1095
        %v2506 = vsel %vm2505, 16843009, 0
        %v2507 = vunpack.c.0.s8 %v2506
        %vm2508 = vcmp.ne.s32.totalorder %v2507, 0
        %v2509 = vsel %vm2508, 1, 0
        %vm2510 = vcmp.eq.s32.totalorder %v2509, 1
        %v2511 = vsel %vm2510, %v2501, -1e+20
        %v2512 = vsel %vm2510, %v2502, -1e+20
        %v2513 = vsel %vm2510, %v2503, -1e+20
        %v2514 = vsel %vm2510, %v2504, -1e+20
        %vm2515 = vcmask 80896
        %v2516 = vsel %vm2515, %v2511, -inf
        %2517 = vmax.xlane.f32.xlu0 %v2516
        %v2518 = vpop.xlane.xlu0 %2517
        %v2519 = vsel %vm2515, %v2512, -inf
        %2520 = vmax.xlane.f32.xlu0 %v2519
        %v2521 = vpop.xlane.xlu0 %2520
        %v2522 = vsel %vm2515, %v2513, -inf
        %2523 = vmax.xlane.f32.xlu0 %v2522
        %v2524 = vpop.xlane.xlu0 %2523
        %v2525 = vsel %vm2515, %v2514, -inf
        %2526 = vmax.xlane.f32.xlu0 %v2525
        %v2527 = vpop.xlane.xlu0 %2526
        %v2528 = vsub.f32 %v2511, %v2518
        %v2529 = vsub.f32 %v2512, %v2521
        %v2530 = vsub.f32 %v2513, %v2524
        %v2531 = vsub.f32 %v2514, %v2527
        %v2532 = vmul.f32 %v2528, 1.442695
        %v2533 = vpow.pop %v2532
        %v2534 = vmul.f32 %v2529, 1.442695
        %v2535 = vpow.pop %v2534
        %v2536 = vmul.f32 %v2530, 1.442695
        %v2537 = vpow.pop %v2536
        %v2538 = vmul.f32 %v2531, 1.442695
        %v2539 = vpow.pop %v2538
        %v2540 = vsel %vm2515, %v2533, 0.0
        %2541 = vadd.xlane.f32.xlu0 %v2540
        %v2542 = vpop.xlane.xlu0 %2541
        %v2543 = vsel %vm2515, %v2535, 0.0
        %2544 = vadd.xlane.f32.xlu0 %v2543
        %v2545 = vpop.xlane.xlu0 %2544
        %v2546 = vsel %vm2515, %v2537, 0.0
        %2547 = vadd.xlane.f32.xlu0 %v2546
        %v2548 = vpop.xlane.xlu0 %2547
        %v2549 = vsel %vm2515, %v2539, 0.0
        %2550 = vadd.xlane.f32.xlu0 %v2549
        %v2551 = vpop.xlane.xlu0 %2550
        %v2552 = vrcp.pop %v2542
        %v2553 = vrcp.pop %v2545
        %v2554 = vrcp.pop %v2548
        %v2555 = vrcp.pop %v2551
        %v2556 = vmul.f32 %v2533, %v2552
        %v2557 = vmul.f32 %v2535, %v2553
        %v2558 = vmul.f32 %v2537, %v2554
        %v2559 = vmul.f32 %v2539, %v2555
        %v2560 = vpack.c.bf16 %v2556, %v2556
        %v2561 = vpack.c.bf16 %v2557, %v2557
        %v2562 = vpack.c.bf16 %v2558, %v2558
        %v2563 = vpack.c.bf16 %v2559, %v2559
        %v2565 = vsel %vm2515, %v2560, 0
        %vm2567 = vcmask 1044480
        %v2569 = vsel %vm2567, %v2313, 0
        %2571 = vmatprep.subr.bf16.mxu0 0
        %2572 = vmatpush1.bf16.msra.mxu0 %v2569
        %2573 = vmatprep.subr.bf16.mxu0 0
        %2574 = vmatpush1.bf16.msra.mxu0 0
        %2575 = vmatprep.subr.bf16.mxu0 0
        %2576 = vmatpush1.bf16.msra.mxu0 0
        %2577 = vmatprep.subr.bf16.mxu0 0
        %2578 = vmatpush1.bf16.msra.mxu0 0
        %2579 = vmatprep.subr.bf16.mxu0 0
        %2580 = vmatpush1.bf16.msra.mxu0 0
        %2581 = vmatprep.subr.bf16.mxu0 0
        %2582 = vmatpush1.bf16.msra.mxu0 0
        %2583 = vmatprep.subr.bf16.mxu0 0
        %2584 = vmatpush1.bf16.msra.mxu0 0
        %2585 = vmatprep.subr.bf16.mxu0 0
        %2586 = vmatpush1.bf16.msra.mxu0 0
        %2587 = vmatprep.subr.bf16.mxu0 0
        %2588 = vmatpush1.bf16.msra.mxu0 0
        %2589 = vmatprep.subr.bf16.mxu0 0
        %2590 = vmatpush1.bf16.msra.mxu0 0
        %2591 = vmatprep.subr.bf16.mxu0 0
        %2592 = vmatpush1.bf16.msra.mxu0 0
        %2593 = vmatprep.subr.bf16.mxu0 0
        %2594 = vmatpush1.bf16.msra.mxu0 0
        %2595 = vmatprep.subr.bf16.mxu0 0
        %2596 = vmatpush1.bf16.msra.mxu0 0
        %2597 = vmatprep.subr.bf16.mxu0 0
        %2598 = vmatpush1.bf16.msra.mxu0 0
        %2599 = vmatprep.subr.bf16.mxu0 0
        %2600 = vmatpush1.bf16.msra.mxu0 0
        %2601 = vmatprep.subr.bf16.mxu0 0
        %2602 = vmatpush1.bf16.msra.mxu0 0
        %2603 = vmatprep.mubr.bf16.mxu0 0
        %2604 = vmatmul.mubr.bf16.gmra.mrb[0].mxu0 %v2565
        %v2605 = vpop.f32.mrb[0].mxu0
        %v2606 = vadd.f32 0.0, %v2605
        %v2607 = vpop.f32.mrb[0].mxu0
        %v2608 = vpop.f32.mrb[0].mxu0
        %v2609 = vpop.f32.mrb[0].mxu0
        %2610 = vdwg.mxu0
        %v2612 = vsel %vm2515, %v2561, 0
        %v2615 = vsel %vm2567, %v2314, 0
        %2617 = vmatprep.subr.bf16.mxu0 0
        %2618 = vmatpush1.bf16.msra.mxu0 %v2615
        %2619 = vmatprep.subr.bf16.mxu0 0
        %2620 = vmatpush1.bf16.msra.mxu0 0
        %2621 = vmatprep.subr.bf16.mxu0 0
        %2622 = vmatpush1.bf16.msra.mxu0 0
        %2623 = vmatprep.subr.bf16.mxu0 0
        %2624 = vmatpush1.bf16.msra.mxu0 0
        %2625 = vmatprep.subr.bf16.mxu0 0
        %2626 = vmatpush1.bf16.msra.mxu0 0
        %2627 = vmatprep.subr.bf16.mxu0 0
        %2628 = vmatpush1.bf16.msra.mxu0 0
        %2629 = vmatprep.subr.bf16.mxu0 0
        %2630 = vmatpush1.bf16.msra.mxu0 0
        %2631 = vmatprep.subr.bf16.mxu0 0
        %2632 = vmatpush1.bf16.msra.mxu0 0
        %2633 = vmatprep.subr.bf16.mxu0 0
        %2634 = vmatpush1.bf16.msra.mxu0 0
        %2635 = vmatprep.subr.bf16.mxu0 0
        %2636 = vmatpush1.bf16.msra.mxu0 0
        %2637 = vmatprep.subr.bf16.mxu0 0
        %2638 = vmatpush1.bf16.msra.mxu0 0
        %2639 = vmatprep.subr.bf16.mxu0 0
        %2640 = vmatpush1.bf16.msra.mxu0 0
        %2641 = vmatprep.subr.bf16.mxu0 0
        %2642 = vmatpush1.bf16.msra.mxu0 0
        %2643 = vmatprep.subr.bf16.mxu0 0
        %2644 = vmatpush1.bf16.msra.mxu0 0
        %2645 = vmatprep.subr.bf16.mxu0 0
        %2646 = vmatpush1.bf16.msra.mxu0 0
        %2647 = vmatprep.subr.bf16.mxu0 0
        %2648 = vmatpush1.bf16.msra.mxu0 0
        %2649 = vmatprep.mubr.bf16.mxu0 0
        %2650 = vmatmul.mubr.bf16.gmra.mrb[0].mxu0 %v2612
        %v2651 = vpop.f32.mrb[0].mxu0
        %v2652 = vadd.f32 0.0, %v2651
        %v2653 = vpop.f32.mrb[0].mxu0
        %v2654 = vpop.f32.mrb[0].mxu0
        %v2655 = vpop.f32.mrb[0].mxu0
        %2656 = vdwg.mxu0
        %v2658 = vsel %vm2515, %v2562, 0
        %v2661 = vsel %vm2567, %v2315, 0
        %2663 = vmatprep.subr.bf16.mxu0 0
        %2664 = vmatpush1.bf16.msra.mxu0 %v2661
        %2665 = vmatprep.subr.bf16.mxu0 0
        %2666 = vmatpush1.bf16.msra.mxu0 0
        %2667 = vmatprep.subr.bf16.mxu0 0
        %2668 = vmatpush1.bf16.msra.mxu0 0
        %2669 = vmatprep.subr.bf16.mxu0 0
        %2670 = vmatpush1.bf16.msra.mxu0 0
        %2671 = vmatprep.subr.bf16.mxu0 0
        %2672 = vmatpush1.bf16.msra.mxu0 0
        %2673 = vmatprep.subr.bf16.mxu0 0
        %2674 = vmatpush1.bf16.msra.mxu0 0
        %2675 = vmatprep.subr.bf16.mxu0 0
        %2676 = vmatpush1.bf16.msra.mxu0 0
        %2677 = vmatprep.subr.bf16.mxu0 0
        %2678 = vmatpush1.bf16.msra.mxu0 0
        %2679 = vmatprep.subr.bf16.mxu0 0
        %2680 = vmatpush1.bf16.msra.mxu0 0
        %2681 = vmatprep.subr.bf16.mxu0 0
        %2682 = vmatpush1.bf16.msra.mxu0 0
        %2683 = vmatprep.subr.bf16.mxu0 0
        %2684 = vmatpush1.bf16.msra.mxu0 0
        %2685 = vmatprep.subr.bf16.mxu0 0
        %2686 = vmatpush1.bf16.msra.mxu0 0
        %2687 = vmatprep.subr.bf16.mxu0 0
        %2688 = vmatpush1.bf16.msra.mxu0 0
        %2689 = vmatprep.subr.bf16.mxu0 0
        %2690 = vmatpush1.bf16.msra.mxu0 0
        %2691 = vmatprep.subr.bf16.mxu0 0
        %2692 = vmatpush1.bf16.msra.mxu0 0
        %2693 = vmatprep.subr.bf16.mxu0 0
        %2694 = vmatpush1.bf16.msra.mxu0 0
        %2695 = vmatprep.mubr.bf16.mxu0 0
        %2696 = vmatmul.mubr.bf16.gmra.mrb[0].mxu0 %v2658
        %v2697 = vpop.f32.mrb[0].mxu0
        %v2698 = vadd.f32 0.0, %v2697
        %v2699 = vpop.f32.mrb[0].mxu0
        %v2700 = vpop.f32.mrb[0].mxu0
        %v2701 = vpop.f32.mrb[0].mxu0
        %2702 = vdwg.mxu0
        %v2704 = vsel %vm2515, %v2563, 0
        %v2707 = vsel %vm2567, %v2316, 0
        %2709 = vmatprep.subr.bf16.mxu0 0
        %2710 = vmatpush1.bf16.msra.mxu0 %v2707
        %2711 = vmatprep.subr.bf16.mxu0 0
        %2712 = vmatpush1.bf16.msra.mxu0 0
        %2713 = vmatprep.subr.bf16.mxu0 0
        %2714 = vmatpush1.bf16.msra.mxu0 0
        %2715 = vmatprep.subr.bf16.mxu0 0
        %2716 = vmatpush1.bf16.msra.mxu0 0
        %2717 = vmatprep.subr.bf16.mxu0 0
        %2718 = vmatpush1.bf16.msra.mxu0 0
        %2719 = vmatprep.subr.bf16.mxu0 0
        %2720 = vmatpush1.bf16.msra.mxu0 0
        %2721 = vmatprep.subr.bf16.mxu0 0
        %2722 = vmatpush1.bf16.msra.mxu0 0
        %2723 = vmatprep.subr.bf16.mxu0 0
        %2724 = vmatpush1.bf16.msra.mxu0 0
        %2725 = vmatprep.subr.bf16.mxu0 0
        %2726 = vmatpush1.bf16.msra.mxu0 0
        %2727 = vmatprep.subr.bf16.mxu0 0
        %2728 = vmatpush1.bf16.msra.mxu0 0
        %2729 = vmatprep.subr.bf16.mxu0 0
        %2730 = vmatpush1.bf16.msra.mxu0 0
        %2731 = vmatprep.subr.bf16.mxu0 0
        %2732 = vmatpush1.bf16.msra.mxu0 0
        %2733 = vmatprep.subr.bf16.mxu0 0
        %2734 = vmatpush1.bf16.msra.mxu0 0
        %2735 = vmatprep.subr.bf16.mxu0 0
        %2736 = vmatpush1.bf16.msra.mxu0 0
        %2737 = vmatprep.subr.bf16.mxu0 0
        %2738 = vmatpush1.bf16.msra.mxu0 0
        %2739 = vmatprep.subr.bf16.mxu0 0
        %2740 = vmatpush1.bf16.msra.mxu0 0
        %2741 = vmatprep.mubr.bf16.mxu0 0
        %2742 = vmatmul.mubr.bf16.gmra.mrb[0].mxu0 %v2704
        %v2743 = vpop.f32.mrb[0].mxu0
        %v2744 = vadd.f32 0.0, %v2743
        %v2745 = vpop.f32.mrb[0].mxu0
        %v2746 = vpop.f32.mrb[0].mxu0
        %v2747 = vpop.f32.mrb[0].mxu0
        %2748 = vdwg.mxu0
        %2750 = vrot.lane.b32.xlu0 %v2652, 32
        %v2751 = vpop.permute.xlu0 %2750
        %2754 = vrot.lane.b32.xlu0 %v2698, 64
        %v2755 = vpop.permute.xlu0 %2754
        %2758 = vrot.lane.b32.xlu0 %v2744, 96
        %v2759 = vpop.permute.xlu0 %2758
        %v2761 = vsel %vm1400, %v2606, %v2751
        %v2762 = vsel %vm1846, %v2761, %v2755
        %v2763 = vsel %vm1848, %v2762, %v2759
        %v2764 = vpack.c.bf16 %v2763, %v2763
        %v2765 = vld [vmem:[#allocation16] sm:$0xf]
        %v2766 = vld [vmem:[#allocation16 + $0x4] sm:$0xf]
        %v2767 = vld [vmem:[#allocation16 + $0x8] sm:$0xf]
        %v2768 = vld [vmem:[#allocation16 + $0xc] sm:$0xf]
        %v2769 = vld [vmem:[#allocation16 + $0x10] sm:$0xf]
        %v2770 = vld [vmem:[#allocation16 + $0x14] sm:$0xf]
        %v2771 = vld [vmem:[#allocation16 + $0x18] sm:$0xf]
        %v2772 = vld [vmem:[#allocation16 + $0x1c] sm:$0xf]
        %v2773 = vld [vmem:[#allocation16 + $0x20] sm:$0xf]
        %v2774 = vld [vmem:[#allocation16 + $0x24] sm:$0xf]
        %v2775 = vld [vmem:[#allocation16 + $0x28] sm:$0xf]
        %v2776 = vld [vmem:[#allocation16 + $0x2c] sm:$0xf]
        %v2777 = vld [vmem:[#allocation16 + $0x30] sm:$0xf]
        %v2778 = vld [vmem:[#allocation16 + $0x34] sm:$0xf]
        %v2779 = vld [vmem:[#allocation16 + $0x38] sm:$0xf]
        %v2780 = vld [vmem:[#allocation16 + $0x3c] sm:$0xf]
        %v2781 = vld [vmem:[%s16] sm:$0x1]
        %v2783 = vlaneseq
        %v2784 = vshrl.u32 %v2783, 7
        %v2785 = vsub.s32 0, %v2784
        %v2786 = vrot.slane %v2781, %v2785
        %v2804 = vunpack.c.l.b16 %v2765
        %v2805 = vunpack.c.l.b16 %v2766
        %v2806 = vunpack.c.l.b16 %v2767
        %v2807 = vunpack.c.l.b16 %v2768
        %v2808 = vunpack.c.l.b16 %v2769
        %v2809 = vunpack.c.l.b16 %v2770
        %v2810 = vunpack.c.l.b16 %v2771
        %v2811 = vunpack.c.l.b16 %v2772
        %v2812 = vunpack.c.l.b16 %v2773
        %v2813 = vunpack.c.l.b16 %v2774
        %v2814 = vunpack.c.l.b16 %v2775
        %v2815 = vunpack.c.l.b16 %v2776
        %v2816 = vunpack.c.l.b16 %v2777
        %v2817 = vunpack.c.l.b16 %v2778
        %v2818 = vunpack.c.l.b16 %v2779
        %v2819 = vunpack.c.l.b16 %v2780
        %v2820 = vpack.c.b16 %v2805, %v2804
        %v2821 = vpack.c.b16 %v2807, %v2806
        %v2822 = vpack.c.b16 %v2809, %v2808
        %v2823 = vpack.c.b16 %v2811, %v2810
        %v2824 = vpack.c.b16 %v2813, %v2812
        %v2825 = vpack.c.b16 %v2815, %v2814
        %v2826 = vpack.c.b16 %v2817, %v2816
        %v2827 = vpack.c.b16 %v2819, %v2818
        %2836 = vmatprep.subr.bf16.mxu0 0
        %2837 = vmatpush1.bf16.msra.mxu0 %v2820
        %2838 = vmatprep.subr.bf16.mxu0 0
        %2839 = vmatpush1.bf16.msra.mxu0 %v2821
        %2840 = vmatprep.subr.bf16.mxu0 0
        %2841 = vmatpush1.bf16.msra.mxu0 %v2822
        %2842 = vmatprep.subr.bf16.mxu0 0
        %2843 = vmatpush1.bf16.msra.mxu0 %v2823
        %2844 = vmatprep.subr.bf16.mxu0 0
        %2845 = vmatpush1.bf16.msra.mxu0 %v2824
        %2846 = vmatprep.subr.bf16.mxu0 0
        %2847 = vmatpush1.bf16.msra.mxu0 %v2825
        %2848 = vmatprep.subr.bf16.mxu0 0
        %2849 = vmatpush1.bf16.msra.mxu0 %v2826
        %2850 = vmatprep.subr.bf16.mxu0 0
        %2851 = vmatpush1.bf16.msra.mxu0 %v2827
        %2852 = vmatprep.subr.bf16.mxu0 0
        %2853 = vmatpush1.bf16.msra.mxu0 0
        %2854 = vmatprep.subr.bf16.mxu0 0
        %2855 = vmatpush1.bf16.msra.mxu0 0
        %2856 = vmatprep.subr.bf16.mxu0 0
        %2857 = vmatpush1.bf16.msra.mxu0 0
        %2858 = vmatprep.subr.bf16.mxu0 0
        %2859 = vmatpush1.bf16.msra.mxu0 0
        %2860 = vmatprep.subr.bf16.mxu0 0
        %2861 = vmatpush1.bf16.msra.mxu0 0
        %2862 = vmatprep.subr.bf16.mxu0 0
        %2863 = vmatpush1.bf16.msra.mxu0 0
        %2864 = vmatprep.subr.bf16.mxu0 0
        %2865 = vmatpush1.bf16.msra.mxu0 0
        %2866 = vmatprep.subr.bf16.mxu0 0
        %2867 = vmatpush1.bf16.msra.mxu0 0
        %2868 = vmatprep.mubr.bf16.mxu0 0
        %2869 = vmatmul.mubr.bf16.gmra.mrb[0].mxu0 %v2764
        %v2870 = vpop.f32.mrb[0].mxu0
        %v2871 = vadd.f32 %v2786, %v2870
        %v2872 = vpop.f32.mrb[0].mxu0
        %v2873 = vpop.f32.mrb[0].mxu0
        %v2874 = vpop.f32.mrb[0].mxu0
        %2875 = vdwg.mxu0
        %v2876 = vadd.f32 %v2871, %v1990
        %v2877 = vld [vmem:[%s23] sm:$0x1]
        %v2878 = vld [vmem:[%s24] sm:$0x1]
        %2879 = vadd.xlane.f32.xlu0 %v2876
        %v2880 = vpop.xlane.xlu0 %2879
        %v2881 = vmul.f32 %v2880, %v1967
        %v2882 = vsub.f32 %v2876, %v2881
        %v2883 = vmul.f32 %v2882, %v2882
        %2884 = vadd.xlane.f32.xlu0 %v2883
        %v2885 = vpop.xlane.xlu0 %2884
        %v2886 = vmul.f32 %v2885, %v1967
        %v2887 = vadd.f32 %v2886, 1e-05
        %v2888 = vrsqrt.pop %v2887
        %v2889 = vmul.f32 %v2882, %v2888
        %v2891 = vlaneseq
        %v2892 = vshrl.u32 %v2891, 7
        %v2893 = vsub.s32 0, %v2892
        %v2894 = vrot.slane %v2877, %v2893
        %v2896 = vmul.f32 %v2889, %v2894
        %v2898 = vlaneseq
        %v2899 = vshrl.u32 %v2898, 7
        %v2900 = vsub.s32 0, %v2899
        %v2901 = vrot.slane %v2878, %v2900
        %v2903 = vadd.f32 %v2896, %v2901
        %v2904 = vpack.c.bf16 %v2903, %v2903
        %v2905 = vld [vmem:[#allocation17] sm:$0xff]
        %v2906 = vld [vmem:[#allocation17 + $0x8] sm:$0xff]
        %v2907 = vld [vmem:[#allocation17 + $0x10] sm:$0xff]
        %v2908 = vld [vmem:[#allocation17 + $0x18] sm:$0xff]
        %v2909 = vld [vmem:[#allocation17 + $0x20] sm:$0xff]
        %v2910 = vld [vmem:[#allocation17 + $0x28] sm:$0xff]
        %v2911 = vld [vmem:[#allocation17 + $0x30] sm:$0xff]
        %v2912 = vld [vmem:[#allocation17 + $0x38] sm:$0xff]
        %v2913 = vld [vmem:[#allocation17 + $0x40] sm:$0xff]
        %v2914 = vld [vmem:[#allocation17 + $0x48] sm:$0xff]
        %v2915 = vld [vmem:[#allocation17 + $0x50] sm:$0xff]
        %v2916 = vld [vmem:[#allocation17 + $0x58] sm:$0xff]
        %v2917 = vld [vmem:[#allocation17 + $0x60] sm:$0xff]
        %v2918 = vld [vmem:[#allocation17 + $0x68] sm:$0xff]
        %v2919 = vld [vmem:[#allocation17 + $0x70] sm:$0xff]
        %v2920 = vld [vmem:[#allocation17 + $0x78] sm:$0xff]
        %v2921 = vld [vmem:[%s18] sm:$0x3]
        %v2923 = vlaneseq
        %v2924 = vshrl.u32 %v2923, 7
        %v2925 = vsub.s32 0, %v2924
        %v2926 = vrot.slane %v2921, %v2925
        %v2927 = vlaneseq
        %v2928 = vshrl.u32 %v2927, 7
        %v2929 = vsub.s32 1, %v2928
        %v2930 = vrot.slane %v2921, %v2929
        %v2949 = vunpack.c.l.b16 %v2905
        %v2950 = vunpack.c.h.b16 %v2905
        %v2951 = vunpack.c.l.b16 %v2906
        %v2952 = vunpack.c.h.b16 %v2906
        %v2953 = vunpack.c.l.b16 %v2907
        %v2954 = vunpack.c.h.b16 %v2907
        %v2955 = vunpack.c.l.b16 %v2908
        %v2956 = vunpack.c.h.b16 %v2908
        %v2957 = vunpack.c.l.b16 %v2909
        %v2958 = vunpack.c.h.b16 %v2909
        %v2959 = vunpack.c.l.b16 %v2910
        %v2960 = vunpack.c.h.b16 %v2910
        %v2961 = vunpack.c.l.b16 %v2911
        %v2962 = vunpack.c.h.b16 %v2911
        %v2963 = vunpack.c.l.b16 %v2912
        %v2964 = vunpack.c.h.b16 %v2912
        %v2965 = vunpack.c.l.b16 %v2913
        %v2966 = vunpack.c.h.b16 %v2913
        %v2967 = vunpack.c.l.b16 %v2914
        %v2968 = vunpack.c.h.b16 %v2914
        %v2969 = vunpack.c.l.b16 %v2915
        %v2970 = vunpack.c.h.b16 %v2915
        %v2971 = vunpack.c.l.b16 %v2916
        %v2972 = vunpack.c.h.b16 %v2916
        %v2973 = vunpack.c.l.b16 %v2917
        %v2974 = vunpack.c.h.b16 %v2917
        %v2975 = vunpack.c.l.b16 %v2918
        %v2976 = vunpack.c.h.b16 %v2918
        %v2977 = vunpack.c.l.b16 %v2919
        %v2978 = vunpack.c.h.b16 %v2919
        %v2979 = vunpack.c.l.b16 %v2920
        %v2980 = vunpack.c.h.b16 %v2920
        %v2981 = vpack.c.b16 %v2951, %v2949
        %v2982 = vpack.c.b16 %v2952, %v2950
        %v2983 = vpack.c.b16 %v2955, %v2953
        %v2984 = vpack.c.b16 %v2956, %v2954
        %v2985 = vpack.c.b16 %v2959, %v2957
        %v2986 = vpack.c.b16 %v2960, %v2958
        %v2987 = vpack.c.b16 %v2963, %v2961
        %v2988 = vpack.c.b16 %v2964, %v2962
        %v2989 = vpack.c.b16 %v2967, %v2965
        %v2990 = vpack.c.b16 %v2968, %v2966
        %v2991 = vpack.c.b16 %v2971, %v2969
        %v2992 = vpack.c.b16 %v2972, %v2970
        %v2993 = vpack.c.b16 %v2975, %v2973
        %v2994 = vpack.c.b16 %v2976, %v2974
        %v2995 = vpack.c.b16 %v2979, %v2977
        %v2996 = vpack.c.b16 %v2980, %v2978
        %3013 = vmatprep.subr.bf16.mxu0 %v2982
        %3014 = vmatpush1.bf16.msra.mxu0 %v2981
        %3015 = vmatprep.subr.bf16.mxu0 %v2984
        %3016 = vmatpush1.bf16.msra.mxu0 %v2983
        %3017 = vmatprep.subr.bf16.mxu0 %v2986
        %3018 = vmatpush1.bf16.msra.mxu0 %v2985
        %3019 = vmatprep.subr.bf16.mxu0 %v2988
        %3020 = vmatpush1.bf16.msra.mxu0 %v2987
        %3021 = vmatprep.subr.bf16.mxu0 %v2990
        %3022 = vmatpush1.bf16.msra.mxu0 %v2989
        %3023 = vmatprep.subr.bf16.mxu0 %v2992
        %3024 = vmatpush1.bf16.msra.mxu0 %v2991
        %3025 = vmatprep.subr.bf16.mxu0 %v2994
        %3026 = vmatpush1.bf16.msra.mxu0 %v2993
        %3027 = vmatprep.subr.bf16.mxu0 %v2996
        %3028 = vmatpush1.bf16.msra.mxu0 %v2995
        %3029 = vmatprep.subr.bf16.mxu0 0
        %3030 = vmatpush1.bf16.msra.mxu0 0
        %3031 = vmatprep.subr.bf16.mxu0 0
        %3032 = vmatpush1.bf16.msra.mxu0 0
        %3033 = vmatprep.subr.bf16.mxu0 0
        %3034 = vmatpush1.bf16.msra.mxu0 0
        %3035 = vmatprep.subr.bf16.mxu0 0
        %3036 = vmatpush1.bf16.msra.mxu0 0
        %3037 = vmatprep.subr.bf16.mxu0 0
        %3038 = vmatpush1.bf16.msra.mxu0 0
        %3039 = vmatprep.subr.bf16.mxu0 0
        %3040 = vmatpush1.bf16.msra.mxu0 0
        %3041 = vmatprep.subr.bf16.mxu0 0
        %3042 = vmatpush1.bf16.msra.mxu0 0
        %3043 = vmatprep.subr.bf16.mxu0 0
        %3044 = vmatpush1.bf16.msra.mxu0 0
        %3045 = vmatprep.mubr.bf16.mxu0 0
        %3046 = vmatmul.mubr.bf16.gmra.mrb[0].mxu0 %v2904
        %v3047 = vpop.f32.mrb[0].mxu0
        %v3048 = vadd.f32 %v2926, %v3047
        %v3049 = vpop.f32.mrb[0].mxu0
        %v3050 = vadd.f32 %v2930, %v3049
        %v3051 = vpop.f32.mrb[0].mxu0
        %v3052 = vpop.f32.mrb[0].mxu0
        %3053 = vdwg.mxu0
        %v3054 = vmax.f32 %v3048, 0.0
        %v3055 = vmax.f32 %v3050, 0.0
        %v3056 = vpack.c.bf16 %v3054, %v3054
        %v3057 = vpack.c.bf16 %v3055, %v3055
        %v3058 = vld [vmem:[#allocation19] sm:$0xf]
        %v3059 = vld [vmem:[#allocation19 + $0x4] sm:$0xf]
        %v3060 = vld [vmem:[#allocation19 + $0x8] sm:$0xf]
        %v3061 = vld [vmem:[#allocation19 + $0xc] sm:$0xf]
        %v3062 = vld [vmem:[#allocation19 + $0x10] sm:$0xf]
        %v3063 = vld [vmem:[#allocation19 + $0x14] sm:$0xf]
        %v3064 = vld [vmem:[#allocation19 + $0x18] sm:$0xf]
        %v3065 = vld [vmem:[#allocation19 + $0x1c] sm:$0xf]
        %v3066 = vld [vmem:[#allocation19 + $0x20] sm:$0xf]
        %v3067 = vld [vmem:[#allocation19 + $0x24] sm:$0xf]
        %v3068 = vld [vmem:[#allocation19 + $0x28] sm:$0xf]
        %v3069 = vld [vmem:[#allocation19 + $0x2c] sm:$0xf]
        %v3070 = vld [vmem:[#allocation19 + $0x30] sm:$0xf]
        %v3071 = vld [vmem:[#allocation19 + $0x34] sm:$0xf]
        %v3072 = vld [vmem:[#allocation19 + $0x38] sm:$0xf]
        %v3073 = vld [vmem:[#allocation19 + $0x3c] sm:$0xf]
        %v3074 = vld [vmem:[#allocation19 + $0x40] sm:$0xf]
        %v3075 = vld [vmem:[#allocation19 + $0x44] sm:$0xf]
        %v3076 = vld [vmem:[#allocation19 + $0x48] sm:$0xf]
        %v3077 = vld [vmem:[#allocation19 + $0x4c] sm:$0xf]
        %v3078 = vld [vmem:[#allocation19 + $0x50] sm:$0xf]
        %v3079 = vld [vmem:[#allocation19 + $0x54] sm:$0xf]
        %v3080 = vld [vmem:[#allocation19 + $0x58] sm:$0xf]
        %v3081 = vld [vmem:[#allocation19 + $0x5c] sm:$0xf]
        %v3082 = vld [vmem:[#allocation19 + $0x60] sm:$0xf]
        %v3083 = vld [vmem:[#allocation19 + $0x64] sm:$0xf]
        %v3084 = vld [vmem:[#allocation19 + $0x68] sm:$0xf]
        %v3085 = vld [vmem:[#allocation19 + $0x6c] sm:$0xf]
        %v3086 = vld [vmem:[#allocation19 + $0x70] sm:$0xf]
        %v3087 = vld [vmem:[#allocation19 + $0x74] sm:$0xf]
        %v3088 = vld [vmem:[#allocation19 + $0x78] sm:$0xf]
        %v3089 = vld [vmem:[#allocation19 + $0x7c] sm:$0xf]
        %v3090 = vld [vmem:[%s20] sm:$0x1]
        %v3092 = vlaneseq
        %v3093 = vshrl.u32 %v3092, 7
        %v3094 = vsub.s32 0, %v3093
        %v3095 = vrot.slane %v3090, %v3094
        %v3129 = vunpack.c.l.b16 %v3058
        %v3130 = vunpack.c.l.b16 %v3059
        %v3131 = vunpack.c.l.b16 %v3060
        %v3132 = vunpack.c.l.b16 %v3061
        %v3133 = vunpack.c.l.b16 %v3062
        %v3134 = vunpack.c.l.b16 %v3063
        %v3135 = vunpack.c.l.b16 %v3064
        %v3136 = vunpack.c.l.b16 %v3065
        %v3137 = vunpack.c.l.b16 %v3066
        %v3138 = vunpack.c.l.b16 %v3067
        %v3139 = vunpack.c.l.b16 %v3068
        %v3140 = vunpack.c.l.b16 %v3069
        %v3141 = vunpack.c.l.b16 %v3070
        %v3142 = vunpack.c.l.b16 %v3071
        %v3143 = vunpack.c.l.b16 %v3072
        %v3144 = vunpack.c.l.b16 %v3073
        %v3145 = vunpack.c.l.b16 %v3074
        %v3146 = vunpack.c.l.b16 %v3075
        %v3147 = vunpack.c.l.b16 %v3076
        %v3148 = vunpack.c.l.b16 %v3077
        %v3149 = vunpack.c.l.b16 %v3078
        %v3150 = vunpack.c.l.b16 %v3079
        %v3151 = vunpack.c.l.b16 %v3080
        %v3152 = vunpack.c.l.b16 %v3081
        %v3153 = vunpack.c.l.b16 %v3082
        %v3154 = vunpack.c.l.b16 %v3083
        %v3155 = vunpack.c.l.b16 %v3084
        %v3156 = vunpack.c.l.b16 %v3085
        %v3157 = vunpack.c.l.b16 %v3086
        %v3158 = vunpack.c.l.b16 %v3087
        %v3159 = vunpack.c.l.b16 %v3088
        %v3160 = vunpack.c.l.b16 %v3089
        %v3161 = vpack.c.b16 %v3130, %v3129
        %v3162 = vpack.c.b16 %v3132, %v3131
        %v3163 = vpack.c.b16 %v3134, %v3133
        %v3164 = vpack.c.b16 %v3136, %v3135
        %v3165 = vpack.c.b16 %v3138, %v3137
        %v3166 = vpack.c.b16 %v3140, %v3139
        %v3167 = vpack.c.b16 %v3142, %v3141
        %v3168 = vpack.c.b16 %v3144, %v3143
        %v3169 = vpack.c.b16 %v3146, %v3145
        %v3170 = vpack.c.b16 %v3148, %v3147
        %v3171 = vpack.c.b16 %v3150, %v3149
        %v3172 = vpack.c.b16 %v3152, %v3151
        %v3173 = vpack.c.b16 %v3154, %v3153
        %v3174 = vpack.c.b16 %v3156, %v3155
        %v3175 = vpack.c.b16 %v3158, %v3157
        %v3176 = vpack.c.b16 %v3160, %v3159
        %3193 = vmatprep.subr.bf16.mxu0 0
        %3194 = vmatpush1.bf16.msra.mxu0 %v3161
        %3195 = vmatprep.subr.bf16.mxu0 0
        %3196 = vmatpush1.bf16.msra.mxu0 %v3162
        %3197 = vmatprep.subr.bf16.mxu0 0
        %3198 = vmatpush1.bf16.msra.mxu0 %v3163
        %3199 = vmatprep.subr.bf16.mxu0 0
        %3200 = vmatpush1.bf16.msra.mxu0 %v3164
        %3201 = vmatprep.subr.bf16.mxu0 0
        %3202 = vmatpush1.bf16.msra.mxu0 %v3165
        %3203 = vmatprep.subr.bf16.mxu0 0
        %3204 = vmatpush1.bf16.msra.mxu0 %v3166
        %3205 = vmatprep.subr.bf16.mxu0 0
        %3206 = vmatpush1.bf16.msra.mxu0 %v3167
        %3207 = vmatprep.subr.bf16.mxu0 0
        %3208 = vmatpush1.bf16.msra.mxu0 %v3168
        %3209 = vmatprep.subr.bf16.mxu0 0
        %3210 = vmatpush1.bf16.msra.mxu0 %v3169
        %3211 = vmatprep.subr.bf16.mxu0 0
        %3212 = vmatpush1.bf16.msra.mxu0 %v3170
        %3213 = vmatprep.subr.bf16.mxu0 0
        %3214 = vmatpush1.bf16.msra.mxu0 %v3171
        %3215 = vmatprep.subr.bf16.mxu0 0
        %3216 = vmatpush1.bf16.msra.mxu0 %v3172
        %3217 = vmatprep.subr.bf16.mxu0 0
        %3218 = vmatpush1.bf16.msra.mxu0 %v3173
        %3219 = vmatprep.subr.bf16.mxu0 0
        %3220 = vmatpush1.bf16.msra.mxu0 %v3174
        %3221 = vmatprep.subr.bf16.mxu0 0
        %3222 = vmatpush1.bf16.msra.mxu0 %v3175
        %3223 = vmatprep.subr.bf16.mxu0 0
        %3224 = vmatpush1.bf16.msra.mxu0 %v3176
        %3225 = vmatprep.mubr.bf16.mxu0 %v3057
        %3226 = vmatmul.mubr.bf16.gmra.mrb[0].mxu0 %v3056
        %v3227 = vpop.f32.mrb[0].mxu0
        %v3228 = vadd.f32 %v3095, %v3227
        %v3229 = vpop.f32.mrb[0].mxu0
        %v3230 = vpop.f32.mrb[0].mxu0
        %v3231 = vpop.f32.mrb[0].mxu0
        %3232 = vdwg.mxu0
        %v3233 = vadd.f32 %v3228, %v2903
        %v3234 = vld [vmem:[%s25] sm:$0x1]
        %v3235 = vld [vmem:[%s26] sm:$0x1]
        %3236 = vadd.xlane.f32.xlu0 %v3233
        %v3237 = vpop.xlane.xlu0 %3236
        %v3238 = vmul.f32 %v3237, %v1967
        %v3239 = vsub.f32 %v3233, %v3238
        %v3240 = vmul.f32 %v3239, %v3239
        %3241 = vadd.xlane.f32.xlu0 %v3240
        %v3242 = vpop.xlane.xlu0 %3241
        %v3243 = vmul.f32 %v3242, %v1967
        %v3244 = vadd.f32 %v3243, 1e-05
        %v3245 = vrsqrt.pop %v3244
        %v3246 = vmul.f32 %v3239, %v3245
        %v3248 = vlaneseq
        %v3249 = vshrl.u32 %v3248, 7
        %v3250 = vsub.s32 0, %v3249
        %v3251 = vrot.slane %v3234, %v3250
        %v3253 = vmul.f32 %v3246, %v3251
        %v3255 = vlaneseq
        %v3256 = vshrl.u32 %v3255, 7
        %v3257 = vsub.s32 0, %v3256
        %v3258 = vrot.slane %v3235, %v3257
        %v3260 = vadd.f32 %v3253, %v3258
        %3261 = vst [vmem:[%s1074] sm:$0xff] %v3260
        %s3262 = sand.u32 %s671, 1
        %s3263 = scalar_lea.sflag [#allocation4], %s3262
        %s3264 = sand.u32 %s671, 1
        %s3265 = smul.addr %s3264, 8
        %s3266 = scalar_lea.vmem [#allocation20], %s3265
        // Predicated region
        $region173: #{tpu_custom_call.1} parent=127 // pred_check
          %p3267 = pneg %p681
        $region174: #{tpu_custom_call.1} parent=127 // pred_check_branch
          %3269 = sbr.rel (%p3267) target = $region176
        $region175: #{tpu_custom_call.1} parent=127 // pred_region
          %s3271 = ssub.s32 128, 128
          %3272 = vsyncadd %s3263, %s3271
          %s3273 = sadd.s32 %s56, %s55
          %s3274 = smul.addr %s3273, 128
          %s3275 = scalar_lea.hbm %s27, %s3274
          %s3277 = sshll.u32 %s3266, 4
          %s3278 = int_to_ptr.vmem [resolvable:$true] %s3277
          %3280 = dma.vmem_to_hbm [thread:$0]  %s3278, 128, %s3275, %s3263
        $region176: #{tpu_custom_call.1} parent=127 // pred_fallthru
          _
      $region128: #{tpu_custom_call.1} parent=5 // pred_fallthru
        _
      %p3281 = scmp.le.s32.totalorder 2, %s46
      // Predicated region
      $region177: #{tpu_custom_call.1} parent=5 // pred_check
        %p3282 = pneg %p3281
      $region178: #{tpu_custom_call.1} parent=5 // pred_check_branch
        %3284 = sbr.rel (%p3282) target = $region180
      $region179: #{tpu_custom_call.1} parent=5 // pred_region
        %s3285 = ssub.s32 %s46, 2
        // Predicated region
        $region181: #{tpu_custom_call.1} parent=179 // pred_check
          %p3286 = pneg %p687
        $region182: #{tpu_custom_call.1} parent=179 // pred_check_branch
          %3288 = sbr.rel (%p3286) target = $region184
        $region183: #{tpu_custom_call.1} parent=179 // pred_region
          %s3289 = sand.u32 %s672, 1
          %s3290 = scalar_lea.sflag [#allocation4], %s3289
          %s3291 = sand.u32 %s672, 1
          %s3292 = smul.addr %s3291, 8
          %s3293 = scalar_lea.vmem [#allocation20], %s3292
          %3294 = dma.done %s3290, 128
        $region184: #{tpu_custom_call.1} parent=179 // pred_fallthru
          _
      $region180: #{tpu_custom_call.1} parent=5 // pred_fallthru
        _
    $region6: #{tpu_custom_call.1} parent=1 // loop_footer
      %s50 = sadd.s32 1, %s46
    $region7: #{tpu_custom_call.1} parent=1 // loop_footer_branch
      %45 = sbr.rel target = $region3
    $region8: #{tpu_custom_call.1} parent=1 // loop_exit
      _
    %3295 = vsyncpa [#allocation3], 1
    %s3296 = scalar_lea.sflag [#allocation3], 1
    %3297 = vsyncpa %s3296, 1
    %3298 = vsyncpa [#allocation6], 1
    %s3299 = scalar_lea.sflag [#allocation6], 1
    %3300 = vsyncpa %s3299, 1
    %3301 = vsyncpa [#allocation9], 1
    %3302 = vsyncpa [#allocation12], 1
    %3303 = vsyncpa [#allocation15], 1
    %3304 = vsyncpa [#allocation18], 1
    %3305 = vsyncpa [#allocation4], 1
    %s3306 = scalar_lea.sflag [#allocation4], 1
    %3307 = vsyncpa %s3306, 1

</llo_original>
